<compile_context>
chip_gen: v6e
topology: v6e:2x2x1
jax: 0.10.0
libtpu: 0.0.40
codegen_flags: <defaults>
</compile_context>

<pallas_src>
import jax
import jax.numpy as jnp
from jax.experimental import pallas as pl
from jax.experimental.pallas import tpu as pltpu

# ----------------------------- configuration --------------------------------
C = 32                  # dim
NH = 4                  # num_heads
HD = C // NH            # head_dim = 8
WS = 4                  # window_size
N = WS * WS             # tokens per window = 16
B_ = 8                  # num_windows * batch  (e.g. batch=2, 8x8 resolution, window 4)
R = B_ * N              # total token rows = 128
SCALE = HD ** -0.5      # qk_scale=None -> head_dim ** -0.5
EPS = 0.0               # (unused; no LayerNorm in this module)


def relative_position_index(ws):
    coords = jnp.stack(jnp.meshgrid(jnp.arange(ws), jnp.arange(ws), indexing="ij"))
    flat = coords.reshape(2, -1)                       # (2, N)
    rel = flat[:, :, None] - flat[:, None, :]          # (2, N, N)
    rel = rel.transpose(1, 2, 0)
    rel = rel.at[:, :, 0].add(ws - 1)
    rel = rel.at[:, :, 1].add(ws - 1)
    rel = rel.at[:, :, 0].multiply(2 * ws - 1)
    return rel.sum(-1)                                 # (N, N) int32


# ------------------------------ Pallas kernel ---------------------------------
def cross_attn_kernel(x12_ref, w_ref, b_ref, rpe_ref, out_ref):
    x12 = x12_ref[...]                                  # (2R, C)  bf16  [rescaled; rescaler]
    W = w_ref[...]                                      # (C, 4C)  bf16  [Wk1|Wv1|Wq2*s|Wp]
    bias = b_ref[...]                                   # (1, 4C)  f32   [bk1|bv1|bq2*s|bp]

    # Fused K/V (rescaled stream) + Q (rescaler stream) projection: ONE matmul.
    y = jnp.dot(x12, W, preferred_element_type=jnp.float32) + bias   # (2R, 4C) f32
    yb = y.astype(jnp.bfloat16)

    kv_rows = yb[:R]     # rescaled-stream rows: k / v columns are valid
    q_rows = yb[R:]      # rescaler-stream rows: q columns are valid (already scaled)

    def split_heads(slab, col0):
        # (R, C)-slab columns [col0 : col0+C] -> (NH*B_, N, HD), head-major batch.
        parts = [slab[:, col0 + h * HD: col0 + (h + 1) * HD] for h in range(NH)]
        return jnp.stack(parts).reshape(NH * B_, N, HD)   # leading regroup: free

    kh = split_heads(kv_rows, 0)
    vh = split_heads(kv_rows, C)
    qh = split_heads(q_rows, 2 * C)

    # Batched attention over the fused (head, window) batch dim: 2 dot_generals.
    s = jnp.einsum('bqd,bkd->bqk', qh, kh,
                   preferred_element_type=jnp.float32)              # (NH*B_, N, N)
    s = s.reshape(NH, B_, N, N) + rpe_ref[...][:, None]             # one rpe broadcast
    s = s - jnp.max(s, axis=-1, keepdims=True)
    p = jnp.exp(s)
    p = p / jnp.sum(p, axis=-1, keepdims=True)                      # exact softmax denom
    p = p.reshape(NH * B_, N, N).astype(jnp.bfloat16)
    o = jnp.einsum('bqk,bkd->bqd', p, vh,
                   preferred_element_type=jnp.float32)              # (NH*B_, N, HD)

    # Merge heads back into lanes (one concat) and apply the output projection.
    o = o.astype(jnp.bfloat16).reshape(NH, R, HD)                   # leading regroup: free
    xo = jnp.concatenate([o[h] for h in range(NH)], axis=-1)        # (R, C) bf16
    out = jnp.dot(xo, W[:, 3 * C:], preferred_element_type=jnp.float32) + bias[:, 3 * C:]
    out_ref[...] = out                                              # (R, C) f32


# ------------------------------ wrapper ----------------------------------------
def _full_spec(a):
    nd = a.ndim
    return pl.BlockSpec(a.shape, lambda i, _nd=nd: (0,) * _nd)


@jax.jit
def cross_attention_forward(rescaled, rescaler, params, rpe_index):
    wqkv1, wqkv2 = params["wqkv1"], params["wqkv2"]
    bqkv1, bqkv2 = params["bqkv1"], params["bqkv2"]

    # Pack weights: only the needed QKV columns (k,v from rescaled; q from rescaler),
    # qk-scale folded into the q weights/bias, output-proj weight appended ->
    # one lane-dense (32, 128) bf16 slab and one (1, 128) f32 bias slab.
    w_slab = jnp.concatenate(
        [wqkv1[:, C:2 * C], wqkv1[:, 2 * C:], wqkv2[:, :C] * SCALE, params["wp"]],
        axis=1).astype(jnp.bfloat16)                                 # (C, 4C)
    b_slab = jnp.concatenate(
        [bqkv1[:, C:2 * C], bqkv1[:, 2 * C:], bqkv2[:, :C] * SCALE, params["bp"]],
        axis=1)                                                      # (1, 4C) f32

    # rpe_mode='bias': parameter-only gather of the relative-position bias (XLA glue).
    rpe_bias = params["rpe_table"][:, rpe_index.reshape(-1)].reshape(NH, N, N)

    # Row-stack the two streams so one matmul does both projections.
    x12 = jnp.concatenate([rescaled.reshape(R, C), rescaler.reshape(R, C)],
                          axis=0).astype(jnp.bfloat16)               # (2R, C)

    out = pl.pallas_call(
        cross_attn_kernel,
        out_shape=jax.ShapeDtypeStruct((R, C), jnp.float32),
        grid=(1,),
        in_specs=[_full_spec(x12), _full_spec(w_slab),
                  _full_spec(b_slab), _full_spec(rpe_bias)],
        out_specs=pl.BlockSpec((R, C), lambda i: (0, 0)),
        compiler_params=pltpu.CompilerParams(dimension_semantics=("arbitrary",)),
    )(x12, w_slab, b_slab, rpe_bias)

    return out.reshape(B_, N, C)


# ------------------------- pure-JAX reference ---------------------------------
def reference_forward(rescaled, rescaler, p, rpe_index):
    b_, n_, c_ = rescaled.shape

    def get_qkv(x, w, b):
        qkv = x @ w + b[0]
        qkv = qkv.reshape(b_, n_, 3, NH, HD).transpose(2, 0, 3, 1, 4)
        return qkv[0], qkv[1], qkv[2]

    _, k1, v1 = get_qkv(rescaled, p["wqkv1"], p["bqkv1"])
    q2, _, _ = get_qkv(rescaler, p["wqkv2"], p["bqkv2"])
    q, k, v = q2, k1, v1                     # same_key_query = False
    q = q * SCALE
    rpe = p["rpe_table"][:, rpe_index.reshape(-1)].reshape(NH, n_, n_)
    attn = q @ jnp.swapaxes(k, -2, -1) + rpe[None]
    attn = jax.nn.softmax(attn, axis=-1)
    x = (attn @ v).transpose(0, 2, 1, 3).reshape(b_, n_, c_)
    return x @ p["wp"] + p["bp"][0]


# --------------------------------- main ----------------------------------------
if __name__ == "__main__":
    key = jax.random.PRNGKey(0)
    ks = jax.random.split(key, 9)

    def init(k, shape, std=0.02):
        return jax.random.normal(k, shape, jnp.float32) * std

    params = {
        # qkv linears stored as (in, out) so the kernel computes x @ W + b
        "wqkv1": init(ks[0], (C, 3 * C)), "bqkv1": init(ks[1], (1, 3 * C)),
        "wqkv2": init(ks[2], (C, 3 * C)), "bqkv2": init(ks[3], (1, 3 * C)),
        # output projection
        "wp": init(ks[4], (C, C)), "bp": init(ks[5], (1, C)),
        # rpe bias table (rpe_mode='bias')
        "rpe_table": init(ks[6], (NH, (2 * WS - 1) * (2 * WS - 1))),
    }

    rpi = relative_position_index(WS)                                # (N, N) int32

    rescaled = jax.random.normal(ks[7], (B_, N, C), jnp.float32)
    rescaler = jax.random.normal(ks[8], (B_, N, C), jnp.float32)

    out = cross_attention_forward(rescaled, rescaler, params, rpi)
    out = jax.block_until_ready(out)

    ref = reference_forward(rescaled, rescaler, params, rpi)
    assert out.shape == (B_, N, C)
    assert jnp.allclose(out, ref, rtol=1e-3, atol=1e-3), "mismatch vs pure-JAX reference"

    print("KERNEL_OK")
</pallas_src>

<mosaic_0001>
module attributes {stable_mosaic.version = 11 : i64} {
  func.func @cross_attn_kernel(%arg0: i32, %arg1: memref<256x32xbf16, #tpu.memory_space<vmem>>, %arg2: memref<32x128xbf16, #tpu.memory_space<vmem>>, %arg3: memref<1x128xf32, #tpu.memory_space<vmem>>, %arg4: memref<4x16x16xf32, #tpu.memory_space<vmem>>, %arg5: memref<128x32xf32, #tpu.memory_space<vmem>>) attributes {dimension_semantics = [#tpu.dimension_semantics<arbitrary>], iteration_bounds = array<i64: 1>, scalar_prefetch = 0 : i64, scratch_operands = 0 : i64, tpu.core_type = #tpu.core_type<tc>, window_params = [{pipeline_mode = #tpu.pipeline_mode<synchronous>, transform_indices = @transform_0, window_bounds = array<i64: 256, 32>}, {pipeline_mode = #tpu.pipeline_mode<synchronous>, transform_indices = @transform_1, window_bounds = array<i64: 32, 128>}, {pipeline_mode = #tpu.pipeline_mode<synchronous>, transform_indices = @transform_2, window_bounds = array<i64: 1, 128>}, {pipeline_mode = #tpu.pipeline_mode<synchronous>, transform_indices = @transform_3, window_bounds = array<i64: 4, 16, 16>}, {pipeline_mode = #tpu.pipeline_mode<synchronous>, transform_indices = @transform_4, window_bounds = array<i64: 128, 32>}]} {
    %c0 = arith.constant 0 : index
    %c0_0 = arith.constant 0 : index
    %0 = vector.load %arg1[%c0, %c0_0] : memref<256x32xbf16, #tpu.memory_space<vmem>>, vector<256x32xbf16>
    %c0_1 = arith.constant 0 : index
    %c0_2 = arith.constant 0 : index
    %1 = vector.load %arg2[%c0_1, %c0_2] : memref<32x128xbf16, #tpu.memory_space<vmem>>, vector<32x128xbf16>
    %c0_3 = arith.constant 0 : index
    %c0_4 = arith.constant 0 : index
    %2 = vector.load %arg3[%c0_3, %c0_4] : memref<1x128xf32, #tpu.memory_space<vmem>>, vector<1x128xf32>
    %cst = arith.constant dense<0.000000e+00> : vector<256x128xf32>
    %3 = tpu.matmul %0, %1, %cst {dimension_numbers = #tpu.dot_dimension_numbers<[1], [0], [0], [1], [0, 0, 1, 1], [], []>} : vector<256x32xbf16>, vector<32x128xbf16>, vector<256x128xf32> -> vector<256x128xf32>
    %4 = vector.broadcast %2 : vector<1x128xf32> to vector<256x128xf32>
    %5 = arith.addf %3, %4 : vector<256x128xf32>
    %6 = arith.truncf %5 : vector<256x128xf32> to vector<256x128xbf16>
    %7 = vector.extract_strided_slice %6 {offsets = [0, 0], sizes = [128, 128], strides = [1, 1]} : vector<256x128xbf16> to vector<128x128xbf16>
    %8 = vector.extract_strided_slice %6 {offsets = [128, 0], sizes = [128, 128], strides = [1, 1]} : vector<256x128xbf16> to vector<128x128xbf16>
    %9 = vector.extract_strided_slice %7 {offsets = [0, 0], sizes = [128, 8], strides = [1, 1]} : vector<128x128xbf16> to vector<128x8xbf16>
    %10 = vector.extract_strided_slice %7 {offsets = [0, 8], sizes = [128, 8], strides = [1, 1]} : vector<128x128xbf16> to vector<128x8xbf16>
    %11 = vector.extract_strided_slice %7 {offsets = [0, 16], sizes = [128, 8], strides = [1, 1]} : vector<128x128xbf16> to vector<128x8xbf16>
    %12 = vector.extract_strided_slice %7 {offsets = [0, 24], sizes = [128, 8], strides = [1, 1]} : vector<128x128xbf16> to vector<128x8xbf16>
    %13 = vector.shape_cast %9 : vector<128x8xbf16> to vector<1x128x8xbf16>
    %14 = vector.shape_cast %10 : vector<128x8xbf16> to vector<1x128x8xbf16>
    %15 = vector.shape_cast %11 : vector<128x8xbf16> to vector<1x128x8xbf16>
    %16 = vector.shape_cast %12 : vector<128x8xbf16> to vector<1x128x8xbf16>
    %17 = tpu.concatenate %13, %14, %15, %16 in 0 : vector<1x128x8xbf16>, vector<1x128x8xbf16>, vector<1x128x8xbf16>, vector<1x128x8xbf16> -> vector<4x128x8xbf16>
    %18 = vector.shape_cast %17 : vector<4x128x8xbf16> to vector<32x16x8xbf16>
    %19 = vector.extract_strided_slice %7 {offsets = [0, 32], sizes = [128, 8], strides = [1, 1]} : vector<128x128xbf16> to vector<128x8xbf16>
    %20 = vector.extract_strided_slice %7 {offsets = [0, 40], sizes = [128, 8], strides = [1, 1]} : vector<128x128xbf16> to vector<128x8xbf16>
    %21 = vector.extract_strided_slice %7 {offsets = [0, 48], sizes = [128, 8], strides = [1, 1]} : vector<128x128xbf16> to vector<128x8xbf16>
    %22 = vector.extract_strided_slice %7 {offsets = [0, 56], sizes = [128, 8], strides = [1, 1]} : vector<128x128xbf16> to vector<128x8xbf16>
    %23 = vector.shape_cast %19 : vector<128x8xbf16> to vector<1x128x8xbf16>
    %24 = vector.shape_cast %20 : vector<128x8xbf16> to vector<1x128x8xbf16>
    %25 = vector.shape_cast %21 : vector<128x8xbf16> to vector<1x128x8xbf16>
    %26 = vector.shape_cast %22 : vector<128x8xbf16> to vector<1x128x8xbf16>
    %27 = tpu.concatenate %23, %24, %25, %26 in 0 : vector<1x128x8xbf16>, vector<1x128x8xbf16>, vector<1x128x8xbf16>, vector<1x128x8xbf16> -> vector<4x128x8xbf16>
    %28 = vector.shape_cast %27 : vector<4x128x8xbf16> to vector<32x16x8xbf16>
    %29 = vector.extract_strided_slice %8 {offsets = [0, 64], sizes = [128, 8], strides = [1, 1]} : vector<128x128xbf16> to vector<128x8xbf16>
    %30 = vector.extract_strided_slice %8 {offsets = [0, 72], sizes = [128, 8], strides = [1, 1]} : vector<128x128xbf16> to vector<128x8xbf16>
    %31 = vector.extract_strided_slice %8 {offsets = [0, 80], sizes = [128, 8], strides = [1, 1]} : vector<128x128xbf16> to vector<128x8xbf16>
    %32 = vector.extract_strided_slice %8 {offsets = [0, 88], sizes = [128, 8], strides = [1, 1]} : vector<128x128xbf16> to vector<128x8xbf16>
    %33 = vector.shape_cast %29 : vector<128x8xbf16> to vector<1x128x8xbf16>
    %34 = vector.shape_cast %30 : vector<128x8xbf16> to vector<1x128x8xbf16>
    %35 = vector.shape_cast %31 : vector<128x8xbf16> to vector<1x128x8xbf16>
    %36 = vector.shape_cast %32 : vector<128x8xbf16> to vector<1x128x8xbf16>
    %37 = tpu.concatenate %33, %34, %35, %36 in 0 : vector<1x128x8xbf16>, vector<1x128x8xbf16>, vector<1x128x8xbf16>, vector<1x128x8xbf16> -> vector<4x128x8xbf16>
    %38 = vector.shape_cast %37 : vector<4x128x8xbf16> to vector<32x16x8xbf16>
    "tpu.trace_start"() <{level = 10 : i32, message = "bqd,bkd->bqk"}> : () -> ()
    %cst_5 = arith.constant dense<0.000000e+00> : vector<32x16x16xf32>
    %39 = tpu.matmul %38, %18, %cst_5 {dimension_numbers = #tpu.dot_dimension_numbers<[2], [2], [1], [1], [0, 0, 0, 1, 1, 1], [0], [0]>} : vector<32x16x8xbf16>, vector<32x16x8xbf16>, vector<32x16x16xf32> -> vector<32x16x16xf32>
    "tpu.trace_stop"() : () -> ()
    %40 = vector.shape_cast %39 : vector<32x16x16xf32> to vector<4x8x16x16xf32>
    %c0_6 = arith.constant 0 : index
    %c0_7 = arith.constant 0 : index
    %c0_8 = arith.constant 0 : index
    %41 = vector.load %arg4[%c0_6, %c0_7, %c0_8] : memref<4x16x16xf32, #tpu.memory_space<vmem>>, vector<4x16x16xf32>
    %42 = vector.shape_cast %41 : vector<4x16x16xf32> to vector<4x1x16x16xf32>
    %43 = vector.broadcast %42 : vector<4x1x16x16xf32> to vector<4x8x16x16xf32>
    %44 = arith.addf %40, %43 : vector<4x8x16x16xf32>
    %cst_9 = arith.constant dense<0xFF800000> : vector<4x8x16xf32>
    %45 = vector.multi_reduction <maximumf>, %44, %cst_9 [3] : vector<4x8x16x16xf32> to vector<4x8x16xf32>
    %46 = vector.shape_cast %45 : vector<4x8x16xf32> to vector<4x8x16x1xf32>
    %47 = vector.broadcast %46 : vector<4x8x16x1xf32> to vector<4x8x16x16xf32>
    %48 = arith.subf %44, %47 : vector<4x8x16x16xf32>
    %49 = math.exp %48 : vector<4x8x16x16xf32>
    %cst_10 = arith.constant dense<0.000000e+00> : vector<4x8x16xf32>
    %50 = vector.multi_reduction <add>, %49, %cst_10 [3] : vector<4x8x16x16xf32> to vector<4x8x16xf32>
    %51 = vector.shape_cast %50 : vector<4x8x16xf32> to vector<4x8x16x1xf32>
    %52 = vector.broadcast %51 : vector<4x8x16x1xf32> to vector<4x8x16x16xf32>
    %53 = arith.divf %49, %52 : vector<4x8x16x16xf32>
    %54 = vector.shape_cast %53 : vector<4x8x16x16xf32> to vector<32x16x16xf32>
    %55 = arith.truncf %54 : vector<32x16x16xf32> to vector<32x16x16xbf16>
    "tpu.trace_start"() <{level = 10 : i32, message = "bqk,bkd->bqd"}> : () -> ()
    %cst_11 = arith.constant dense<0.000000e+00> : vector<32x16x8xf32>
    %56 = tpu.matmul %55, %28, %cst_11 {dimension_numbers = #tpu.dot_dimension_numbers<[2], [1], [1], [2], [0, 0, 0, 1, 1, 2], [0], [0]>} : vector<32x16x16xbf16>, vector<32x16x8xbf16>, vector<32x16x8xf32> -> vector<32x16x8xf32>
    "tpu.trace_stop"() : () -> ()
    %57 = arith.truncf %56 : vector<32x16x8xf32> to vector<32x16x8xbf16>
    %58 = vector.shape_cast %57 : vector<32x16x8xbf16> to vector<4x128x8xbf16>
    %59 = vector.extract_strided_slice %58 {offsets = [0, 0, 0], sizes = [1, 128, 8], strides = [1, 1, 1]} : vector<4x128x8xbf16> to vector<1x128x8xbf16>
    %60 = vector.shape_cast %59 : vector<1x128x8xbf16> to vector<128x8xbf16>
    %61 = vector.extract_strided_slice %58 {offsets = [1, 0, 0], sizes = [1, 128, 8], strides = [1, 1, 1]} : vector<4x128x8xbf16> to vector<1x128x8xbf16>
    %62 = vector.shape_cast %61 : vector<1x128x8xbf16> to vector<128x8xbf16>
    %63 = vector.extract_strided_slice %58 {offsets = [2, 0, 0], sizes = [1, 128, 8], strides = [1, 1, 1]} : vector<4x128x8xbf16> to vector<1x128x8xbf16>
    %64 = vector.shape_cast %63 : vector<1x128x8xbf16> to vector<128x8xbf16>
    %65 = vector.extract_strided_slice %58 {offsets = [3, 0, 0], sizes = [1, 128, 8], strides = [1, 1, 1]} : vector<4x128x8xbf16> to vector<1x128x8xbf16>
    %66 = vector.shape_cast %65 : vector<1x128x8xbf16> to vector<128x8xbf16>
    %67 = tpu.concatenate %60, %62, %64, %66 in 1 : vector<128x8xbf16>, vector<128x8xbf16>, vector<128x8xbf16>, vector<128x8xbf16> -> vector<128x32xbf16>
    %68 = vector.extract_strided_slice %1 {offsets = [0, 96], sizes = [32, 32], strides = [1, 1]} : vector<32x128xbf16> to vector<32x32xbf16>
    %cst_12 = arith.constant dense<0.000000e+00> : vector<128x32xf32>
    %69 = tpu.matmul %67, %68, %cst_12 {dimension_numbers = #tpu.dot_dimension_numbers<[1], [0], [0], [1], [0, 0, 1, 1], [], []>} : vector<128x32xbf16>, vector<32x32xbf16>, vector<128x32xf32> -> vector<128x32xf32>
    %70 = vector.extract_strided_slice %2 {offsets = [0, 96], sizes = [1, 32], strides = [1, 1]} : vector<1x128xf32> to vector<1x32xf32>
    %71 = vector.broadcast %70 : vector<1x32xf32> to vector<128x32xf32>
    %72 = arith.addf %69, %71 : vector<128x32xf32>
    %c0_13 = arith.constant 0 : index
    %c0_14 = arith.constant 0 : index
    %73 = vector.load %arg5[%c0_13, %c0_14] : memref<128x32xf32, #tpu.memory_space<vmem>>, vector<128x32xf32>
    tpu.vector_store %arg5[%c0_13, %c0_14], %72 {strides = array<i32>} : memref<128x32xf32, #tpu.memory_space<vmem>>, vector<128x32xf32>,
    return
  }
  func.func @transform_0(%arg0: i32) -> (i32, i32) {
    %c0_i32 = arith.constant 0 : i32
    %c0_i32_0 = arith.constant 0 : i32
    %c0_i32_1 = arith.constant 0 : i32
    return %c0_i32, %c0_i32_0 : i32, i32
  }
  func.func @transform_1(%arg0: i32) -> (i32, i32) {
    %c0_i32 = arith.constant 0 : i32
    %c0_i32_0 = arith.constant 0 : i32
    %c0_i32_1 = arith.constant 0 : i32
    return %c0_i32, %c0_i32_0 : i32, i32
  }
  func.func @transform_2(%arg0: i32) -> (i32, i32) {
    %c0_i32 = arith.constant 0 : i32
    %c0_i32_0 = arith.constant 0 : i32
    %c0_i32_1 = arith.constant 0 : i32
    return %c0_i32, %c0_i32_0 : i32, i32
  }
  func.func @transform_3(%arg0: i32) -> (i32, i32, i32) {
    %c0_i32 = arith.constant 0 : i32
    %c0_i32_0 = arith.constant 0 : i32
    %c0_i32_1 = arith.constant 0 : i32
    %c0_i32_2 = arith.constant 0 : i32
    return %c0_i32, %c0_i32_0, %c0_i32_1 : i32, i32, i32
  }
  func.func @transform_4(%arg0: i32) -> (i32, i32) {
    %c0_i32 = arith.constant 0 : i32
    %c0_i32_0 = arith.constant 0 : i32
    %c0_i32_1 = arith.constant 0 : i32
    return %c0_i32, %c0_i32_0 : i32, i32
  }
}

</mosaic_0001>

<llo_original>
// kernel: cross_attention_forward.1
$region0: #{cross_attention_forward.1}
  #allocation0 [shape = 'u32[]', space=smem, size = 0x4, offset = 0x4, fixed_abs, tag = 'smem constant byte address 0x4 - core index']
  #allocation1 [shape = 'u32[144,128]{1,0:T(1,128)}', space=vmem, size = 0x12000, scoped, tag = 'internal scratch']
  %s0 = inlined_call_operand.vmem [shape: bf16[256,32], index: 0, kind: input, shape index: {}]
  %s1 = inlined_call_operand.vmem [shape: bf16[32,128], index: 1, kind: input, shape index: {}]
  %s2 = inlined_call_operand.vmem [shape: f32[1,128], index: 2, kind: input, shape index: {}]
  %s3 = inlined_call_operand.vmem [shape: f32[4,16,16], index: 3, kind: input, shape index: {}]
  %s4 = inlined_call_operand.hbm [shape: f32[128,32], index: 4, kind: output, shape index: {}]
  %s5 = sld [smem:[#allocation0]]
  $region26: #{cross_attention_forward.1} parent=0
    _
  %s7 = ssub.s32 1, %s5
  %s8 = scalar_select 0, %s7, %s5
  $region1: #{cross_attention_forward.1} parent=0
    #allocation2 [shape = 'u8[65536]{0}', space=vmem, size = 0x10000, scoped, tag = 'output window, operand 0, single buffered']
    #allocation3 [shape = 's32[1]{0}', space=sflag, size = 0x4, scoped, tag = 'scoped memory for cross_attention_forward.1']
    %9 = vsyncpa [#allocation3], 0
    // Predicated region
    $region2: #{cross_attention_forward.1} parent=1 // pred_check
      _
    $region3: #{cross_attention_forward.1} parent=1 // pred_check_branch
      %11 = sbr.rel (0) target = $region5
    $region4: #{cross_attention_forward.1} parent=1 // pred_region
      _
    $region5: #{cross_attention_forward.1} parent=1 // pred_fallthru
      _
    // Predicated region
    $region6: #{cross_attention_forward.1} parent=1 // pred_check
      _
    $region7: #{cross_attention_forward.1} parent=1 // pred_check_branch
      %13 = sbr.rel (0) target = $region9
    $region8: #{cross_attention_forward.1} parent=1 // pred_region
      _
    $region9: #{cross_attention_forward.1} parent=1 // pred_fallthru
      _
    // Predicated region
    $region10: #{cross_attention_forward.1} parent=1 // pred_check
      _
    $region11: #{cross_attention_forward.1} parent=1 // pred_check_branch
      %15 = sbr.rel (0) target = $region13
    $region12: #{cross_attention_forward.1} parent=1 // pred_region
      _
    $region13: #{cross_attention_forward.1} parent=1 // pred_fallthru
      _
    // Predicated region
    $region14: #{cross_attention_forward.1} parent=1 // pred_check
      _
    $region15: #{cross_attention_forward.1} parent=1 // pred_check_branch
      %17 = sbr.rel (0) target = $region17
    $region16: #{cross_attention_forward.1} parent=1 // pred_region
      _
    $region17: #{cross_attention_forward.1} parent=1 // pred_fallthru
      _
    %v19 = vld [vmem:[%s0] sm:$0xf]
    %v20 = vld [vmem:[%s0 + $0x4] sm:$0xf]
    %v21 = vld [vmem:[%s0 + $0x8] sm:$0xf]
    %v22 = vld [vmem:[%s0 + $0xc] sm:$0xf]
    %v23 = vld [vmem:[%s0 + $0x10] sm:$0xf]
    %v24 = vld [vmem:[%s0 + $0x14] sm:$0xf]
    %v25 = vld [vmem:[%s0 + $0x18] sm:$0xf]
    %v26 = vld [vmem:[%s0 + $0x1c] sm:$0xf]
    %v27 = vld [vmem:[%s0 + $0x20] sm:$0xf]
    %v28 = vld [vmem:[%s0 + $0x24] sm:$0xf]
    %v29 = vld [vmem:[%s0 + $0x28] sm:$0xf]
    %v30 = vld [vmem:[%s0 + $0x2c] sm:$0xf]
    %v31 = vld [vmem:[%s0 + $0x30] sm:$0xf]
    %v32 = vld [vmem:[%s0 + $0x34] sm:$0xf]
    %v33 = vld [vmem:[%s0 + $0x38] sm:$0xf]
    %v34 = vld [vmem:[%s0 + $0x3c] sm:$0xf]
    %v35 = vld [vmem:[%s0 + $0x40] sm:$0xf]
    %v36 = vld [vmem:[%s0 + $0x44] sm:$0xf]
    %v37 = vld [vmem:[%s0 + $0x48] sm:$0xf]
    %v38 = vld [vmem:[%s0 + $0x4c] sm:$0xf]
    %v39 = vld [vmem:[%s0 + $0x50] sm:$0xf]
    %v40 = vld [vmem:[%s0 + $0x54] sm:$0xf]
    %v41 = vld [vmem:[%s0 + $0x58] sm:$0xf]
    %v42 = vld [vmem:[%s0 + $0x5c] sm:$0xf]
    %v43 = vld [vmem:[%s0 + $0x60] sm:$0xf]
    %v44 = vld [vmem:[%s0 + $0x64] sm:$0xf]
    %v45 = vld [vmem:[%s0 + $0x68] sm:$0xf]
    %v46 = vld [vmem:[%s0 + $0x6c] sm:$0xf]
    %v47 = vld [vmem:[%s0 + $0x70] sm:$0xf]
    %v48 = vld [vmem:[%s0 + $0x74] sm:$0xf]
    %v49 = vld [vmem:[%s0 + $0x78] sm:$0xf]
    %v50 = vld [vmem:[%s0 + $0x7c] sm:$0xf]
    %v51 = vld [vmem:[%s1] sm:$0xf]
    %v52 = vld [vmem:[%s1 + $0x4] sm:$0xf]
    %v53 = vld [vmem:[%s1 + $0x8] sm:$0xf]
    %v54 = vld [vmem:[%s1 + $0xc] sm:$0xf]
    %v55 = vld [vmem:[%s2] sm:$0x1]
    %v57 = vlaneseq
    %v58 = vshrl.u32 %v57, 7
    %v59 = vsub.s32 0, %v58
    %v60 = vrot.slane %v55, %v59
    %v94 = vunpack.c.l.b16 %v19
    %v95 = vunpack.c.l.b16 %v20
    %v96 = vunpack.c.l.b16 %v21
    %v97 = vunpack.c.l.b16 %v22
    %v98 = vunpack.c.l.b16 %v23
    %v99 = vunpack.c.l.b16 %v24
    %v100 = vunpack.c.l.b16 %v25
    %v101 = vunpack.c.l.b16 %v26
    %v102 = vunpack.c.l.b16 %v27
    %v103 = vunpack.c.l.b16 %v28
    %v104 = vunpack.c.l.b16 %v29
    %v105 = vunpack.c.l.b16 %v30
    %v106 = vunpack.c.l.b16 %v31
    %v107 = vunpack.c.l.b16 %v32
    %v108 = vunpack.c.l.b16 %v33
    %v109 = vunpack.c.l.b16 %v34
    %v110 = vunpack.c.l.b16 %v35
    %v111 = vunpack.c.l.b16 %v36
    %v112 = vunpack.c.l.b16 %v37
    %v113 = vunpack.c.l.b16 %v38
    %v114 = vunpack.c.l.b16 %v39
    %v115 = vunpack.c.l.b16 %v40
    %v116 = vunpack.c.l.b16 %v41
    %v117 = vunpack.c.l.b16 %v42
    %v118 = vunpack.c.l.b16 %v43
    %v119 = vunpack.c.l.b16 %v44
    %v120 = vunpack.c.l.b16 %v45
    %v121 = vunpack.c.l.b16 %v46
    %v122 = vunpack.c.l.b16 %v47
    %v123 = vunpack.c.l.b16 %v48
    %v124 = vunpack.c.l.b16 %v49
    %v125 = vunpack.c.l.b16 %v50
    %v126 = vpack.c.b16 %v95, %v94
    %v127 = vpack.c.b16 %v97, %v96
    %v128 = vpack.c.b16 %v99, %v98
    %v129 = vpack.c.b16 %v101, %v100
    %v130 = vpack.c.b16 %v103, %v102
    %v131 = vpack.c.b16 %v105, %v104
    %v132 = vpack.c.b16 %v107, %v106
    %v133 = vpack.c.b16 %v109, %v108
    %v134 = vpack.c.b16 %v111, %v110
    %v135 = vpack.c.b16 %v113, %v112
    %v136 = vpack.c.b16 %v115, %v114
    %v137 = vpack.c.b16 %v117, %v116
    %v138 = vpack.c.b16 %v119, %v118
    %v139 = vpack.c.b16 %v121, %v120
    %v140 = vpack.c.b16 %v123, %v122
    %v141 = vpack.c.b16 %v125, %v124
    %v146 = vunpack.c.l.b16 %v51
    %v147 = vunpack.c.l.b16 %v52
    %v148 = vunpack.c.l.b16 %v53
    %v149 = vunpack.c.l.b16 %v54
    %v150 = vpack.c.b16 %v147, %v146
    %v151 = vpack.c.b16 %v149, %v148
    %vm154 = vcmask 261120
    %v156 = vsel %vm154, %v126, 0
    %v159 = vsel %vm154, %v127, 0
    %v162 = vsel %vm154, %v128, 0
    %v165 = vsel %vm154, %v129, 0
    %v168 = vsel %vm154, %v130, 0
    %v171 = vsel %vm154, %v131, 0
    %v174 = vsel %vm154, %v132, 0
    %v177 = vsel %vm154, %v133, 0
    %v180 = vsel %vm154, %v134, 0
    %v183 = vsel %vm154, %v135, 0
    %v186 = vsel %vm154, %v136, 0
    %v189 = vsel %vm154, %v137, 0
    %v192 = vsel %vm154, %v138, 0
    %v195 = vsel %vm154, %v139, 0
    %v198 = vsel %vm154, %v140, 0
    %v201 = vsel %vm154, %v141, 0
    %203 = vmatprep.subr.bf16.mxu0 0
    %204 = vmatpush1.bf16.msra.mxu0 0
    %205 = vmatprep.subr.bf16.mxu0 0
    %206 = vmatpush1.bf16.msra.mxu0 0
    %207 = vmatprep.subr.bf16.mxu0 0
    %208 = vmatpush1.bf16.msra.mxu0 0
    %209 = vmatprep.subr.bf16.mxu0 0
    %210 = vmatpush1.bf16.msra.mxu0 0
    %211 = vmatprep.subr.bf16.mxu0 0
    %212 = vmatpush1.bf16.msra.mxu0 0
    %213 = vmatprep.subr.bf16.mxu0 0
    %214 = vmatpush1.bf16.msra.mxu0 0
    %215 = vmatprep.subr.bf16.mxu0 0
    %216 = vmatpush1.bf16.msra.mxu0 %v151
    %217 = vmatprep.subr.bf16.mxu0 0
    %218 = vmatpush1.bf16.msra.mxu0 %v150
    %219 = vmatprep.subr.bf16.mxu0 0
    %220 = vmatpush2.bf16.msra.mxu0 0
    %221 = vmatprep.subr.bf16.mxu0 0
    %222 = vmatpush2.bf16.msra.mxu0 0
    %223 = vmatprep.subr.bf16.mxu0 0
    %224 = vmatpush2.bf16.msra.mxu0 0
    %225 = vmatprep.subr.bf16.mxu0 0
    %226 = vmatpush2.bf16.msra.mxu0 0
    %227 = vmatprep.subr.bf16.mxu0 0
    %228 = vmatpush2.bf16.msra.mxu0 0
    %229 = vmatprep.subr.bf16.mxu0 0
    %230 = vmatpush2.bf16.msra.mxu0 0
    %231 = vmatprep.subr.bf16.mxu0 0
    %232 = vmatpush2.bf16.msra.mxu0 0
    %233 = vmatprep.subr.bf16.mxu0 0
    %234 = vmatpush2.bf16.msra.mxu0 0
    %235 = vmatprep.mubr.bf16.mxu0 0
    %236 = vmatmul.mubr.bf16.gmra.mxu0 %v156
    %v237 = vpop.f32.mrf.mxu0
    %v238 = vadd.f32 %v60, %v237
    %v239 = vpop.f32.mrf.mxu0
    %v240 = vpop.f32.mrf.mxu0
    %v241 = vadd.f32 %v60, %v240
    %v242 = vpop.f32.mrf.mxu0
    %243 = vmatprep.mubr.bf16.mxu0 0
    %244 = vmatmul.mubr.bf16.gmra.mxu0 %v159
    %v245 = vpop.f32.mrf.mxu0
    %v246 = vadd.f32 %v60, %v245
    %v247 = vpop.f32.mrf.mxu0
    %v248 = vpop.f32.mrf.mxu0
    %v249 = vadd.f32 %v60, %v248
    %v250 = vpop.f32.mrf.mxu0
    %251 = vmatprep.mubr.bf16.mxu0 0
    %252 = vmatmul.mubr.bf16.gmra.mxu0 %v162
    %v253 = vpop.f32.mrf.mxu0
    %v254 = vadd.f32 %v60, %v253
    %v255 = vpop.f32.mrf.mxu0
    %v256 = vpop.f32.mrf.mxu0
    %v257 = vadd.f32 %v60, %v256
    %v258 = vpop.f32.mrf.mxu0
    %259 = vmatprep.mubr.bf16.mxu0 0
    %260 = vmatmul.mubr.bf16.gmra.mxu0 %v165
    %v261 = vpop.f32.mrf.mxu0
    %v262 = vadd.f32 %v60, %v261
    %v263 = vpop.f32.mrf.mxu0
    %v264 = vpop.f32.mrf.mxu0
    %v265 = vadd.f32 %v60, %v264
    %v266 = vpop.f32.mrf.mxu0
    %267 = vmatprep.mubr.bf16.mxu0 0
    %268 = vmatmul.mubr.bf16.gmra.mxu0 %v168
    %v269 = vpop.f32.mrf.mxu0
    %v270 = vadd.f32 %v60, %v269
    %v271 = vpop.f32.mrf.mxu0
    %v272 = vpop.f32.mrf.mxu0
    %v273 = vadd.f32 %v60, %v272
    %v274 = vpop.f32.mrf.mxu0
    %275 = vmatprep.mubr.bf16.mxu0 0
    %276 = vmatmul.mubr.bf16.gmra.mxu0 %v171
    %v277 = vpop.f32.mrf.mxu0
    %v278 = vadd.f32 %v60, %v277
    %v279 = vpop.f32.mrf.mxu0
    %v280 = vpop.f32.mrf.mxu0
    %v281 = vadd.f32 %v60, %v280
    %v282 = vpop.f32.mrf.mxu0
    %283 = vmatprep.mubr.bf16.mxu0 0
    %284 = vmatmul.mubr.bf16.gmra.mxu0 %v174
    %v285 = vpop.f32.mrf.mxu0
    %v286 = vadd.f32 %v60, %v285
    %v287 = vpop.f32.mrf.mxu0
    %v288 = vpop.f32.mrf.mxu0
    %v289 = vadd.f32 %v60, %v288
    %v290 = vpop.f32.mrf.mxu0
    %291 = vmatprep.mubr.bf16.mxu0 0
    %292 = vmatmul.mubr.bf16.gmra.mxu0 %v177
    %v293 = vpop.f32.mrf.mxu0
    %v294 = vadd.f32 %v60, %v293
    %v295 = vpop.f32.mrf.mxu0
    %v296 = vpop.f32.mrf.mxu0
    %v297 = vadd.f32 %v60, %v296
    %v298 = vpop.f32.mrf.mxu0
    %299 = vmatprep.mubr.bf16.mxu0 0
    %300 = vmatmul.mubr.bf16.gmra.mxu0 %v180
    %v301 = vpop.f32.mrf.mxu0
    %v302 = vadd.f32 %v60, %v301
    %v303 = vpop.f32.mrf.mxu0
    %v304 = vpop.f32.mrf.mxu0
    %v305 = vadd.f32 %v60, %v304
    %v306 = vpop.f32.mrf.mxu0
    %307 = vmatprep.mubr.bf16.mxu0 0
    %308 = vmatmul.mubr.bf16.gmra.mxu0 %v183
    %v309 = vpop.f32.mrf.mxu0
    %v310 = vadd.f32 %v60, %v309
    %v311 = vpop.f32.mrf.mxu0
    %v312 = vpop.f32.mrf.mxu0
    %v313 = vadd.f32 %v60, %v312
    %v314 = vpop.f32.mrf.mxu0
    %315 = vmatprep.mubr.bf16.mxu0 0
    %316 = vmatmul.mubr.bf16.gmra.mxu0 %v186
    %v317 = vpop.f32.mrf.mxu0
    %v318 = vadd.f32 %v60, %v317
    %v319 = vpop.f32.mrf.mxu0
    %v320 = vpop.f32.mrf.mxu0
    %v321 = vadd.f32 %v60, %v320
    %v322 = vpop.f32.mrf.mxu0
    %323 = vmatprep.mubr.bf16.mxu0 0
    %324 = vmatmul.mubr.bf16.gmra.mxu0 %v189
    %v325 = vpop.f32.mrf.mxu0
    %v326 = vadd.f32 %v60, %v325
    %v327 = vpop.f32.mrf.mxu0
    %v328 = vpop.f32.mrf.mxu0
    %v329 = vadd.f32 %v60, %v328
    %v330 = vpop.f32.mrf.mxu0
    %331 = vmatprep.mubr.bf16.mxu0 0
    %332 = vmatmul.mubr.bf16.gmra.mxu0 %v192
    %v333 = vpop.f32.mrf.mxu0
    %v334 = vadd.f32 %v60, %v333
    %v335 = vpop.f32.mrf.mxu0
    %v336 = vpop.f32.mrf.mxu0
    %v337 = vadd.f32 %v60, %v336
    %v338 = vpop.f32.mrf.mxu0
    %339 = vmatprep.mubr.bf16.mxu0 0
    %340 = vmatmul.mubr.bf16.gmra.mxu0 %v195
    %v341 = vpop.f32.mrf.mxu0
    %v342 = vadd.f32 %v60, %v341
    %v343 = vpop.f32.mrf.mxu0
    %v344 = vpop.f32.mrf.mxu0
    %v345 = vadd.f32 %v60, %v344
    %v346 = vpop.f32.mrf.mxu0
    %347 = vmatprep.mubr.bf16.mxu0 0
    %348 = vmatmul.mubr.bf16.gmra.mxu0 %v198
    %v349 = vpop.f32.mrf.mxu0
    %v350 = vadd.f32 %v60, %v349
    %v351 = vpop.f32.mrf.mxu0
    %v352 = vpop.f32.mrf.mxu0
    %v353 = vadd.f32 %v60, %v352
    %v354 = vpop.f32.mrf.mxu0
    %355 = vmatprep.mubr.bf16.mxu0 0
    %356 = vmatmul.mubr.bf16.gmra.mxu0 %v201
    %v357 = vpop.f32.mrf.mxu0
    %v358 = vadd.f32 %v60, %v357
    %v359 = vpop.f32.mrf.mxu0
    %v360 = vpop.f32.mrf.mxu0
    %v361 = vadd.f32 %v60, %v360
    %v362 = vpop.f32.mrf.mxu0
    %363 = vdwg.mxu0
    %v364 = vpack.c.bf16 %v241, %v238
    %v365 = vpack.c.bf16 %v249, %v246
    %v366 = vpack.c.bf16 %v257, %v254
    %v367 = vpack.c.bf16 %v265, %v262
    %v368 = vpack.c.bf16 %v273, %v270
    %v369 = vpack.c.bf16 %v281, %v278
    %v370 = vpack.c.bf16 %v289, %v286
    %v371 = vpack.c.bf16 %v297, %v294
    %v372 = vpack.c.bf16 %v305, %v302
    %v373 = vpack.c.bf16 %v313, %v310
    %v374 = vpack.c.bf16 %v321, %v318
    %v375 = vpack.c.bf16 %v329, %v326
    %v376 = vpack.c.bf16 %v337, %v334
    %v377 = vpack.c.bf16 %v345, %v342
    %v378 = vpack.c.bf16 %v353, %v350
    %v379 = vpack.c.bf16 %v361, %v358
    %388 = vrot.lane.b32.xlu0 %v364, 120
    %v389 = vpop.permute.xlu0 %388
    %390 = vrot.lane.b32.xlu0 %v365, 120
    %v391 = vpop.permute.xlu0 %390
    %392 = vrot.lane.b32.xlu0 %v366, 120
    %v393 = vpop.permute.xlu0 %392
    %394 = vrot.lane.b32.xlu0 %v367, 120
    %v395 = vpop.permute.xlu0 %394
    %396 = vrot.lane.b32.xlu0 %v368, 120
    %v397 = vpop.permute.xlu0 %396
    %398 = vrot.lane.b32.xlu0 %v369, 120
    %v399 = vpop.permute.xlu0 %398
    %400 = vrot.lane.b32.xlu0 %v370, 120
    %v401 = vpop.permute.xlu0 %400
    %402 = vrot.lane.b32.xlu0 %v371, 120
    %v403 = vpop.permute.xlu0 %402
    %404 = vrot.lane.b32.xlu0 %v364, 112
    %v405 = vpop.permute.xlu0 %404
    %406 = vrot.lane.b32.xlu0 %v365, 112
    %v407 = vpop.permute.xlu0 %406
    %408 = vrot.lane.b32.xlu0 %v366, 112
    %v409 = vpop.permute.xlu0 %408
    %410 = vrot.lane.b32.xlu0 %v367, 112
    %v411 = vpop.permute.xlu0 %410
    %412 = vrot.lane.b32.xlu0 %v368, 112
    %v413 = vpop.permute.xlu0 %412
    %414 = vrot.lane.b32.xlu0 %v369, 112
    %v415 = vpop.permute.xlu0 %414
    %416 = vrot.lane.b32.xlu0 %v370, 112
    %v417 = vpop.permute.xlu0 %416
    %418 = vrot.lane.b32.xlu0 %v371, 112
    %v419 = vpop.permute.xlu0 %418
    %420 = vrot.lane.b32.xlu0 %v364, 104
    %v421 = vpop.permute.xlu0 %420
    %422 = vrot.lane.b32.xlu0 %v365, 104
    %v423 = vpop.permute.xlu0 %422
    %424 = vrot.lane.b32.xlu0 %v366, 104
    %v425 = vpop.permute.xlu0 %424
    %426 = vrot.lane.b32.xlu0 %v367, 104
    %v427 = vpop.permute.xlu0 %426
    %428 = vrot.lane.b32.xlu0 %v368, 104
    %v429 = vpop.permute.xlu0 %428
    %430 = vrot.lane.b32.xlu0 %v369, 104
    %v431 = vpop.permute.xlu0 %430
    %432 = vrot.lane.b32.xlu0 %v370, 104
    %v433 = vpop.permute.xlu0 %432
    %434 = vrot.lane.b32.xlu0 %v371, 104
    %v435 = vpop.permute.xlu0 %434
    %444 = vrot.lane.b32.xlu0 %v372, 120
    %v445 = vpop.permute.xlu0 %444
    %446 = vrot.lane.b32.xlu0 %v373, 120
    %v447 = vpop.permute.xlu0 %446
    %448 = vrot.lane.b32.xlu0 %v374, 120
    %v449 = vpop.permute.xlu0 %448
    %450 = vrot.lane.b32.xlu0 %v375, 120
    %v451 = vpop.permute.xlu0 %450
    %452 = vrot.lane.b32.xlu0 %v376, 120
    %v453 = vpop.permute.xlu0 %452
    %454 = vrot.lane.b32.xlu0 %v377, 120
    %v455 = vpop.permute.xlu0 %454
    %456 = vrot.lane.b32.xlu0 %v378, 120
    %v457 = vpop.permute.xlu0 %456
    %458 = vrot.lane.b32.xlu0 %v379, 120
    %v459 = vpop.permute.xlu0 %458
    %460 = vrot.lane.b32.xlu0 %v372, 112
    %v461 = vpop.permute.xlu0 %460
    %462 = vrot.lane.b32.xlu0 %v373, 112
    %v463 = vpop.permute.xlu0 %462
    %464 = vrot.lane.b32.xlu0 %v374, 112
    %v465 = vpop.permute.xlu0 %464
    %466 = vrot.lane.b32.xlu0 %v375, 112
    %v467 = vpop.permute.xlu0 %466
    %468 = vrot.lane.b32.xlu0 %v376, 112
    %v469 = vpop.permute.xlu0 %468
    %470 = vrot.lane.b32.xlu0 %v377, 112
    %v471 = vpop.permute.xlu0 %470
    %472 = vrot.lane.b32.xlu0 %v378, 112
    %v473 = vpop.permute.xlu0 %472
    %474 = vrot.lane.b32.xlu0 %v379, 112
    %v475 = vpop.permute.xlu0 %474
    %476 = vrot.lane.b32.xlu0 %v372, 104
    %v477 = vpop.permute.xlu0 %476
    %478 = vrot.lane.b32.xlu0 %v373, 104
    %v479 = vpop.permute.xlu0 %478
    %480 = vrot.lane.b32.xlu0 %v374, 104
    %v481 = vpop.permute.xlu0 %480
    %482 = vrot.lane.b32.xlu0 %v375, 104
    %v483 = vpop.permute.xlu0 %482
    %484 = vrot.lane.b32.xlu0 %v376, 104
    %v485 = vpop.permute.xlu0 %484
    %486 = vrot.lane.b32.xlu0 %v377, 104
    %v487 = vpop.permute.xlu0 %486
    %488 = vrot.lane.b32.xlu0 %v378, 104
    %v489 = vpop.permute.xlu0 %488
    %490 = vrot.lane.b32.xlu0 %v379, 104
    %v491 = vpop.permute.xlu0 %490
    %492 = vrot.lane.b32.xlu0 %v372, 64
    %v493 = vpop.permute.xlu0 %492
    %vm494 = vcmask 64512
    %v496 = vsel %vm494, %v493, 0
    %v499 = vsel %vm494, %v364, 0
    %501 = vmatprep.subr.bf16.mxu0 0
    %502 = vmatpush1.bf16.xpose.msra.mxu0 0
    %503 = vmatprep.subr.bf16.mxu0 0
    %504 = vmatpush1.bf16.xpose.msra.mxu0 0
    %505 = vmatprep.subr.bf16.mxu0 0
    %506 = vmatpush1.bf16.xpose.msra.mxu0 0
    %507 = vmatprep.subr.bf16.mxu0 0
    %508 = vmatpush1.bf16.xpose.msra.mxu0 0
    %509 = vmatprep.subr.bf16.mxu0 0
    %510 = vmatpush1.bf16.xpose.msra.mxu0 0
    %511 = vmatprep.subr.bf16.mxu0 0
    %512 = vmatpush1.bf16.xpose.msra.mxu0 0
    %513 = vmatprep.subr.bf16.mxu0 0
    %514 = vmatpush1.bf16.xpose.msra.mxu0 0
    %515 = vmatprep.subr.bf16.mxu0 0
    %516 = vmatpush1.bf16.xpose.msra.mxu0 %v499
    %517 = vmatprep.subr.bf16.mxu0 0
    %518 = vmatpush2.bf16.xpose.msra.mxu0 0
    %519 = vmatprep.subr.bf16.mxu0 0
    %520 = vmatpush2.bf16.xpose.msra.mxu0 0
    %521 = vmatprep.subr.bf16.mxu0 0
    %522 = vmatpush2.bf16.xpose.msra.mxu0 0
    %523 = vmatprep.subr.bf16.mxu0 0
    %524 = vmatpush2.bf16.xpose.msra.mxu0 0
    %525 = vmatprep.subr.bf16.mxu0 0
    %526 = vmatpush2.bf16.xpose.msra.mxu0 0
    %527 = vmatprep.subr.bf16.mxu0 0
    %528 = vmatpush2.bf16.xpose.msra.mxu0 0
    %529 = vmatprep.subr.bf16.mxu0 0
    %530 = vmatpush2.bf16.xpose.msra.mxu0 0
    %531 = vmatprep.subr.bf16.mxu0 0
    %532 = vmatpush2.bf16.xpose.msra.mxu0 0
    %533 = vmatprep.mubr.bf16.mxu0 0
    %534 = vmatmul.mubr.bf16.gmra.mxu0 %v496
    %v535 = vpop.f32.mrf.mxu0
    %v536 = vadd.f32 0.0, %v535
    %v537 = vpop.f32.mrf.mxu0
    %v538 = vpop.f32.mrf.mxu0
    %v539 = vadd.f32 0.0, %v538
    %v540 = vpop.f32.mrf.mxu0
    %541 = vdwg.mxu0
    %542 = vrot.lane.b32.xlu0 %v373, 64
    %v543 = vpop.permute.xlu0 %542
    %v545 = vsel %vm494, %v543, 0
    %v548 = vsel %vm494, %v365, 0
    %550 = vmatprep.subr.bf16.mxu0 0
    %551 = vmatpush1.bf16.xpose.msra.mxu0 0
    %552 = vmatprep.subr.bf16.mxu0 0
    %553 = vmatpush1.bf16.xpose.msra.mxu0 0
    %554 = vmatprep.subr.bf16.mxu0 0
    %555 = vmatpush1.bf16.xpose.msra.mxu0 0
    %556 = vmatprep.subr.bf16.mxu0 0
    %557 = vmatpush1.bf16.xpose.msra.mxu0 0
    %558 = vmatprep.subr.bf16.mxu0 0
    %559 = vmatpush1.bf16.xpose.msra.mxu0 0
    %560 = vmatprep.subr.bf16.mxu0 0
    %561 = vmatpush1.bf16.xpose.msra.mxu0 0
    %562 = vmatprep.subr.bf16.mxu0 0
    %563 = vmatpush1.bf16.xpose.msra.mxu0 0
    %564 = vmatprep.subr.bf16.mxu0 0
    %565 = vmatpush1.bf16.xpose.msra.mxu0 %v548
    %566 = vmatprep.subr.bf16.mxu0 0
    %567 = vmatpush2.bf16.xpose.msra.mxu0 0
    %568 = vmatprep.subr.bf16.mxu0 0
    %569 = vmatpush2.bf16.xpose.msra.mxu0 0
    %570 = vmatprep.subr.bf16.mxu0 0
    %571 = vmatpush2.bf16.xpose.msra.mxu0 0
    %572 = vmatprep.subr.bf16.mxu0 0
    %573 = vmatpush2.bf16.xpose.msra.mxu0 0
    %574 = vmatprep.subr.bf16.mxu0 0
    %575 = vmatpush2.bf16.xpose.msra.mxu0 0
    %576 = vmatprep.subr.bf16.mxu0 0
    %577 = vmatpush2.bf16.xpose.msra.mxu0 0
    %578 = vmatprep.subr.bf16.mxu0 0
    %579 = vmatpush2.bf16.xpose.msra.mxu0 0
    %580 = vmatprep.subr.bf16.mxu0 0
    %581 = vmatpush2.bf16.xpose.msra.mxu0 0
    %582 = vmatprep.mubr.bf16.mxu0 0
    %583 = vmatmul.mubr.bf16.gmra.mxu0 %v545
    %v584 = vpop.f32.mrf.mxu0
    %v585 = vadd.f32 0.0, %v584
    %v586 = vpop.f32.mrf.mxu0
    %v587 = vpop.f32.mrf.mxu0
    %v588 = vadd.f32 0.0, %v587
    %v589 = vpop.f32.mrf.mxu0
    %590 = vdwg.mxu0
    %591 = vrot.lane.b32.xlu0 %v374, 64
    %v592 = vpop.permute.xlu0 %591
    %v594 = vsel %vm494, %v592, 0
    %v597 = vsel %vm494, %v366, 0
    %599 = vmatprep.subr.bf16.mxu0 0
    %600 = vmatpush1.bf16.xpose.msra.mxu0 0
    %601 = vmatprep.subr.bf16.mxu0 0
    %602 = vmatpush1.bf16.xpose.msra.mxu0 0
    %603 = vmatprep.subr.bf16.mxu0 0
    %604 = vmatpush1.bf16.xpose.msra.mxu0 0
    %605 = vmatprep.subr.bf16.mxu0 0
    %606 = vmatpush1.bf16.xpose.msra.mxu0 0
    %607 = vmatprep.subr.bf16.mxu0 0
    %608 = vmatpush1.bf16.xpose.msra.mxu0 0
    %609 = vmatprep.subr.bf16.mxu0 0
    %610 = vmatpush1.bf16.xpose.msra.mxu0 0
    %611 = vmatprep.subr.bf16.mxu0 0
    %612 = vmatpush1.bf16.xpose.msra.mxu0 0
    %613 = vmatprep.subr.bf16.mxu0 0
    %614 = vmatpush1.bf16.xpose.msra.mxu0 %v597
    %615 = vmatprep.subr.bf16.mxu0 0
    %616 = vmatpush2.bf16.xpose.msra.mxu0 0
    %617 = vmatprep.subr.bf16.mxu0 0
    %618 = vmatpush2.bf16.xpose.msra.mxu0 0
    %619 = vmatprep.subr.bf16.mxu0 0
    %620 = vmatpush2.bf16.xpose.msra.mxu0 0
    %621 = vmatprep.subr.bf16.mxu0 0
    %622 = vmatpush2.bf16.xpose.msra.mxu0 0
    %623 = vmatprep.subr.bf16.mxu0 0
    %624 = vmatpush2.bf16.xpose.msra.mxu0 0
    %625 = vmatprep.subr.bf16.mxu0 0
    %626 = vmatpush2.bf16.xpose.msra.mxu0 0
    %627 = vmatprep.subr.bf16.mxu0 0
    %628 = vmatpush2.bf16.xpose.msra.mxu0 0
    %629 = vmatprep.subr.bf16.mxu0 0
    %630 = vmatpush2.bf16.xpose.msra.mxu0 0
    %631 = vmatprep.mubr.bf16.mxu0 0
    %632 = vmatmul.mubr.bf16.gmra.mxu0 %v594
    %v633 = vpop.f32.mrf.mxu0
    %v634 = vadd.f32 0.0, %v633
    %v635 = vpop.f32.mrf.mxu0
    %v636 = vpop.f32.mrf.mxu0
    %v637 = vadd.f32 0.0, %v636
    %v638 = vpop.f32.mrf.mxu0
    %639 = vdwg.mxu0
    %640 = vrot.lane.b32.xlu0 %v375, 64
    %v641 = vpop.permute.xlu0 %640
    %v643 = vsel %vm494, %v641, 0
    %v646 = vsel %vm494, %v367, 0
    %648 = vmatprep.subr.bf16.mxu0 0
    %649 = vmatpush1.bf16.xpose.msra.mxu0 0
    %650 = vmatprep.subr.bf16.mxu0 0
    %651 = vmatpush1.bf16.xpose.msra.mxu0 0
    %652 = vmatprep.subr.bf16.mxu0 0
    %653 = vmatpush1.bf16.xpose.msra.mxu0 0
    %654 = vmatprep.subr.bf16.mxu0 0
    %655 = vmatpush1.bf16.xpose.msra.mxu0 0
    %656 = vmatprep.subr.bf16.mxu0 0
    %657 = vmatpush1.bf16.xpose.msra.mxu0 0
    %658 = vmatprep.subr.bf16.mxu0 0
    %659 = vmatpush1.bf16.xpose.msra.mxu0 0
    %660 = vmatprep.subr.bf16.mxu0 0
    %661 = vmatpush1.bf16.xpose.msra.mxu0 0
    %662 = vmatprep.subr.bf16.mxu0 0
    %663 = vmatpush1.bf16.xpose.msra.mxu0 %v646
    %664 = vmatprep.subr.bf16.mxu0 0
    %665 = vmatpush2.bf16.xpose.msra.mxu0 0
    %666 = vmatprep.subr.bf16.mxu0 0
    %667 = vmatpush2.bf16.xpose.msra.mxu0 0
    %668 = vmatprep.subr.bf16.mxu0 0
    %669 = vmatpush2.bf16.xpose.msra.mxu0 0
    %670 = vmatprep.subr.bf16.mxu0 0
    %671 = vmatpush2.bf16.xpose.msra.mxu0 0
    %672 = vmatprep.subr.bf16.mxu0 0
    %673 = vmatpush2.bf16.xpose.msra.mxu0 0
    %674 = vmatprep.subr.bf16.mxu0 0
    %675 = vmatpush2.bf16.xpose.msra.mxu0 0
    %676 = vmatprep.subr.bf16.mxu0 0
    %677 = vmatpush2.bf16.xpose.msra.mxu0 0
    %678 = vmatprep.subr.bf16.mxu0 0
    %679 = vmatpush2.bf16.xpose.msra.mxu0 0
    %680 = vmatprep.mubr.bf16.mxu0 0
    %681 = vmatmul.mubr.bf16.gmra.mxu0 %v643
    %v682 = vpop.f32.mrf.mxu0
    %v683 = vadd.f32 0.0, %v682
    %v684 = vpop.f32.mrf.mxu0
    %v685 = vpop.f32.mrf.mxu0
    %v686 = vadd.f32 0.0, %v685
    %v687 = vpop.f32.mrf.mxu0
    %688 = vdwg.mxu0
    %689 = vrot.lane.b32.xlu0 %v376, 64
    %v690 = vpop.permute.xlu0 %689
    %v692 = vsel %vm494, %v690, 0
    %v695 = vsel %vm494, %v368, 0
    %697 = vmatprep.subr.bf16.mxu0 0
    %698 = vmatpush1.bf16.xpose.msra.mxu0 0
    %699 = vmatprep.subr.bf16.mxu0 0
    %700 = vmatpush1.bf16.xpose.msra.mxu0 0
    %701 = vmatprep.subr.bf16.mxu0 0
    %702 = vmatpush1.bf16.xpose.msra.mxu0 0
    %703 = vmatprep.subr.bf16.mxu0 0
    %704 = vmatpush1.bf16.xpose.msra.mxu0 0
    %705 = vmatprep.subr.bf16.mxu0 0
    %706 = vmatpush1.bf16.xpose.msra.mxu0 0
    %707 = vmatprep.subr.bf16.mxu0 0
    %708 = vmatpush1.bf16.xpose.msra.mxu0 0
    %709 = vmatprep.subr.bf16.mxu0 0
    %710 = vmatpush1.bf16.xpose.msra.mxu0 0
    %711 = vmatprep.subr.bf16.mxu0 0
    %712 = vmatpush1.bf16.xpose.msra.mxu0 %v695
    %713 = vmatprep.subr.bf16.mxu0 0
    %714 = vmatpush2.bf16.xpose.msra.mxu0 0
    %715 = vmatprep.subr.bf16.mxu0 0
    %716 = vmatpush2.bf16.xpose.msra.mxu0 0
    %717 = vmatprep.subr.bf16.mxu0 0
    %718 = vmatpush2.bf16.xpose.msra.mxu0 0
    %719 = vmatprep.subr.bf16.mxu0 0
    %720 = vmatpush2.bf16.xpose.msra.mxu0 0
    %721 = vmatprep.subr.bf16.mxu0 0
    %722 = vmatpush2.bf16.xpose.msra.mxu0 0
    %723 = vmatprep.subr.bf16.mxu0 0
    %724 = vmatpush2.bf16.xpose.msra.mxu0 0
    %725 = vmatprep.subr.bf16.mxu0 0
    %726 = vmatpush2.bf16.xpose.msra.mxu0 0
    %727 = vmatprep.subr.bf16.mxu0 0
    %728 = vmatpush2.bf16.xpose.msra.mxu0 0
    %729 = vmatprep.mubr.bf16.mxu0 0
    %730 = vmatmul.mubr.bf16.gmra.mxu0 %v692
    %v731 = vpop.f32.mrf.mxu0
    %v732 = vadd.f32 0.0, %v731
    %v733 = vpop.f32.mrf.mxu0
    %v734 = vpop.f32.mrf.mxu0
    %v735 = vadd.f32 0.0, %v734
    %v736 = vpop.f32.mrf.mxu0
    %737 = vdwg.mxu0
    %738 = vrot.lane.b32.xlu0 %v377, 64
    %v739 = vpop.permute.xlu0 %738
    %v741 = vsel %vm494, %v739, 0
    %v744 = vsel %vm494, %v369, 0
    %746 = vmatprep.subr.bf16.mxu0 0
    %747 = vmatpush1.bf16.xpose.msra.mxu0 0
    %748 = vmatprep.subr.bf16.mxu0 0
    %749 = vmatpush1.bf16.xpose.msra.mxu0 0
    %750 = vmatprep.subr.bf16.mxu0 0
    %751 = vmatpush1.bf16.xpose.msra.mxu0 0
    %752 = vmatprep.subr.bf16.mxu0 0
    %753 = vmatpush1.bf16.xpose.msra.mxu0 0
    %754 = vmatprep.subr.bf16.mxu0 0
    %755 = vmatpush1.bf16.xpose.msra.mxu0 0
    %756 = vmatprep.subr.bf16.mxu0 0
    %757 = vmatpush1.bf16.xpose.msra.mxu0 0
    %758 = vmatprep.subr.bf16.mxu0 0
    %759 = vmatpush1.bf16.xpose.msra.mxu0 0
    %760 = vmatprep.subr.bf16.mxu0 0
    %761 = vmatpush1.bf16.xpose.msra.mxu0 %v744
    %762 = vmatprep.subr.bf16.mxu0 0
    %763 = vmatpush2.bf16.xpose.msra.mxu0 0
    %764 = vmatprep.subr.bf16.mxu0 0
    %765 = vmatpush2.bf16.xpose.msra.mxu0 0
    %766 = vmatprep.subr.bf16.mxu0 0
    %767 = vmatpush2.bf16.xpose.msra.mxu0 0
    %768 = vmatprep.subr.bf16.mxu0 0
    %769 = vmatpush2.bf16.xpose.msra.mxu0 0
    %770 = vmatprep.subr.bf16.mxu0 0
    %771 = vmatpush2.bf16.xpose.msra.mxu0 0
    %772 = vmatprep.subr.bf16.mxu0 0
    %773 = vmatpush2.bf16.xpose.msra.mxu0 0
    %774 = vmatprep.subr.bf16.mxu0 0
    %775 = vmatpush2.bf16.xpose.msra.mxu0 0
    %776 = vmatprep.subr.bf16.mxu0 0
    %777 = vmatpush2.bf16.xpose.msra.mxu0 0
    %778 = vmatprep.mubr.bf16.mxu0 0
    %779 = vmatmul.mubr.bf16.gmra.mxu0 %v741
    %v780 = vpop.f32.mrf.mxu0
    %v781 = vadd.f32 0.0, %v780
    %v782 = vpop.f32.mrf.mxu0
    %v783 = vpop.f32.mrf.mxu0
    %v784 = vadd.f32 0.0, %v783
    %v785 = vpop.f32.mrf.mxu0
    %786 = vdwg.mxu0
    %787 = vrot.lane.b32.xlu0 %v378, 64
    %v788 = vpop.permute.xlu0 %787
    %v790 = vsel %vm494, %v788, 0
    %v793 = vsel %vm494, %v370, 0
    %795 = vmatprep.subr.bf16.mxu0 0
    %796 = vmatpush1.bf16.xpose.msra.mxu0 0
    %797 = vmatprep.subr.bf16.mxu0 0
    %798 = vmatpush1.bf16.xpose.msra.mxu0 0
    %799 = vmatprep.subr.bf16.mxu0 0
    %800 = vmatpush1.bf16.xpose.msra.mxu0 0
    %801 = vmatprep.subr.bf16.mxu0 0
    %802 = vmatpush1.bf16.xpose.msra.mxu0 0
    %803 = vmatprep.subr.bf16.mxu0 0
    %804 = vmatpush1.bf16.xpose.msra.mxu0 0
    %805 = vmatprep.subr.bf16.mxu0 0
    %806 = vmatpush1.bf16.xpose.msra.mxu0 0
    %807 = vmatprep.subr.bf16.mxu0 0
    %808 = vmatpush1.bf16.xpose.msra.mxu0 0
    %809 = vmatprep.subr.bf16.mxu0 0
    %810 = vmatpush1.bf16.xpose.msra.mxu0 %v793
    %811 = vmatprep.subr.bf16.mxu0 0
    %812 = vmatpush2.bf16.xpose.msra.mxu0 0
    %813 = vmatprep.subr.bf16.mxu0 0
    %814 = vmatpush2.bf16.xpose.msra.mxu0 0
    %815 = vmatprep.subr.bf16.mxu0 0
    %816 = vmatpush2.bf16.xpose.msra.mxu0 0
    %817 = vmatprep.subr.bf16.mxu0 0
    %818 = vmatpush2.bf16.xpose.msra.mxu0 0
    %819 = vmatprep.subr.bf16.mxu0 0
    %820 = vmatpush2.bf16.xpose.msra.mxu0 0
    %821 = vmatprep.subr.bf16.mxu0 0
    %822 = vmatpush2.bf16.xpose.msra.mxu0 0
    %823 = vmatprep.subr.bf16.mxu0 0
    %824 = vmatpush2.bf16.xpose.msra.mxu0 0
    %825 = vmatprep.subr.bf16.mxu0 0
    %826 = vmatpush2.bf16.xpose.msra.mxu0 0
    %827 = vmatprep.mubr.bf16.mxu0 0
    %828 = vmatmul.mubr.bf16.gmra.mxu0 %v790
    %v829 = vpop.f32.mrf.mxu0
    %v830 = vadd.f32 0.0, %v829
    %v831 = vpop.f32.mrf.mxu0
    %v832 = vpop.f32.mrf.mxu0
    %v833 = vadd.f32 0.0, %v832
    %v834 = vpop.f32.mrf.mxu0
    %835 = vdwg.mxu0
    %836 = vrot.lane.b32.xlu0 %v379, 64
    %v837 = vpop.permute.xlu0 %836
    %v839 = vsel %vm494, %v837, 0
    %v842 = vsel %vm494, %v371, 0
    %844 = vmatprep.subr.bf16.mxu0 0
    %845 = vmatpush1.bf16.xpose.msra.mxu0 0
    %846 = vmatprep.subr.bf16.mxu0 0
    %847 = vmatpush1.bf16.xpose.msra.mxu0 0
    %848 = vmatprep.subr.bf16.mxu0 0
    %849 = vmatpush1.bf16.xpose.msra.mxu0 0
    %850 = vmatprep.subr.bf16.mxu0 0
    %851 = vmatpush1.bf16.xpose.msra.mxu0 0
    %852 = vmatprep.subr.bf16.mxu0 0
    %853 = vmatpush1.bf16.xpose.msra.mxu0 0
    %854 = vmatprep.subr.bf16.mxu0 0
    %855 = vmatpush1.bf16.xpose.msra.mxu0 0
    %856 = vmatprep.subr.bf16.mxu0 0
    %857 = vmatpush1.bf16.xpose.msra.mxu0 0
    %858 = vmatprep.subr.bf16.mxu0 0
    %859 = vmatpush1.bf16.xpose.msra.mxu0 %v842
    %860 = vmatprep.subr.bf16.mxu0 0
    %861 = vmatpush2.bf16.xpose.msra.mxu0 0
    %862 = vmatprep.subr.bf16.mxu0 0
    %863 = vmatpush2.bf16.xpose.msra.mxu0 0
    %864 = vmatprep.subr.bf16.mxu0 0
    %865 = vmatpush2.bf16.xpose.msra.mxu0 0
    %866 = vmatprep.subr.bf16.mxu0 0
    %867 = vmatpush2.bf16.xpose.msra.mxu0 0
    %868 = vmatprep.subr.bf16.mxu0 0
    %869 = vmatpush2.bf16.xpose.msra.mxu0 0
    %870 = vmatprep.subr.bf16.mxu0 0
    %871 = vmatpush2.bf16.xpose.msra.mxu0 0
    %872 = vmatprep.subr.bf16.mxu0 0
    %873 = vmatpush2.bf16.xpose.msra.mxu0 0
    %874 = vmatprep.subr.bf16.mxu0 0
    %875 = vmatpush2.bf16.xpose.msra.mxu0 0
    %876 = vmatprep.mubr.bf16.mxu0 0
    %877 = vmatmul.mubr.bf16.gmra.mxu0 %v839
    %v878 = vpop.f32.mrf.mxu0
    %v879 = vadd.f32 0.0, %v878
    %v880 = vpop.f32.mrf.mxu0
    %v881 = vpop.f32.mrf.mxu0
    %v882 = vadd.f32 0.0, %v881
    %v883 = vpop.f32.mrf.mxu0
    %884 = vdwg.mxu0
    %885 = vrot.lane.b32.xlu0 %v445, 64
    %v886 = vpop.permute.xlu0 %885
    %v888 = vsel %vm494, %v886, 0
    %v891 = vsel %vm494, %v389, 0
    %893 = vmatprep.subr.bf16.mxu0 0
    %894 = vmatpush1.bf16.xpose.msra.mxu0 0
    %895 = vmatprep.subr.bf16.mxu0 0
    %896 = vmatpush1.bf16.xpose.msra.mxu0 0
    %897 = vmatprep.subr.bf16.mxu0 0
    %898 = vmatpush1.bf16.xpose.msra.mxu0 0
    %899 = vmatprep.subr.bf16.mxu0 0
    %900 = vmatpush1.bf16.xpose.msra.mxu0 0
    %901 = vmatprep.subr.bf16.mxu0 0
    %902 = vmatpush1.bf16.xpose.msra.mxu0 0
    %903 = vmatprep.subr.bf16.mxu0 0
    %904 = vmatpush1.bf16.xpose.msra.mxu0 0
    %905 = vmatprep.subr.bf16.mxu0 0
    %906 = vmatpush1.bf16.xpose.msra.mxu0 0
    %907 = vmatprep.subr.bf16.mxu0 0
    %908 = vmatpush1.bf16.xpose.msra.mxu0 %v891
    %909 = vmatprep.subr.bf16.mxu0 0
    %910 = vmatpush2.bf16.xpose.msra.mxu0 0
    %911 = vmatprep.subr.bf16.mxu0 0
    %912 = vmatpush2.bf16.xpose.msra.mxu0 0
    %913 = vmatprep.subr.bf16.mxu0 0
    %914 = vmatpush2.bf16.xpose.msra.mxu0 0
    %915 = vmatprep.subr.bf16.mxu0 0
    %916 = vmatpush2.bf16.xpose.msra.mxu0 0
    %917 = vmatprep.subr.bf16.mxu0 0
    %918 = vmatpush2.bf16.xpose.msra.mxu0 0
    %919 = vmatprep.subr.bf16.mxu0 0
    %920 = vmatpush2.bf16.xpose.msra.mxu0 0
    %921 = vmatprep.subr.bf16.mxu0 0
    %922 = vmatpush2.bf16.xpose.msra.mxu0 0
    %923 = vmatprep.subr.bf16.mxu0 0
    %924 = vmatpush2.bf16.xpose.msra.mxu0 0
    %925 = vmatprep.mubr.bf16.mxu0 0
    %926 = vmatmul.mubr.bf16.gmra.mxu0 %v888
    %v927 = vpop.f32.mrf.mxu0
    %v928 = vadd.f32 0.0, %v927
    %v929 = vpop.f32.mrf.mxu0
    %v930 = vpop.f32.mrf.mxu0
    %v931 = vadd.f32 0.0, %v930
    %v932 = vpop.f32.mrf.mxu0
    %933 = vdwg.mxu0
    %934 = vrot.lane.b32.xlu0 %v447, 64
    %v935 = vpop.permute.xlu0 %934
    %v937 = vsel %vm494, %v935, 0
    %v940 = vsel %vm494, %v391, 0
    %942 = vmatprep.subr.bf16.mxu0 0
    %943 = vmatpush1.bf16.xpose.msra.mxu0 0
    %944 = vmatprep.subr.bf16.mxu0 0
    %945 = vmatpush1.bf16.xpose.msra.mxu0 0
    %946 = vmatprep.subr.bf16.mxu0 0
    %947 = vmatpush1.bf16.xpose.msra.mxu0 0
    %948 = vmatprep.subr.bf16.mxu0 0
    %949 = vmatpush1.bf16.xpose.msra.mxu0 0
    %950 = vmatprep.subr.bf16.mxu0 0
    %951 = vmatpush1.bf16.xpose.msra.mxu0 0
    %952 = vmatprep.subr.bf16.mxu0 0
    %953 = vmatpush1.bf16.xpose.msra.mxu0 0
    %954 = vmatprep.subr.bf16.mxu0 0
    %955 = vmatpush1.bf16.xpose.msra.mxu0 0
    %956 = vmatprep.subr.bf16.mxu0 0
    %957 = vmatpush1.bf16.xpose.msra.mxu0 %v940
    %958 = vmatprep.subr.bf16.mxu0 0
    %959 = vmatpush2.bf16.xpose.msra.mxu0 0
    %960 = vmatprep.subr.bf16.mxu0 0
    %961 = vmatpush2.bf16.xpose.msra.mxu0 0
    %962 = vmatprep.subr.bf16.mxu0 0
    %963 = vmatpush2.bf16.xpose.msra.mxu0 0
    %964 = vmatprep.subr.bf16.mxu0 0
    %965 = vmatpush2.bf16.xpose.msra.mxu0 0
    %966 = vmatprep.subr.bf16.mxu0 0
    %967 = vmatpush2.bf16.xpose.msra.mxu0 0
    %968 = vmatprep.subr.bf16.mxu0 0
    %969 = vmatpush2.bf16.xpose.msra.mxu0 0
    %970 = vmatprep.subr.bf16.mxu0 0
    %971 = vmatpush2.bf16.xpose.msra.mxu0 0
    %972 = vmatprep.subr.bf16.mxu0 0
    %973 = vmatpush2.bf16.xpose.msra.mxu0 0
    %974 = vmatprep.mubr.bf16.mxu0 0
    %975 = vmatmul.mubr.bf16.gmra.mxu0 %v937
    %v976 = vpop.f32.mrf.mxu0
    %v977 = vadd.f32 0.0, %v976
    %v978 = vpop.f32.mrf.mxu0
    %v979 = vpop.f32.mrf.mxu0
    %v980 = vadd.f32 0.0, %v979
    %v981 = vpop.f32.mrf.mxu0
    %982 = vdwg.mxu0
    %983 = vrot.lane.b32.xlu0 %v449, 64
    %v984 = vpop.permute.xlu0 %983
    %v986 = vsel %vm494, %v984, 0
    %v989 = vsel %vm494, %v393, 0
    %991 = vmatprep.subr.bf16.mxu0 0
    %992 = vmatpush1.bf16.xpose.msra.mxu0 0
    %993 = vmatprep.subr.bf16.mxu0 0
    %994 = vmatpush1.bf16.xpose.msra.mxu0 0
    %995 = vmatprep.subr.bf16.mxu0 0
    %996 = vmatpush1.bf16.xpose.msra.mxu0 0
    %997 = vmatprep.subr.bf16.mxu0 0
    %998 = vmatpush1.bf16.xpose.msra.mxu0 0
    %999 = vmatprep.subr.bf16.mxu0 0
    %1000 = vmatpush1.bf16.xpose.msra.mxu0 0
    %1001 = vmatprep.subr.bf16.mxu0 0
    %1002 = vmatpush1.bf16.xpose.msra.mxu0 0
    %1003 = vmatprep.subr.bf16.mxu0 0
    %1004 = vmatpush1.bf16.xpose.msra.mxu0 0
    %1005 = vmatprep.subr.bf16.mxu0 0
    %1006 = vmatpush1.bf16.xpose.msra.mxu0 %v989
    %1007 = vmatprep.subr.bf16.mxu0 0
    %1008 = vmatpush2.bf16.xpose.msra.mxu0 0
    %1009 = vmatprep.subr.bf16.mxu0 0
    %1010 = vmatpush2.bf16.xpose.msra.mxu0 0
    %1011 = vmatprep.subr.bf16.mxu0 0
    %1012 = vmatpush2.bf16.xpose.msra.mxu0 0
    %1013 = vmatprep.subr.bf16.mxu0 0
    %1014 = vmatpush2.bf16.xpose.msra.mxu0 0
    %1015 = vmatprep.subr.bf16.mxu0 0
    %1016 = vmatpush2.bf16.xpose.msra.mxu0 0
    %1017 = vmatprep.subr.bf16.mxu0 0
    %1018 = vmatpush2.bf16.xpose.msra.mxu0 0
    %1019 = vmatprep.subr.bf16.mxu0 0
    %1020 = vmatpush2.bf16.xpose.msra.mxu0 0
    %1021 = vmatprep.subr.bf16.mxu0 0
    %1022 = vmatpush2.bf16.xpose.msra.mxu0 0
    %1023 = vmatprep.mubr.bf16.mxu0 0
    %1024 = vmatmul.mubr.bf16.gmra.mxu0 %v986
    %v1025 = vpop.f32.mrf.mxu0
    %v1026 = vadd.f32 0.0, %v1025
    %v1027 = vpop.f32.mrf.mxu0
    %v1028 = vpop.f32.mrf.mxu0
    %v1029 = vadd.f32 0.0, %v1028
    %v1030 = vpop.f32.mrf.mxu0
    %1031 = vdwg.mxu0
    %1032 = vrot.lane.b32.xlu0 %v451, 64
    %v1033 = vpop.permute.xlu0 %1032
    %v1035 = vsel %vm494, %v1033, 0
    %v1038 = vsel %vm494, %v395, 0
    %1040 = vmatprep.subr.bf16.mxu0 0
    %1041 = vmatpush1.bf16.xpose.msra.mxu0 0
    %1042 = vmatprep.subr.bf16.mxu0 0
    %1043 = vmatpush1.bf16.xpose.msra.mxu0 0
    %1044 = vmatprep.subr.bf16.mxu0 0
    %1045 = vmatpush1.bf16.xpose.msra.mxu0 0
    %1046 = vmatprep.subr.bf16.mxu0 0
    %1047 = vmatpush1.bf16.xpose.msra.mxu0 0
    %1048 = vmatprep.subr.bf16.mxu0 0
    %1049 = vmatpush1.bf16.xpose.msra.mxu0 0
    %1050 = vmatprep.subr.bf16.mxu0 0
    %1051 = vmatpush1.bf16.xpose.msra.mxu0 0
    %1052 = vmatprep.subr.bf16.mxu0 0
    %1053 = vmatpush1.bf16.xpose.msra.mxu0 0
    %1054 = vmatprep.subr.bf16.mxu0 0
    %1055 = vmatpush1.bf16.xpose.msra.mxu0 %v1038
    %1056 = vmatprep.subr.bf16.mxu0 0
    %1057 = vmatpush2.bf16.xpose.msra.mxu0 0
    %1058 = vmatprep.subr.bf16.mxu0 0
    %1059 = vmatpush2.bf16.xpose.msra.mxu0 0
    %1060 = vmatprep.subr.bf16.mxu0 0
    %1061 = vmatpush2.bf16.xpose.msra.mxu0 0
    %1062 = vmatprep.subr.bf16.mxu0 0
    %1063 = vmatpush2.bf16.xpose.msra.mxu0 0
    %1064 = vmatprep.subr.bf16.mxu0 0
    %1065 = vmatpush2.bf16.xpose.msra.mxu0 0
    %1066 = vmatprep.subr.bf16.mxu0 0
    %1067 = vmatpush2.bf16.xpose.msra.mxu0 0
    %1068 = vmatprep.subr.bf16.mxu0 0
    %1069 = vmatpush2.bf16.xpose.msra.mxu0 0
    %1070 = vmatprep.subr.bf16.mxu0 0
    %1071 = vmatpush2.bf16.xpose.msra.mxu0 0
    %1072 = vmatprep.mubr.bf16.mxu0 0
    %1073 = vmatmul.mubr.bf16.gmra.mxu0 %v1035
    %v1074 = vpop.f32.mrf.mxu0
    %v1075 = vadd.f32 0.0, %v1074
    %v1076 = vpop.f32.mrf.mxu0
    %v1077 = vpop.f32.mrf.mxu0
    %v1078 = vadd.f32 0.0, %v1077
    %v1079 = vpop.f32.mrf.mxu0
    %1080 = vdwg.mxu0
    %1081 = vrot.lane.b32.xlu0 %v453, 64
    %v1082 = vpop.permute.xlu0 %1081
    %v1084 = vsel %vm494, %v1082, 0
    %v1087 = vsel %vm494, %v397, 0
    %1089 = vmatprep.subr.bf16.mxu0 0
    %1090 = vmatpush1.bf16.xpose.msra.mxu0 0
    %1091 = vmatprep.subr.bf16.mxu0 0
    %1092 = vmatpush1.bf16.xpose.msra.mxu0 0
    %1093 = vmatprep.subr.bf16.mxu0 0
    %1094 = vmatpush1.bf16.xpose.msra.mxu0 0
    %1095 = vmatprep.subr.bf16.mxu0 0
    %1096 = vmatpush1.bf16.xpose.msra.mxu0 0
    %1097 = vmatprep.subr.bf16.mxu0 0
    %1098 = vmatpush1.bf16.xpose.msra.mxu0 0
    %1099 = vmatprep.subr.bf16.mxu0 0
    %1100 = vmatpush1.bf16.xpose.msra.mxu0 0
    %1101 = vmatprep.subr.bf16.mxu0 0
    %1102 = vmatpush1.bf16.xpose.msra.mxu0 0
    %1103 = vmatprep.subr.bf16.mxu0 0
    %1104 = vmatpush1.bf16.xpose.msra.mxu0 %v1087
    %1105 = vmatprep.subr.bf16.mxu0 0
    %1106 = vmatpush2.bf16.xpose.msra.mxu0 0
    %1107 = vmatprep.subr.bf16.mxu0 0
    %1108 = vmatpush2.bf16.xpose.msra.mxu0 0
    %1109 = vmatprep.subr.bf16.mxu0 0
    %1110 = vmatpush2.bf16.xpose.msra.mxu0 0
    %1111 = vmatprep.subr.bf16.mxu0 0
    %1112 = vmatpush2.bf16.xpose.msra.mxu0 0
    %1113 = vmatprep.subr.bf16.mxu0 0
    %1114 = vmatpush2.bf16.xpose.msra.mxu0 0
    %1115 = vmatprep.subr.bf16.mxu0 0
    %1116 = vmatpush2.bf16.xpose.msra.mxu0 0
    %1117 = vmatprep.subr.bf16.mxu0 0
    %1118 = vmatpush2.bf16.xpose.msra.mxu0 0
    %1119 = vmatprep.subr.bf16.mxu0 0
    %1120 = vmatpush2.bf16.xpose.msra.mxu0 0
    %1121 = vmatprep.mubr.bf16.mxu0 0
    %1122 = vmatmul.mubr.bf16.gmra.mxu0 %v1084
    %v1123 = vpop.f32.mrf.mxu0
    %v1124 = vadd.f32 0.0, %v1123
    %v1125 = vpop.f32.mrf.mxu0
    %v1126 = vpop.f32.mrf.mxu0
    %v1127 = vadd.f32 0.0, %v1126
    %v1128 = vpop.f32.mrf.mxu0
    %1129 = vdwg.mxu0
    %1130 = vrot.lane.b32.xlu0 %v455, 64
    %v1131 = vpop.permute.xlu0 %1130
    %v1133 = vsel %vm494, %v1131, 0
    %v1136 = vsel %vm494, %v399, 0
    %1138 = vmatprep.subr.bf16.mxu0 0
    %1139 = vmatpush1.bf16.xpose.msra.mxu0 0
    %1140 = vmatprep.subr.bf16.mxu0 0
    %1141 = vmatpush1.bf16.xpose.msra.mxu0 0
    %1142 = vmatprep.subr.bf16.mxu0 0
    %1143 = vmatpush1.bf16.xpose.msra.mxu0 0
    %1144 = vmatprep.subr.bf16.mxu0 0
    %1145 = vmatpush1.bf16.xpose.msra.mxu0 0
    %1146 = vmatprep.subr.bf16.mxu0 0
    %1147 = vmatpush1.bf16.xpose.msra.mxu0 0
    %1148 = vmatprep.subr.bf16.mxu0 0
    %1149 = vmatpush1.bf16.xpose.msra.mxu0 0
    %1150 = vmatprep.subr.bf16.mxu0 0
    %1151 = vmatpush1.bf16.xpose.msra.mxu0 0
    %1152 = vmatprep.subr.bf16.mxu0 0
    %1153 = vmatpush1.bf16.xpose.msra.mxu0 %v1136
    %1154 = vmatprep.subr.bf16.mxu0 0
    %1155 = vmatpush2.bf16.xpose.msra.mxu0 0
    %1156 = vmatprep.subr.bf16.mxu0 0
    %1157 = vmatpush2.bf16.xpose.msra.mxu0 0
    %1158 = vmatprep.subr.bf16.mxu0 0
    %1159 = vmatpush2.bf16.xpose.msra.mxu0 0
    %1160 = vmatprep.subr.bf16.mxu0 0
    %1161 = vmatpush2.bf16.xpose.msra.mxu0 0
    %1162 = vmatprep.subr.bf16.mxu0 0
    %1163 = vmatpush2.bf16.xpose.msra.mxu0 0
    %1164 = vmatprep.subr.bf16.mxu0 0
    %1165 = vmatpush2.bf16.xpose.msra.mxu0 0
    %1166 = vmatprep.subr.bf16.mxu0 0
    %1167 = vmatpush2.bf16.xpose.msra.mxu0 0
    %1168 = vmatprep.subr.bf16.mxu0 0
    %1169 = vmatpush2.bf16.xpose.msra.mxu0 0
    %1170 = vmatprep.mubr.bf16.mxu0 0
    %1171 = vmatmul.mubr.bf16.gmra.mxu0 %v1133
    %v1172 = vpop.f32.mrf.mxu0
    %v1173 = vadd.f32 0.0, %v1172
    %v1174 = vpop.f32.mrf.mxu0
    %v1175 = vpop.f32.mrf.mxu0
    %v1176 = vadd.f32 0.0, %v1175
    %v1177 = vpop.f32.mrf.mxu0
    %1178 = vdwg.mxu0
    %1179 = vrot.lane.b32.xlu0 %v457, 64
    %v1180 = vpop.permute.xlu0 %1179
    %v1182 = vsel %vm494, %v1180, 0
    %v1185 = vsel %vm494, %v401, 0
    %1187 = vmatprep.subr.bf16.mxu0 0
    %1188 = vmatpush1.bf16.xpose.msra.mxu0 0
    %1189 = vmatprep.subr.bf16.mxu0 0
    %1190 = vmatpush1.bf16.xpose.msra.mxu0 0
    %1191 = vmatprep.subr.bf16.mxu0 0
    %1192 = vmatpush1.bf16.xpose.msra.mxu0 0
    %1193 = vmatprep.subr.bf16.mxu0 0
    %1194 = vmatpush1.bf16.xpose.msra.mxu0 0
    %1195 = vmatprep.subr.bf16.mxu0 0
    %1196 = vmatpush1.bf16.xpose.msra.mxu0 0
    %1197 = vmatprep.subr.bf16.mxu0 0
    %1198 = vmatpush1.bf16.xpose.msra.mxu0 0
    %1199 = vmatprep.subr.bf16.mxu0 0
    %1200 = vmatpush1.bf16.xpose.msra.mxu0 0
    %1201 = vmatprep.subr.bf16.mxu0 0
    %1202 = vmatpush1.bf16.xpose.msra.mxu0 %v1185
    %1203 = vmatprep.subr.bf16.mxu0 0
    %1204 = vmatpush2.bf16.xpose.msra.mxu0 0
    %1205 = vmatprep.subr.bf16.mxu0 0
    %1206 = vmatpush2.bf16.xpose.msra.mxu0 0
    %1207 = vmatprep.subr.bf16.mxu0 0
    %1208 = vmatpush2.bf16.xpose.msra.mxu0 0
    %1209 = vmatprep.subr.bf16.mxu0 0
    %1210 = vmatpush2.bf16.xpose.msra.mxu0 0
    %1211 = vmatprep.subr.bf16.mxu0 0
    %1212 = vmatpush2.bf16.xpose.msra.mxu0 0
    %1213 = vmatprep.subr.bf16.mxu0 0
    %1214 = vmatpush2.bf16.xpose.msra.mxu0 0
    %1215 = vmatprep.subr.bf16.mxu0 0
    %1216 = vmatpush2.bf16.xpose.msra.mxu0 0
    %1217 = vmatprep.subr.bf16.mxu0 0
    %1218 = vmatpush2.bf16.xpose.msra.mxu0 0
    %1219 = vmatprep.mubr.bf16.mxu0 0
    %1220 = vmatmul.mubr.bf16.gmra.mxu0 %v1182
    %v1221 = vpop.f32.mrf.mxu0
    %v1222 = vadd.f32 0.0, %v1221
    %v1223 = vpop.f32.mrf.mxu0
    %v1224 = vpop.f32.mrf.mxu0
    %v1225 = vadd.f32 0.0, %v1224
    %v1226 = vpop.f32.mrf.mxu0
    %1227 = vdwg.mxu0
    %1228 = vrot.lane.b32.xlu0 %v459, 64
    %v1229 = vpop.permute.xlu0 %1228
    %v1231 = vsel %vm494, %v1229, 0
    %v1234 = vsel %vm494, %v403, 0
    %1236 = vmatprep.subr.bf16.mxu0 0
    %1237 = vmatpush1.bf16.xpose.msra.mxu0 0
    %1238 = vmatprep.subr.bf16.mxu0 0
    %1239 = vmatpush1.bf16.xpose.msra.mxu0 0
    %1240 = vmatprep.subr.bf16.mxu0 0
    %1241 = vmatpush1.bf16.xpose.msra.mxu0 0
    %1242 = vmatprep.subr.bf16.mxu0 0
    %1243 = vmatpush1.bf16.xpose.msra.mxu0 0
    %1244 = vmatprep.subr.bf16.mxu0 0
    %1245 = vmatpush1.bf16.xpose.msra.mxu0 0
    %1246 = vmatprep.subr.bf16.mxu0 0
    %1247 = vmatpush1.bf16.xpose.msra.mxu0 0
    %1248 = vmatprep.subr.bf16.mxu0 0
    %1249 = vmatpush1.bf16.xpose.msra.mxu0 0
    %1250 = vmatprep.subr.bf16.mxu0 0
    %1251 = vmatpush1.bf16.xpose.msra.mxu0 %v1234
    %1252 = vmatprep.subr.bf16.mxu0 0
    %1253 = vmatpush2.bf16.xpose.msra.mxu0 0
    %1254 = vmatprep.subr.bf16.mxu0 0
    %1255 = vmatpush2.bf16.xpose.msra.mxu0 0
    %1256 = vmatprep.subr.bf16.mxu0 0
    %1257 = vmatpush2.bf16.xpose.msra.mxu0 0
    %1258 = vmatprep.subr.bf16.mxu0 0
    %1259 = vmatpush2.bf16.xpose.msra.mxu0 0
    %1260 = vmatprep.subr.bf16.mxu0 0
    %1261 = vmatpush2.bf16.xpose.msra.mxu0 0
    %1262 = vmatprep.subr.bf16.mxu0 0
    %1263 = vmatpush2.bf16.xpose.msra.mxu0 0
    %1264 = vmatprep.subr.bf16.mxu0 0
    %1265 = vmatpush2.bf16.xpose.msra.mxu0 0
    %1266 = vmatprep.subr.bf16.mxu0 0
    %1267 = vmatpush2.bf16.xpose.msra.mxu0 0
    %1268 = vmatprep.mubr.bf16.mxu0 0
    %1269 = vmatmul.mubr.bf16.gmra.mxu0 %v1231
    %v1270 = vpop.f32.mrf.mxu0
    %v1271 = vadd.f32 0.0, %v1270
    %v1272 = vpop.f32.mrf.mxu0
    %v1273 = vpop.f32.mrf.mxu0
    %v1274 = vadd.f32 0.0, %v1273
    %v1275 = vpop.f32.mrf.mxu0
    %1276 = vdwg.mxu0
    %1277 = vrot.lane.b32.xlu0 %v461, 64
    %v1278 = vpop.permute.xlu0 %1277
    %v1280 = vsel %vm494, %v1278, 0
    %v1283 = vsel %vm494, %v405, 0
    %1285 = vmatprep.subr.bf16.mxu0 0
    %1286 = vmatpush1.bf16.xpose.msra.mxu0 0
    %1287 = vmatprep.subr.bf16.mxu0 0
    %1288 = vmatpush1.bf16.xpose.msra.mxu0 0
    %1289 = vmatprep.subr.bf16.mxu0 0
    %1290 = vmatpush1.bf16.xpose.msra.mxu0 0
    %1291 = vmatprep.subr.bf16.mxu0 0
    %1292 = vmatpush1.bf16.xpose.msra.mxu0 0
    %1293 = vmatprep.subr.bf16.mxu0 0
    %1294 = vmatpush1.bf16.xpose.msra.mxu0 0
    %1295 = vmatprep.subr.bf16.mxu0 0
    %1296 = vmatpush1.bf16.xpose.msra.mxu0 0
    %1297 = vmatprep.subr.bf16.mxu0 0
    %1298 = vmatpush1.bf16.xpose.msra.mxu0 0
    %1299 = vmatprep.subr.bf16.mxu0 0
    %1300 = vmatpush1.bf16.xpose.msra.mxu0 %v1283
    %1301 = vmatprep.subr.bf16.mxu0 0
    %1302 = vmatpush2.bf16.xpose.msra.mxu0 0
    %1303 = vmatprep.subr.bf16.mxu0 0
    %1304 = vmatpush2.bf16.xpose.msra.mxu0 0
    %1305 = vmatprep.subr.bf16.mxu0 0
    %1306 = vmatpush2.bf16.xpose.msra.mxu0 0
    %1307 = vmatprep.subr.bf16.mxu0 0
    %1308 = vmatpush2.bf16.xpose.msra.mxu0 0
    %1309 = vmatprep.subr.bf16.mxu0 0
    %1310 = vmatpush2.bf16.xpose.msra.mxu0 0
    %1311 = vmatprep.subr.bf16.mxu0 0
    %1312 = vmatpush2.bf16.xpose.msra.mxu0 0
    %1313 = vmatprep.subr.bf16.mxu0 0
    %1314 = vmatpush2.bf16.xpose.msra.mxu0 0
    %1315 = vmatprep.subr.bf16.mxu0 0
    %1316 = vmatpush2.bf16.xpose.msra.mxu0 0
    %1317 = vmatprep.mubr.bf16.mxu0 0
    %1318 = vmatmul.mubr.bf16.gmra.mxu0 %v1280
    %v1319 = vpop.f32.mrf.mxu0
    %v1320 = vadd.f32 0.0, %v1319
    %v1321 = vpop.f32.mrf.mxu0
    %v1322 = vpop.f32.mrf.mxu0
    %v1323 = vadd.f32 0.0, %v1322
    %v1324 = vpop.f32.mrf.mxu0
    %1325 = vdwg.mxu0
    %1326 = vrot.lane.b32.xlu0 %v463, 64
    %v1327 = vpop.permute.xlu0 %1326
    %v1329 = vsel %vm494, %v1327, 0
    %v1332 = vsel %vm494, %v407, 0
    %1334 = vmatprep.subr.bf16.mxu0 0
    %1335 = vmatpush1.bf16.xpose.msra.mxu0 0
    %1336 = vmatprep.subr.bf16.mxu0 0
    %1337 = vmatpush1.bf16.xpose.msra.mxu0 0
    %1338 = vmatprep.subr.bf16.mxu0 0
    %1339 = vmatpush1.bf16.xpose.msra.mxu0 0
    %1340 = vmatprep.subr.bf16.mxu0 0
    %1341 = vmatpush1.bf16.xpose.msra.mxu0 0
    %1342 = vmatprep.subr.bf16.mxu0 0
    %1343 = vmatpush1.bf16.xpose.msra.mxu0 0
    %1344 = vmatprep.subr.bf16.mxu0 0
    %1345 = vmatpush1.bf16.xpose.msra.mxu0 0
    %1346 = vmatprep.subr.bf16.mxu0 0
    %1347 = vmatpush1.bf16.xpose.msra.mxu0 0
    %1348 = vmatprep.subr.bf16.mxu0 0
    %1349 = vmatpush1.bf16.xpose.msra.mxu0 %v1332
    %1350 = vmatprep.subr.bf16.mxu0 0
    %1351 = vmatpush2.bf16.xpose.msra.mxu0 0
    %1352 = vmatprep.subr.bf16.mxu0 0
    %1353 = vmatpush2.bf16.xpose.msra.mxu0 0
    %1354 = vmatprep.subr.bf16.mxu0 0
    %1355 = vmatpush2.bf16.xpose.msra.mxu0 0
    %1356 = vmatprep.subr.bf16.mxu0 0
    %1357 = vmatpush2.bf16.xpose.msra.mxu0 0
    %1358 = vmatprep.subr.bf16.mxu0 0
    %1359 = vmatpush2.bf16.xpose.msra.mxu0 0
    %1360 = vmatprep.subr.bf16.mxu0 0
    %1361 = vmatpush2.bf16.xpose.msra.mxu0 0
    %1362 = vmatprep.subr.bf16.mxu0 0
    %1363 = vmatpush2.bf16.xpose.msra.mxu0 0
    %1364 = vmatprep.subr.bf16.mxu0 0
    %1365 = vmatpush2.bf16.xpose.msra.mxu0 0
    %1366 = vmatprep.mubr.bf16.mxu0 0
    %1367 = vmatmul.mubr.bf16.gmra.mxu0 %v1329
    %v1368 = vpop.f32.mrf.mxu0
    %v1369 = vadd.f32 0.0, %v1368
    %v1370 = vpop.f32.mrf.mxu0
    %v1371 = vpop.f32.mrf.mxu0
    %v1372 = vadd.f32 0.0, %v1371
    %v1373 = vpop.f32.mrf.mxu0
    %1374 = vdwg.mxu0
    %1375 = vrot.lane.b32.xlu0 %v465, 64
    %v1376 = vpop.permute.xlu0 %1375
    %v1378 = vsel %vm494, %v1376, 0
    %v1381 = vsel %vm494, %v409, 0
    %1383 = vmatprep.subr.bf16.mxu0 0
    %1384 = vmatpush1.bf16.xpose.msra.mxu0 0
    %1385 = vmatprep.subr.bf16.mxu0 0
    %1386 = vmatpush1.bf16.xpose.msra.mxu0 0
    %1387 = vmatprep.subr.bf16.mxu0 0
    %1388 = vmatpush1.bf16.xpose.msra.mxu0 0
    %1389 = vmatprep.subr.bf16.mxu0 0
    %1390 = vmatpush1.bf16.xpose.msra.mxu0 0
    %1391 = vmatprep.subr.bf16.mxu0 0
    %1392 = vmatpush1.bf16.xpose.msra.mxu0 0
    %1393 = vmatprep.subr.bf16.mxu0 0
    %1394 = vmatpush1.bf16.xpose.msra.mxu0 0
    %1395 = vmatprep.subr.bf16.mxu0 0
    %1396 = vmatpush1.bf16.xpose.msra.mxu0 0
    %1397 = vmatprep.subr.bf16.mxu0 0
    %1398 = vmatpush1.bf16.xpose.msra.mxu0 %v1381
    %1399 = vmatprep.subr.bf16.mxu0 0
    %1400 = vmatpush2.bf16.xpose.msra.mxu0 0
    %1401 = vmatprep.subr.bf16.mxu0 0
    %1402 = vmatpush2.bf16.xpose.msra.mxu0 0
    %1403 = vmatprep.subr.bf16.mxu0 0
    %1404 = vmatpush2.bf16.xpose.msra.mxu0 0
    %1405 = vmatprep.subr.bf16.mxu0 0
    %1406 = vmatpush2.bf16.xpose.msra.mxu0 0
    %1407 = vmatprep.subr.bf16.mxu0 0
    %1408 = vmatpush2.bf16.xpose.msra.mxu0 0
    %1409 = vmatprep.subr.bf16.mxu0 0
    %1410 = vmatpush2.bf16.xpose.msra.mxu0 0
    %1411 = vmatprep.subr.bf16.mxu0 0
    %1412 = vmatpush2.bf16.xpose.msra.mxu0 0
    %1413 = vmatprep.subr.bf16.mxu0 0
    %1414 = vmatpush2.bf16.xpose.msra.mxu0 0
    %1415 = vmatprep.mubr.bf16.mxu0 0
    %1416 = vmatmul.mubr.bf16.gmra.mxu0 %v1378
    %v1417 = vpop.f32.mrf.mxu0
    %v1418 = vadd.f32 0.0, %v1417
    %v1419 = vpop.f32.mrf.mxu0
    %v1420 = vpop.f32.mrf.mxu0
    %v1421 = vadd.f32 0.0, %v1420
    %v1422 = vpop.f32.mrf.mxu0
    %1423 = vdwg.mxu0
    %1424 = vrot.lane.b32.xlu0 %v467, 64
    %v1425 = vpop.permute.xlu0 %1424
    %v1427 = vsel %vm494, %v1425, 0
    %v1430 = vsel %vm494, %v411, 0
    %1432 = vmatprep.subr.bf16.mxu0 0
    %1433 = vmatpush1.bf16.xpose.msra.mxu0 0
    %1434 = vmatprep.subr.bf16.mxu0 0
    %1435 = vmatpush1.bf16.xpose.msra.mxu0 0
    %1436 = vmatprep.subr.bf16.mxu0 0
    %1437 = vmatpush1.bf16.xpose.msra.mxu0 0
    %1438 = vmatprep.subr.bf16.mxu0 0
    %1439 = vmatpush1.bf16.xpose.msra.mxu0 0
    %1440 = vmatprep.subr.bf16.mxu0 0
    %1441 = vmatpush1.bf16.xpose.msra.mxu0 0
    %1442 = vmatprep.subr.bf16.mxu0 0
    %1443 = vmatpush1.bf16.xpose.msra.mxu0 0
    %1444 = vmatprep.subr.bf16.mxu0 0
    %1445 = vmatpush1.bf16.xpose.msra.mxu0 0
    %1446 = vmatprep.subr.bf16.mxu0 0
    %1447 = vmatpush1.bf16.xpose.msra.mxu0 %v1430
    %1448 = vmatprep.subr.bf16.mxu0 0
    %1449 = vmatpush2.bf16.xpose.msra.mxu0 0
    %1450 = vmatprep.subr.bf16.mxu0 0
    %1451 = vmatpush2.bf16.xpose.msra.mxu0 0
    %1452 = vmatprep.subr.bf16.mxu0 0
    %1453 = vmatpush2.bf16.xpose.msra.mxu0 0
    %1454 = vmatprep.subr.bf16.mxu0 0
    %1455 = vmatpush2.bf16.xpose.msra.mxu0 0
    %1456 = vmatprep.subr.bf16.mxu0 0
    %1457 = vmatpush2.bf16.xpose.msra.mxu0 0
    %1458 = vmatprep.subr.bf16.mxu0 0
    %1459 = vmatpush2.bf16.xpose.msra.mxu0 0
    %1460 = vmatprep.subr.bf16.mxu0 0
    %1461 = vmatpush2.bf16.xpose.msra.mxu0 0
    %1462 = vmatprep.subr.bf16.mxu0 0
    %1463 = vmatpush2.bf16.xpose.msra.mxu0 0
    %1464 = vmatprep.mubr.bf16.mxu0 0
    %1465 = vmatmul.mubr.bf16.gmra.mxu0 %v1427
    %v1466 = vpop.f32.mrf.mxu0
    %v1467 = vadd.f32 0.0, %v1466
    %v1468 = vpop.f32.mrf.mxu0
    %v1469 = vpop.f32.mrf.mxu0
    %v1470 = vadd.f32 0.0, %v1469
    %v1471 = vpop.f32.mrf.mxu0
    %1472 = vdwg.mxu0
    %1473 = vrot.lane.b32.xlu0 %v469, 64
    %v1474 = vpop.permute.xlu0 %1473
    %v1476 = vsel %vm494, %v1474, 0
    %v1479 = vsel %vm494, %v413, 0
    %1481 = vmatprep.subr.bf16.mxu0 0
    %1482 = vmatpush1.bf16.xpose.msra.mxu0 0
    %1483 = vmatprep.subr.bf16.mxu0 0
    %1484 = vmatpush1.bf16.xpose.msra.mxu0 0
    %1485 = vmatprep.subr.bf16.mxu0 0
    %1486 = vmatpush1.bf16.xpose.msra.mxu0 0
    %1487 = vmatprep.subr.bf16.mxu0 0
    %1488 = vmatpush1.bf16.xpose.msra.mxu0 0
    %1489 = vmatprep.subr.bf16.mxu0 0
    %1490 = vmatpush1.bf16.xpose.msra.mxu0 0
    %1491 = vmatprep.subr.bf16.mxu0 0
    %1492 = vmatpush1.bf16.xpose.msra.mxu0 0
    %1493 = vmatprep.subr.bf16.mxu0 0
    %1494 = vmatpush1.bf16.xpose.msra.mxu0 0
    %1495 = vmatprep.subr.bf16.mxu0 0
    %1496 = vmatpush1.bf16.xpose.msra.mxu0 %v1479
    %1497 = vmatprep.subr.bf16.mxu0 0
    %1498 = vmatpush2.bf16.xpose.msra.mxu0 0
    %1499 = vmatprep.subr.bf16.mxu0 0
    %1500 = vmatpush2.bf16.xpose.msra.mxu0 0
    %1501 = vmatprep.subr.bf16.mxu0 0
    %1502 = vmatpush2.bf16.xpose.msra.mxu0 0
    %1503 = vmatprep.subr.bf16.mxu0 0
    %1504 = vmatpush2.bf16.xpose.msra.mxu0 0
    %1505 = vmatprep.subr.bf16.mxu0 0
    %1506 = vmatpush2.bf16.xpose.msra.mxu0 0
    %1507 = vmatprep.subr.bf16.mxu0 0
    %1508 = vmatpush2.bf16.xpose.msra.mxu0 0
    %1509 = vmatprep.subr.bf16.mxu0 0
    %1510 = vmatpush2.bf16.xpose.msra.mxu0 0
    %1511 = vmatprep.subr.bf16.mxu0 0
    %1512 = vmatpush2.bf16.xpose.msra.mxu0 0
    %1513 = vmatprep.mubr.bf16.mxu0 0
    %1514 = vmatmul.mubr.bf16.gmra.mxu0 %v1476
    %v1515 = vpop.f32.mrf.mxu0
    %v1516 = vadd.f32 0.0, %v1515
    %v1517 = vpop.f32.mrf.mxu0
    %v1518 = vpop.f32.mrf.mxu0
    %v1519 = vadd.f32 0.0, %v1518
    %v1520 = vpop.f32.mrf.mxu0
    %1521 = vdwg.mxu0
    %1522 = vrot.lane.b32.xlu0 %v471, 64
    %v1523 = vpop.permute.xlu0 %1522
    %v1525 = vsel %vm494, %v1523, 0
    %v1528 = vsel %vm494, %v415, 0
    %1530 = vmatprep.subr.bf16.mxu0 0
    %1531 = vmatpush1.bf16.xpose.msra.mxu0 0
    %1532 = vmatprep.subr.bf16.mxu0 0
    %1533 = vmatpush1.bf16.xpose.msra.mxu0 0
    %1534 = vmatprep.subr.bf16.mxu0 0
    %1535 = vmatpush1.bf16.xpose.msra.mxu0 0
    %1536 = vmatprep.subr.bf16.mxu0 0
    %1537 = vmatpush1.bf16.xpose.msra.mxu0 0
    %1538 = vmatprep.subr.bf16.mxu0 0
    %1539 = vmatpush1.bf16.xpose.msra.mxu0 0
    %1540 = vmatprep.subr.bf16.mxu0 0
    %1541 = vmatpush1.bf16.xpose.msra.mxu0 0
    %1542 = vmatprep.subr.bf16.mxu0 0
    %1543 = vmatpush1.bf16.xpose.msra.mxu0 0
    %1544 = vmatprep.subr.bf16.mxu0 0
    %1545 = vmatpush1.bf16.xpose.msra.mxu0 %v1528
    %1546 = vmatprep.subr.bf16.mxu0 0
    %1547 = vmatpush2.bf16.xpose.msra.mxu0 0
    %1548 = vmatprep.subr.bf16.mxu0 0
    %1549 = vmatpush2.bf16.xpose.msra.mxu0 0
    %1550 = vmatprep.subr.bf16.mxu0 0
    %1551 = vmatpush2.bf16.xpose.msra.mxu0 0
    %1552 = vmatprep.subr.bf16.mxu0 0
    %1553 = vmatpush2.bf16.xpose.msra.mxu0 0
    %1554 = vmatprep.subr.bf16.mxu0 0
    %1555 = vmatpush2.bf16.xpose.msra.mxu0 0
    %1556 = vmatprep.subr.bf16.mxu0 0
    %1557 = vmatpush2.bf16.xpose.msra.mxu0 0
    %1558 = vmatprep.subr.bf16.mxu0 0
    %1559 = vmatpush2.bf16.xpose.msra.mxu0 0
    %1560 = vmatprep.subr.bf16.mxu0 0
    %1561 = vmatpush2.bf16.xpose.msra.mxu0 0
    %1562 = vmatprep.mubr.bf16.mxu0 0
    %1563 = vmatmul.mubr.bf16.gmra.mxu0 %v1525
    %v1564 = vpop.f32.mrf.mxu0
    %v1565 = vadd.f32 0.0, %v1564
    %v1566 = vpop.f32.mrf.mxu0
    %v1567 = vpop.f32.mrf.mxu0
    %v1568 = vadd.f32 0.0, %v1567
    %v1569 = vpop.f32.mrf.mxu0
    %1570 = vdwg.mxu0
    %1571 = vrot.lane.b32.xlu0 %v473, 64
    %v1572 = vpop.permute.xlu0 %1571
    %v1574 = vsel %vm494, %v1572, 0
    %v1577 = vsel %vm494, %v417, 0
    %1579 = vmatprep.subr.bf16.mxu0 0
    %1580 = vmatpush1.bf16.xpose.msra.mxu0 0
    %1581 = vmatprep.subr.bf16.mxu0 0
    %1582 = vmatpush1.bf16.xpose.msra.mxu0 0
    %1583 = vmatprep.subr.bf16.mxu0 0
    %1584 = vmatpush1.bf16.xpose.msra.mxu0 0
    %1585 = vmatprep.subr.bf16.mxu0 0
    %1586 = vmatpush1.bf16.xpose.msra.mxu0 0
    %1587 = vmatprep.subr.bf16.mxu0 0
    %1588 = vmatpush1.bf16.xpose.msra.mxu0 0
    %1589 = vmatprep.subr.bf16.mxu0 0
    %1590 = vmatpush1.bf16.xpose.msra.mxu0 0
    %1591 = vmatprep.subr.bf16.mxu0 0
    %1592 = vmatpush1.bf16.xpose.msra.mxu0 0
    %1593 = vmatprep.subr.bf16.mxu0 0
    %1594 = vmatpush1.bf16.xpose.msra.mxu0 %v1577
    %1595 = vmatprep.subr.bf16.mxu0 0
    %1596 = vmatpush2.bf16.xpose.msra.mxu0 0
    %1597 = vmatprep.subr.bf16.mxu0 0
    %1598 = vmatpush2.bf16.xpose.msra.mxu0 0
    %1599 = vmatprep.subr.bf16.mxu0 0
    %1600 = vmatpush2.bf16.xpose.msra.mxu0 0
    %1601 = vmatprep.subr.bf16.mxu0 0
    %1602 = vmatpush2.bf16.xpose.msra.mxu0 0
    %1603 = vmatprep.subr.bf16.mxu0 0
    %1604 = vmatpush2.bf16.xpose.msra.mxu0 0
    %1605 = vmatprep.subr.bf16.mxu0 0
    %1606 = vmatpush2.bf16.xpose.msra.mxu0 0
    %1607 = vmatprep.subr.bf16.mxu0 0
    %1608 = vmatpush2.bf16.xpose.msra.mxu0 0
    %1609 = vmatprep.subr.bf16.mxu0 0
    %1610 = vmatpush2.bf16.xpose.msra.mxu0 0
    %1611 = vmatprep.mubr.bf16.mxu0 0
    %1612 = vmatmul.mubr.bf16.gmra.mxu0 %v1574
    %v1613 = vpop.f32.mrf.mxu0
    %v1614 = vadd.f32 0.0, %v1613
    %v1615 = vpop.f32.mrf.mxu0
    %v1616 = vpop.f32.mrf.mxu0
    %v1617 = vadd.f32 0.0, %v1616
    %v1618 = vpop.f32.mrf.mxu0
    %1619 = vdwg.mxu0
    %1620 = vrot.lane.b32.xlu0 %v475, 64
    %v1621 = vpop.permute.xlu0 %1620
    %v1623 = vsel %vm494, %v1621, 0
    %v1626 = vsel %vm494, %v419, 0
    %1628 = vmatprep.subr.bf16.mxu0 0
    %1629 = vmatpush1.bf16.xpose.msra.mxu0 0
    %1630 = vmatprep.subr.bf16.mxu0 0
    %1631 = vmatpush1.bf16.xpose.msra.mxu0 0
    %1632 = vmatprep.subr.bf16.mxu0 0
    %1633 = vmatpush1.bf16.xpose.msra.mxu0 0
    %1634 = vmatprep.subr.bf16.mxu0 0
    %1635 = vmatpush1.bf16.xpose.msra.mxu0 0
    %1636 = vmatprep.subr.bf16.mxu0 0
    %1637 = vmatpush1.bf16.xpose.msra.mxu0 0
    %1638 = vmatprep.subr.bf16.mxu0 0
    %1639 = vmatpush1.bf16.xpose.msra.mxu0 0
    %1640 = vmatprep.subr.bf16.mxu0 0
    %1641 = vmatpush1.bf16.xpose.msra.mxu0 0
    %1642 = vmatprep.subr.bf16.mxu0 0
    %1643 = vmatpush1.bf16.xpose.msra.mxu0 %v1626
    %1644 = vmatprep.subr.bf16.mxu0 0
    %1645 = vmatpush2.bf16.xpose.msra.mxu0 0
    %1646 = vmatprep.subr.bf16.mxu0 0
    %1647 = vmatpush2.bf16.xpose.msra.mxu0 0
    %1648 = vmatprep.subr.bf16.mxu0 0
    %1649 = vmatpush2.bf16.xpose.msra.mxu0 0
    %1650 = vmatprep.subr.bf16.mxu0 0
    %1651 = vmatpush2.bf16.xpose.msra.mxu0 0
    %1652 = vmatprep.subr.bf16.mxu0 0
    %1653 = vmatpush2.bf16.xpose.msra.mxu0 0
    %1654 = vmatprep.subr.bf16.mxu0 0
    %1655 = vmatpush2.bf16.xpose.msra.mxu0 0
    %1656 = vmatprep.subr.bf16.mxu0 0
    %1657 = vmatpush2.bf16.xpose.msra.mxu0 0
    %1658 = vmatprep.subr.bf16.mxu0 0
    %1659 = vmatpush2.bf16.xpose.msra.mxu0 0
    %1660 = vmatprep.mubr.bf16.mxu0 0
    %1661 = vmatmul.mubr.bf16.gmra.mxu0 %v1623
    %v1662 = vpop.f32.mrf.mxu0
    %v1663 = vadd.f32 0.0, %v1662
    %v1664 = vpop.f32.mrf.mxu0
    %v1665 = vpop.f32.mrf.mxu0
    %v1666 = vadd.f32 0.0, %v1665
    %v1667 = vpop.f32.mrf.mxu0
    %1668 = vdwg.mxu0
    %1669 = vrot.lane.b32.xlu0 %v477, 64
    %v1670 = vpop.permute.xlu0 %1669
    %v1672 = vsel %vm494, %v1670, 0
    %v1675 = vsel %vm494, %v421, 0
    %1677 = vmatprep.subr.bf16.mxu0 0
    %1678 = vmatpush1.bf16.xpose.msra.mxu0 0
    %1679 = vmatprep.subr.bf16.mxu0 0
    %1680 = vmatpush1.bf16.xpose.msra.mxu0 0
    %1681 = vmatprep.subr.bf16.mxu0 0
    %1682 = vmatpush1.bf16.xpose.msra.mxu0 0
    %1683 = vmatprep.subr.bf16.mxu0 0
    %1684 = vmatpush1.bf16.xpose.msra.mxu0 0
    %1685 = vmatprep.subr.bf16.mxu0 0
    %1686 = vmatpush1.bf16.xpose.msra.mxu0 0
    %1687 = vmatprep.subr.bf16.mxu0 0
    %1688 = vmatpush1.bf16.xpose.msra.mxu0 0
    %1689 = vmatprep.subr.bf16.mxu0 0
    %1690 = vmatpush1.bf16.xpose.msra.mxu0 0
    %1691 = vmatprep.subr.bf16.mxu0 0
    %1692 = vmatpush1.bf16.xpose.msra.mxu0 %v1675
    %1693 = vmatprep.subr.bf16.mxu0 0
    %1694 = vmatpush2.bf16.xpose.msra.mxu0 0
    %1695 = vmatprep.subr.bf16.mxu0 0
    %1696 = vmatpush2.bf16.xpose.msra.mxu0 0
    %1697 = vmatprep.subr.bf16.mxu0 0
    %1698 = vmatpush2.bf16.xpose.msra.mxu0 0
    %1699 = vmatprep.subr.bf16.mxu0 0
    %1700 = vmatpush2.bf16.xpose.msra.mxu0 0
    %1701 = vmatprep.subr.bf16.mxu0 0
    %1702 = vmatpush2.bf16.xpose.msra.mxu0 0
    %1703 = vmatprep.subr.bf16.mxu0 0
    %1704 = vmatpush2.bf16.xpose.msra.mxu0 0
    %1705 = vmatprep.subr.bf16.mxu0 0
    %1706 = vmatpush2.bf16.xpose.msra.mxu0 0
    %1707 = vmatprep.subr.bf16.mxu0 0
    %1708 = vmatpush2.bf16.xpose.msra.mxu0 0
    %1709 = vmatprep.mubr.bf16.mxu0 0
    %1710 = vmatmul.mubr.bf16.gmra.mxu0 %v1672
    %v1711 = vpop.f32.mrf.mxu0
    %v1712 = vadd.f32 0.0, %v1711
    %v1713 = vpop.f32.mrf.mxu0
    %v1714 = vpop.f32.mrf.mxu0
    %v1715 = vadd.f32 0.0, %v1714
    %v1716 = vpop.f32.mrf.mxu0
    %1717 = vdwg.mxu0
    %1718 = vrot.lane.b32.xlu0 %v479, 64
    %v1719 = vpop.permute.xlu0 %1718
    %v1721 = vsel %vm494, %v1719, 0
    %v1724 = vsel %vm494, %v423, 0
    %1726 = vmatprep.subr.bf16.mxu0 0
    %1727 = vmatpush1.bf16.xpose.msra.mxu0 0
    %1728 = vmatprep.subr.bf16.mxu0 0
    %1729 = vmatpush1.bf16.xpose.msra.mxu0 0
    %1730 = vmatprep.subr.bf16.mxu0 0
    %1731 = vmatpush1.bf16.xpose.msra.mxu0 0
    %1732 = vmatprep.subr.bf16.mxu0 0
    %1733 = vmatpush1.bf16.xpose.msra.mxu0 0
    %1734 = vmatprep.subr.bf16.mxu0 0
    %1735 = vmatpush1.bf16.xpose.msra.mxu0 0
    %1736 = vmatprep.subr.bf16.mxu0 0
    %1737 = vmatpush1.bf16.xpose.msra.mxu0 0
    %1738 = vmatprep.subr.bf16.mxu0 0
    %1739 = vmatpush1.bf16.xpose.msra.mxu0 0
    %1740 = vmatprep.subr.bf16.mxu0 0
    %1741 = vmatpush1.bf16.xpose.msra.mxu0 %v1724
    %1742 = vmatprep.subr.bf16.mxu0 0
    %1743 = vmatpush2.bf16.xpose.msra.mxu0 0
    %1744 = vmatprep.subr.bf16.mxu0 0
    %1745 = vmatpush2.bf16.xpose.msra.mxu0 0
    %1746 = vmatprep.subr.bf16.mxu0 0
    %1747 = vmatpush2.bf16.xpose.msra.mxu0 0
    %1748 = vmatprep.subr.bf16.mxu0 0
    %1749 = vmatpush2.bf16.xpose.msra.mxu0 0
    %1750 = vmatprep.subr.bf16.mxu0 0
    %1751 = vmatpush2.bf16.xpose.msra.mxu0 0
    %1752 = vmatprep.subr.bf16.mxu0 0
    %1753 = vmatpush2.bf16.xpose.msra.mxu0 0
    %1754 = vmatprep.subr.bf16.mxu0 0
    %1755 = vmatpush2.bf16.xpose.msra.mxu0 0
    %1756 = vmatprep.subr.bf16.mxu0 0
    %1757 = vmatpush2.bf16.xpose.msra.mxu0 0
    %1758 = vmatprep.mubr.bf16.mxu0 0
    %1759 = vmatmul.mubr.bf16.gmra.mxu0 %v1721
    %v1760 = vpop.f32.mrf.mxu0
    %v1761 = vadd.f32 0.0, %v1760
    %v1762 = vpop.f32.mrf.mxu0
    %v1763 = vpop.f32.mrf.mxu0
    %v1764 = vadd.f32 0.0, %v1763
    %v1765 = vpop.f32.mrf.mxu0
    %1766 = vdwg.mxu0
    %1767 = vrot.lane.b32.xlu0 %v481, 64
    %v1768 = vpop.permute.xlu0 %1767
    %v1770 = vsel %vm494, %v1768, 0
    %v1773 = vsel %vm494, %v425, 0
    %1775 = vmatprep.subr.bf16.mxu0 0
    %1776 = vmatpush1.bf16.xpose.msra.mxu0 0
    %1777 = vmatprep.subr.bf16.mxu0 0
    %1778 = vmatpush1.bf16.xpose.msra.mxu0 0
    %1779 = vmatprep.subr.bf16.mxu0 0
    %1780 = vmatpush1.bf16.xpose.msra.mxu0 0
    %1781 = vmatprep.subr.bf16.mxu0 0
    %1782 = vmatpush1.bf16.xpose.msra.mxu0 0
    %1783 = vmatprep.subr.bf16.mxu0 0
    %1784 = vmatpush1.bf16.xpose.msra.mxu0 0
    %1785 = vmatprep.subr.bf16.mxu0 0
    %1786 = vmatpush1.bf16.xpose.msra.mxu0 0
    %1787 = vmatprep.subr.bf16.mxu0 0
    %1788 = vmatpush1.bf16.xpose.msra.mxu0 0
    %1789 = vmatprep.subr.bf16.mxu0 0
    %1790 = vmatpush1.bf16.xpose.msra.mxu0 %v1773
    %1791 = vmatprep.subr.bf16.mxu0 0
    %1792 = vmatpush2.bf16.xpose.msra.mxu0 0
    %1793 = vmatprep.subr.bf16.mxu0 0
    %1794 = vmatpush2.bf16.xpose.msra.mxu0 0
    %1795 = vmatprep.subr.bf16.mxu0 0
    %1796 = vmatpush2.bf16.xpose.msra.mxu0 0
    %1797 = vmatprep.subr.bf16.mxu0 0
    %1798 = vmatpush2.bf16.xpose.msra.mxu0 0
    %1799 = vmatprep.subr.bf16.mxu0 0
    %1800 = vmatpush2.bf16.xpose.msra.mxu0 0
    %1801 = vmatprep.subr.bf16.mxu0 0
    %1802 = vmatpush2.bf16.xpose.msra.mxu0 0
    %1803 = vmatprep.subr.bf16.mxu0 0
    %1804 = vmatpush2.bf16.xpose.msra.mxu0 0
    %1805 = vmatprep.subr.bf16.mxu0 0
    %1806 = vmatpush2.bf16.xpose.msra.mxu0 0
    %1807 = vmatprep.mubr.bf16.mxu0 0
    %1808 = vmatmul.mubr.bf16.gmra.mxu0 %v1770
    %v1809 = vpop.f32.mrf.mxu0
    %v1810 = vadd.f32 0.0, %v1809
    %v1811 = vpop.f32.mrf.mxu0
    %v1812 = vpop.f32.mrf.mxu0
    %v1813 = vadd.f32 0.0, %v1812
    %v1814 = vpop.f32.mrf.mxu0
    %1815 = vdwg.mxu0
    %1816 = vrot.lane.b32.xlu0 %v483, 64
    %v1817 = vpop.permute.xlu0 %1816
    %v1819 = vsel %vm494, %v1817, 0
    %v1822 = vsel %vm494, %v427, 0
    %1824 = vmatprep.subr.bf16.mxu0 0
    %1825 = vmatpush1.bf16.xpose.msra.mxu0 0
    %1826 = vmatprep.subr.bf16.mxu0 0
    %1827 = vmatpush1.bf16.xpose.msra.mxu0 0
    %1828 = vmatprep.subr.bf16.mxu0 0
    %1829 = vmatpush1.bf16.xpose.msra.mxu0 0
    %1830 = vmatprep.subr.bf16.mxu0 0
    %1831 = vmatpush1.bf16.xpose.msra.mxu0 0
    %1832 = vmatprep.subr.bf16.mxu0 0
    %1833 = vmatpush1.bf16.xpose.msra.mxu0 0
    %1834 = vmatprep.subr.bf16.mxu0 0
    %1835 = vmatpush1.bf16.xpose.msra.mxu0 0
    %1836 = vmatprep.subr.bf16.mxu0 0
    %1837 = vmatpush1.bf16.xpose.msra.mxu0 0
    %1838 = vmatprep.subr.bf16.mxu0 0
    %1839 = vmatpush1.bf16.xpose.msra.mxu0 %v1822
    %1840 = vmatprep.subr.bf16.mxu0 0
    %1841 = vmatpush2.bf16.xpose.msra.mxu0 0
    %1842 = vmatprep.subr.bf16.mxu0 0
    %1843 = vmatpush2.bf16.xpose.msra.mxu0 0
    %1844 = vmatprep.subr.bf16.mxu0 0
    %1845 = vmatpush2.bf16.xpose.msra.mxu0 0
    %1846 = vmatprep.subr.bf16.mxu0 0
    %1847 = vmatpush2.bf16.xpose.msra.mxu0 0
    %1848 = vmatprep.subr.bf16.mxu0 0
    %1849 = vmatpush2.bf16.xpose.msra.mxu0 0
    %1850 = vmatprep.subr.bf16.mxu0 0
    %1851 = vmatpush2.bf16.xpose.msra.mxu0 0
    %1852 = vmatprep.subr.bf16.mxu0 0
    %1853 = vmatpush2.bf16.xpose.msra.mxu0 0
    %1854 = vmatprep.subr.bf16.mxu0 0
    %1855 = vmatpush2.bf16.xpose.msra.mxu0 0
    %1856 = vmatprep.mubr.bf16.mxu0 0
    %1857 = vmatmul.mubr.bf16.gmra.mxu0 %v1819
    %v1858 = vpop.f32.mrf.mxu0
    %v1859 = vadd.f32 0.0, %v1858
    %v1860 = vpop.f32.mrf.mxu0
    %v1861 = vpop.f32.mrf.mxu0
    %v1862 = vadd.f32 0.0, %v1861
    %v1863 = vpop.f32.mrf.mxu0
    %1864 = vdwg.mxu0
    %1865 = vrot.lane.b32.xlu0 %v485, 64
    %v1866 = vpop.permute.xlu0 %1865
    %v1868 = vsel %vm494, %v1866, 0
    %v1871 = vsel %vm494, %v429, 0
    %1873 = vmatprep.subr.bf16.mxu0 0
    %1874 = vmatpush1.bf16.xpose.msra.mxu0 0
    %1875 = vmatprep.subr.bf16.mxu0 0
    %1876 = vmatpush1.bf16.xpose.msra.mxu0 0
    %1877 = vmatprep.subr.bf16.mxu0 0
    %1878 = vmatpush1.bf16.xpose.msra.mxu0 0
    %1879 = vmatprep.subr.bf16.mxu0 0
    %1880 = vmatpush1.bf16.xpose.msra.mxu0 0
    %1881 = vmatprep.subr.bf16.mxu0 0
    %1882 = vmatpush1.bf16.xpose.msra.mxu0 0
    %1883 = vmatprep.subr.bf16.mxu0 0
    %1884 = vmatpush1.bf16.xpose.msra.mxu0 0
    %1885 = vmatprep.subr.bf16.mxu0 0
    %1886 = vmatpush1.bf16.xpose.msra.mxu0 0
    %1887 = vmatprep.subr.bf16.mxu0 0
    %1888 = vmatpush1.bf16.xpose.msra.mxu0 %v1871
    %1889 = vmatprep.subr.bf16.mxu0 0
    %1890 = vmatpush2.bf16.xpose.msra.mxu0 0
    %1891 = vmatprep.subr.bf16.mxu0 0
    %1892 = vmatpush2.bf16.xpose.msra.mxu0 0
    %1893 = vmatprep.subr.bf16.mxu0 0
    %1894 = vmatpush2.bf16.xpose.msra.mxu0 0
    %1895 = vmatprep.subr.bf16.mxu0 0
    %1896 = vmatpush2.bf16.xpose.msra.mxu0 0
    %1897 = vmatprep.subr.bf16.mxu0 0
    %1898 = vmatpush2.bf16.xpose.msra.mxu0 0
    %1899 = vmatprep.subr.bf16.mxu0 0
    %1900 = vmatpush2.bf16.xpose.msra.mxu0 0
    %1901 = vmatprep.subr.bf16.mxu0 0
    %1902 = vmatpush2.bf16.xpose.msra.mxu0 0
    %1903 = vmatprep.subr.bf16.mxu0 0
    %1904 = vmatpush2.bf16.xpose.msra.mxu0 0
    %1905 = vmatprep.mubr.bf16.mxu0 0
    %1906 = vmatmul.mubr.bf16.gmra.mxu0 %v1868
    %v1907 = vpop.f32.mrf.mxu0
    %v1908 = vadd.f32 0.0, %v1907
    %v1909 = vpop.f32.mrf.mxu0
    %v1910 = vpop.f32.mrf.mxu0
    %v1911 = vadd.f32 0.0, %v1910
    %v1912 = vpop.f32.mrf.mxu0
    %1913 = vdwg.mxu0
    %1914 = vrot.lane.b32.xlu0 %v487, 64
    %v1915 = vpop.permute.xlu0 %1914
    %v1917 = vsel %vm494, %v1915, 0
    %v1920 = vsel %vm494, %v431, 0
    %1922 = vmatprep.subr.bf16.mxu0 0
    %1923 = vmatpush1.bf16.xpose.msra.mxu0 0
    %1924 = vmatprep.subr.bf16.mxu0 0
    %1925 = vmatpush1.bf16.xpose.msra.mxu0 0
    %1926 = vmatprep.subr.bf16.mxu0 0
    %1927 = vmatpush1.bf16.xpose.msra.mxu0 0
    %1928 = vmatprep.subr.bf16.mxu0 0
    %1929 = vmatpush1.bf16.xpose.msra.mxu0 0
    %1930 = vmatprep.subr.bf16.mxu0 0
    %1931 = vmatpush1.bf16.xpose.msra.mxu0 0
    %1932 = vmatprep.subr.bf16.mxu0 0
    %1933 = vmatpush1.bf16.xpose.msra.mxu0 0
    %1934 = vmatprep.subr.bf16.mxu0 0
    %1935 = vmatpush1.bf16.xpose.msra.mxu0 0
    %1936 = vmatprep.subr.bf16.mxu0 0
    %1937 = vmatpush1.bf16.xpose.msra.mxu0 %v1920
    %1938 = vmatprep.subr.bf16.mxu0 0
    %1939 = vmatpush2.bf16.xpose.msra.mxu0 0
    %1940 = vmatprep.subr.bf16.mxu0 0
    %1941 = vmatpush2.bf16.xpose.msra.mxu0 0
    %1942 = vmatprep.subr.bf16.mxu0 0
    %1943 = vmatpush2.bf16.xpose.msra.mxu0 0
    %1944 = vmatprep.subr.bf16.mxu0 0
    %1945 = vmatpush2.bf16.xpose.msra.mxu0 0
    %1946 = vmatprep.subr.bf16.mxu0 0
    %1947 = vmatpush2.bf16.xpose.msra.mxu0 0
    %1948 = vmatprep.subr.bf16.mxu0 0
    %1949 = vmatpush2.bf16.xpose.msra.mxu0 0
    %1950 = vmatprep.subr.bf16.mxu0 0
    %1951 = vmatpush2.bf16.xpose.msra.mxu0 0
    %1952 = vmatprep.subr.bf16.mxu0 0
    %1953 = vmatpush2.bf16.xpose.msra.mxu0 0
    %1954 = vmatprep.mubr.bf16.mxu0 0
    %1955 = vmatmul.mubr.bf16.gmra.mxu0 %v1917
    %v1956 = vpop.f32.mrf.mxu0
    %v1957 = vadd.f32 0.0, %v1956
    %v1958 = vpop.f32.mrf.mxu0
    %v1959 = vpop.f32.mrf.mxu0
    %v1960 = vadd.f32 0.0, %v1959
    %v1961 = vpop.f32.mrf.mxu0
    %1962 = vdwg.mxu0
    %1963 = vrot.lane.b32.xlu0 %v489, 64
    %v1964 = vpop.permute.xlu0 %1963
    %v1966 = vsel %vm494, %v1964, 0
    %v1969 = vsel %vm494, %v433, 0
    %1971 = vmatprep.subr.bf16.mxu0 0
    %1972 = vmatpush1.bf16.xpose.msra.mxu0 0
    %1973 = vmatprep.subr.bf16.mxu0 0
    %1974 = vmatpush1.bf16.xpose.msra.mxu0 0
    %1975 = vmatprep.subr.bf16.mxu0 0
    %1976 = vmatpush1.bf16.xpose.msra.mxu0 0
    %1977 = vmatprep.subr.bf16.mxu0 0
    %1978 = vmatpush1.bf16.xpose.msra.mxu0 0
    %1979 = vmatprep.subr.bf16.mxu0 0
    %1980 = vmatpush1.bf16.xpose.msra.mxu0 0
    %1981 = vmatprep.subr.bf16.mxu0 0
    %1982 = vmatpush1.bf16.xpose.msra.mxu0 0
    %1983 = vmatprep.subr.bf16.mxu0 0
    %1984 = vmatpush1.bf16.xpose.msra.mxu0 0
    %1985 = vmatprep.subr.bf16.mxu0 0
    %1986 = vmatpush1.bf16.xpose.msra.mxu0 %v1969
    %1987 = vmatprep.subr.bf16.mxu0 0
    %1988 = vmatpush2.bf16.xpose.msra.mxu0 0
    %1989 = vmatprep.subr.bf16.mxu0 0
    %1990 = vmatpush2.bf16.xpose.msra.mxu0 0
    %1991 = vmatprep.subr.bf16.mxu0 0
    %1992 = vmatpush2.bf16.xpose.msra.mxu0 0
    %1993 = vmatprep.subr.bf16.mxu0 0
    %1994 = vmatpush2.bf16.xpose.msra.mxu0 0
    %1995 = vmatprep.subr.bf16.mxu0 0
    %1996 = vmatpush2.bf16.xpose.msra.mxu0 0
    %1997 = vmatprep.subr.bf16.mxu0 0
    %1998 = vmatpush2.bf16.xpose.msra.mxu0 0
    %1999 = vmatprep.subr.bf16.mxu0 0
    %2000 = vmatpush2.bf16.xpose.msra.mxu0 0
    %2001 = vmatprep.subr.bf16.mxu0 0
    %2002 = vmatpush2.bf16.xpose.msra.mxu0 0
    %2003 = vmatprep.mubr.bf16.mxu0 0
    %2004 = vmatmul.mubr.bf16.gmra.mxu0 %v1966
    %v2005 = vpop.f32.mrf.mxu0
    %v2006 = vadd.f32 0.0, %v2005
    %v2007 = vpop.f32.mrf.mxu0
    %v2008 = vpop.f32.mrf.mxu0
    %v2009 = vadd.f32 0.0, %v2008
    %v2010 = vpop.f32.mrf.mxu0
    %2011 = vdwg.mxu0
    %2012 = vrot.lane.b32.xlu0 %v491, 64
    %v2013 = vpop.permute.xlu0 %2012
    %v2015 = vsel %vm494, %v2013, 0
    %v2018 = vsel %vm494, %v435, 0
    %2020 = vmatprep.subr.bf16.mxu0 0
    %2021 = vmatpush1.bf16.xpose.msra.mxu0 0
    %2022 = vmatprep.subr.bf16.mxu0 0
    %2023 = vmatpush1.bf16.xpose.msra.mxu0 0
    %2024 = vmatprep.subr.bf16.mxu0 0
    %2025 = vmatpush1.bf16.xpose.msra.mxu0 0
    %2026 = vmatprep.subr.bf16.mxu0 0
    %2027 = vmatpush1.bf16.xpose.msra.mxu0 0
    %2028 = vmatprep.subr.bf16.mxu0 0
    %2029 = vmatpush1.bf16.xpose.msra.mxu0 0
    %2030 = vmatprep.subr.bf16.mxu0 0
    %2031 = vmatpush1.bf16.xpose.msra.mxu0 0
    %2032 = vmatprep.subr.bf16.mxu0 0
    %2033 = vmatpush1.bf16.xpose.msra.mxu0 0
    %2034 = vmatprep.subr.bf16.mxu0 0
    %2035 = vmatpush1.bf16.xpose.msra.mxu0 %v2018
    %2036 = vmatprep.subr.bf16.mxu0 0
    %2037 = vmatpush2.bf16.xpose.msra.mxu0 0
    %2038 = vmatprep.subr.bf16.mxu0 0
    %2039 = vmatpush2.bf16.xpose.msra.mxu0 0
    %2040 = vmatprep.subr.bf16.mxu0 0
    %2041 = vmatpush2.bf16.xpose.msra.mxu0 0
    %2042 = vmatprep.subr.bf16.mxu0 0
    %2043 = vmatpush2.bf16.xpose.msra.mxu0 0
    %2044 = vmatprep.subr.bf16.mxu0 0
    %2045 = vmatpush2.bf16.xpose.msra.mxu0 0
    %2046 = vmatprep.subr.bf16.mxu0 0
    %2047 = vmatpush2.bf16.xpose.msra.mxu0 0
    %2048 = vmatprep.subr.bf16.mxu0 0
    %2049 = vmatpush2.bf16.xpose.msra.mxu0 0
    %2050 = vmatprep.subr.bf16.mxu0 0
    %2051 = vmatpush2.bf16.xpose.msra.mxu0 0
    %2052 = vmatprep.mubr.bf16.mxu0 0
    %2053 = vmatmul.mubr.bf16.gmra.mxu0 %v2015
    %v2054 = vpop.f32.mrf.mxu0
    %v2055 = vadd.f32 0.0, %v2054
    %v2056 = vpop.f32.mrf.mxu0
    %v2057 = vpop.f32.mrf.mxu0
    %v2058 = vadd.f32 0.0, %v2057
    %v2059 = vpop.f32.mrf.mxu0
    %2060 = vdwg.mxu0
    %v2061 = vld [vmem:[%s3] sm:$0xff]
    %v2062 = vld [vmem:[%s3 + $0x8] sm:$0xff]
    %v2063 = vld [vmem:[%s3 + $0x10] sm:$0xff]
    %v2064 = vld [vmem:[%s3 + $0x18] sm:$0xff]
    %v2065 = vld [vmem:[%s3 + $0x20] sm:$0xff]
    %v2066 = vld [vmem:[%s3 + $0x28] sm:$0xff]
    %v2067 = vld [vmem:[%s3 + $0x30] sm:$0xff]
    %v2068 = vld [vmem:[%s3 + $0x38] sm:$0xff]
    %v2069 = vadd.f32 %v536, %v2061
    %v2070 = vadd.f32 %v539, %v2062
    %v2071 = vadd.f32 %v585, %v2061
    %v2072 = vadd.f32 %v588, %v2062
    %v2073 = vadd.f32 %v634, %v2061
    %v2074 = vadd.f32 %v637, %v2062
    %v2075 = vadd.f32 %v683, %v2061
    %v2076 = vadd.f32 %v686, %v2062
    %v2077 = vadd.f32 %v732, %v2061
    %v2078 = vadd.f32 %v735, %v2062
    %v2079 = vadd.f32 %v781, %v2061
    %v2080 = vadd.f32 %v784, %v2062
    %v2081 = vadd.f32 %v830, %v2061
    %v2082 = vadd.f32 %v833, %v2062
    %v2083 = vadd.f32 %v879, %v2061
    %v2084 = vadd.f32 %v882, %v2062
    %v2085 = vadd.f32 %v928, %v2063
    %v2086 = vadd.f32 %v931, %v2064
    %v2087 = vadd.f32 %v977, %v2063
    %v2088 = vadd.f32 %v980, %v2064
    %v2089 = vadd.f32 %v1026, %v2063
    %v2090 = vadd.f32 %v1029, %v2064
    %v2091 = vadd.f32 %v1075, %v2063
    %v2092 = vadd.f32 %v1078, %v2064
    %v2093 = vadd.f32 %v1124, %v2063
    %v2094 = vadd.f32 %v1127, %v2064
    %v2095 = vadd.f32 %v1173, %v2063
    %v2096 = vadd.f32 %v1176, %v2064
    %v2097 = vadd.f32 %v1222, %v2063
    %v2098 = vadd.f32 %v1225, %v2064
    %v2099 = vadd.f32 %v1271, %v2063
    %v2100 = vadd.f32 %v1274, %v2064
    %v2101 = vadd.f32 %v1320, %v2065
    %v2102 = vadd.f32 %v1323, %v2066
    %v2103 = vadd.f32 %v1369, %v2065
    %v2104 = vadd.f32 %v1372, %v2066
    %v2105 = vadd.f32 %v1418, %v2065
    %v2106 = vadd.f32 %v1421, %v2066
    %v2107 = vadd.f32 %v1467, %v2065
    %v2108 = vadd.f32 %v1470, %v2066
    %v2109 = vadd.f32 %v1516, %v2065
    %v2110 = vadd.f32 %v1519, %v2066
    %v2111 = vadd.f32 %v1565, %v2065
    %v2112 = vadd.f32 %v1568, %v2066
    %v2113 = vadd.f32 %v1614, %v2065
    %v2114 = vadd.f32 %v1617, %v2066
    %v2115 = vadd.f32 %v1663, %v2065
    %v2116 = vadd.f32 %v1666, %v2066
    %v2117 = vadd.f32 %v1712, %v2067
    %v2118 = vadd.f32 %v1715, %v2068
    %v2119 = vadd.f32 %v1761, %v2067
    %v2120 = vadd.f32 %v1764, %v2068
    %v2121 = vadd.f32 %v1810, %v2067
    %v2122 = vadd.f32 %v1813, %v2068
    %v2123 = vadd.f32 %v1859, %v2067
    %v2124 = vadd.f32 %v1862, %v2068
    %v2125 = vadd.f32 %v1908, %v2067
    %v2126 = vadd.f32 %v1911, %v2068
    %v2127 = vadd.f32 %v1957, %v2067
    %v2128 = vadd.f32 %v1960, %v2068
    %v2129 = vadd.f32 %v2006, %v2067
    %v2130 = vadd.f32 %v2009, %v2068
    %v2131 = vadd.f32 %v2055, %v2067
    %v2132 = vadd.f32 %v2058, %v2068
    %vm2133 = vcmask 130048
    %v2134 = vsel %vm2133, %v2069, -inf
    %2135 = vmax.xlane.f32.xlu0 %v2134
    %v2136 = vpop.xlane.xlu0 %2135
    %v2137 = vsel %vm2133, %v2070, -inf
    %2138 = vmax.xlane.f32.xlu0 %v2137
    %v2139 = vpop.xlane.xlu0 %2138
    %v2140 = vsel %vm2133, %v2071, -inf
    %2141 = vmax.xlane.f32.xlu0 %v2140
    %v2142 = vpop.xlane.xlu0 %2141
    %v2143 = vsel %vm2133, %v2072, -inf
    %2144 = vmax.xlane.f32.xlu0 %v2143
    %v2145 = vpop.xlane.xlu0 %2144
    %v2146 = vsel %vm2133, %v2073, -inf
    %2147 = vmax.xlane.f32.xlu0 %v2146
    %v2148 = vpop.xlane.xlu0 %2147
    %v2149 = vsel %vm2133, %v2074, -inf
    %2150 = vmax.xlane.f32.xlu0 %v2149
    %v2151 = vpop.xlane.xlu0 %2150
    %v2152 = vsel %vm2133, %v2075, -inf
    %2153 = vmax.xlane.f32.xlu0 %v2152
    %v2154 = vpop.xlane.xlu0 %2153
    %v2155 = vsel %vm2133, %v2076, -inf
    %2156 = vmax.xlane.f32.xlu0 %v2155
    %v2157 = vpop.xlane.xlu0 %2156
    %v2158 = vsel %vm2133, %v2077, -inf
    %2159 = vmax.xlane.f32.xlu0 %v2158
    %v2160 = vpop.xlane.xlu0 %2159
    %v2161 = vsel %vm2133, %v2078, -inf
    %2162 = vmax.xlane.f32.xlu0 %v2161
    %v2163 = vpop.xlane.xlu0 %2162
    %v2164 = vsel %vm2133, %v2079, -inf
    %2165 = vmax.xlane.f32.xlu0 %v2164
    %v2166 = vpop.xlane.xlu0 %2165
    %v2167 = vsel %vm2133, %v2080, -inf
    %2168 = vmax.xlane.f32.xlu0 %v2167
    %v2169 = vpop.xlane.xlu0 %2168
    %v2170 = vsel %vm2133, %v2081, -inf
    %2171 = vmax.xlane.f32.xlu0 %v2170
    %v2172 = vpop.xlane.xlu0 %2171
    %v2173 = vsel %vm2133, %v2082, -inf
    %2174 = vmax.xlane.f32.xlu0 %v2173
    %v2175 = vpop.xlane.xlu0 %2174
    %v2176 = vsel %vm2133, %v2083, -inf
    %2177 = vmax.xlane.f32.xlu0 %v2176
    %v2178 = vpop.xlane.xlu0 %2177
    %v2179 = vsel %vm2133, %v2084, -inf
    %2180 = vmax.xlane.f32.xlu0 %v2179
    %v2181 = vpop.xlane.xlu0 %2180
    %v2182 = vsel %vm2133, %v2085, -inf
    %2183 = vmax.xlane.f32.xlu0 %v2182
    %v2184 = vpop.xlane.xlu0 %2183
    %v2185 = vsel %vm2133, %v2086, -inf
    %2186 = vmax.xlane.f32.xlu0 %v2185
    %v2187 = vpop.xlane.xlu0 %2186
    %v2188 = vsel %vm2133, %v2087, -inf
    %2189 = vmax.xlane.f32.xlu0 %v2188
    %v2190 = vpop.xlane.xlu0 %2189
    %v2191 = vsel %vm2133, %v2088, -inf
    %2192 = vmax.xlane.f32.xlu0 %v2191
    %v2193 = vpop.xlane.xlu0 %2192
    %v2194 = vsel %vm2133, %v2089, -inf
    %2195 = vmax.xlane.f32.xlu0 %v2194
    %v2196 = vpop.xlane.xlu0 %2195
    %v2197 = vsel %vm2133, %v2090, -inf
    %2198 = vmax.xlane.f32.xlu0 %v2197
    %v2199 = vpop.xlane.xlu0 %2198
    %v2200 = vsel %vm2133, %v2091, -inf
    %2201 = vmax.xlane.f32.xlu0 %v2200
    %v2202 = vpop.xlane.xlu0 %2201
    %v2203 = vsel %vm2133, %v2092, -inf
    %2204 = vmax.xlane.f32.xlu0 %v2203
    %v2205 = vpop.xlane.xlu0 %2204
    %v2206 = vsel %vm2133, %v2093, -inf
    %2207 = vmax.xlane.f32.xlu0 %v2206
    %v2208 = vpop.xlane.xlu0 %2207
    %v2209 = vsel %vm2133, %v2094, -inf
    %2210 = vmax.xlane.f32.xlu0 %v2209
    %v2211 = vpop.xlane.xlu0 %2210
    %v2212 = vsel %vm2133, %v2095, -inf
    %2213 = vmax.xlane.f32.xlu0 %v2212
    %v2214 = vpop.xlane.xlu0 %2213
    %v2215 = vsel %vm2133, %v2096, -inf
    %2216 = vmax.xlane.f32.xlu0 %v2215
    %v2217 = vpop.xlane.xlu0 %2216
    %v2218 = vsel %vm2133, %v2097, -inf
    %2219 = vmax.xlane.f32.xlu0 %v2218
    %v2220 = vpop.xlane.xlu0 %2219
    %v2221 = vsel %vm2133, %v2098, -inf
    %2222 = vmax.xlane.f32.xlu0 %v2221
    %v2223 = vpop.xlane.xlu0 %2222
    %v2224 = vsel %vm2133, %v2099, -inf
    %2225 = vmax.xlane.f32.xlu0 %v2224
    %v2226 = vpop.xlane.xlu0 %2225
    %v2227 = vsel %vm2133, %v2100, -inf
    %2228 = vmax.xlane.f32.xlu0 %v2227
    %v2229 = vpop.xlane.xlu0 %2228
    %v2230 = vsel %vm2133, %v2101, -inf
    %2231 = vmax.xlane.f32.xlu0 %v2230
    %v2232 = vpop.xlane.xlu0 %2231
    %v2233 = vsel %vm2133, %v2102, -inf
    %2234 = vmax.xlane.f32.xlu0 %v2233
    %v2235 = vpop.xlane.xlu0 %2234
    %v2236 = vsel %vm2133, %v2103, -inf
    %2237 = vmax.xlane.f32.xlu0 %v2236
    %v2238 = vpop.xlane.xlu0 %2237
    %v2239 = vsel %vm2133, %v2104, -inf
    %2240 = vmax.xlane.f32.xlu0 %v2239
    %v2241 = vpop.xlane.xlu0 %2240
    %v2242 = vsel %vm2133, %v2105, -inf
    %2243 = vmax.xlane.f32.xlu0 %v2242
    %v2244 = vpop.xlane.xlu0 %2243
    %v2245 = vsel %vm2133, %v2106, -inf
    %2246 = vmax.xlane.f32.xlu0 %v2245
    %v2247 = vpop.xlane.xlu0 %2246
    %v2248 = vsel %vm2133, %v2107, -inf
    %2249 = vmax.xlane.f32.xlu0 %v2248
    %v2250 = vpop.xlane.xlu0 %2249
    %v2251 = vsel %vm2133, %v2108, -inf
    %2252 = vmax.xlane.f32.xlu0 %v2251
    %v2253 = vpop.xlane.xlu0 %2252
    %v2254 = vsel %vm2133, %v2109, -inf
    %2255 = vmax.xlane.f32.xlu0 %v2254
    %v2256 = vpop.xlane.xlu0 %2255
    %v2257 = vsel %vm2133, %v2110, -inf
    %2258 = vmax.xlane.f32.xlu0 %v2257
    %v2259 = vpop.xlane.xlu0 %2258
    %v2260 = vsel %vm2133, %v2111, -inf
    %2261 = vmax.xlane.f32.xlu0 %v2260
    %v2262 = vpop.xlane.xlu0 %2261
    %v2263 = vsel %vm2133, %v2112, -inf
    %2264 = vmax.xlane.f32.xlu0 %v2263
    %v2265 = vpop.xlane.xlu0 %2264
    %v2266 = vsel %vm2133, %v2113, -inf
    %2267 = vmax.xlane.f32.xlu0 %v2266
    %v2268 = vpop.xlane.xlu0 %2267
    %v2269 = vsel %vm2133, %v2114, -inf
    %2270 = vmax.xlane.f32.xlu0 %v2269
    %v2271 = vpop.xlane.xlu0 %2270
    %v2272 = vsel %vm2133, %v2115, -inf
    %2273 = vmax.xlane.f32.xlu0 %v2272
    %v2274 = vpop.xlane.xlu0 %2273
    %v2275 = vsel %vm2133, %v2116, -inf
    %2276 = vmax.xlane.f32.xlu0 %v2275
    %v2277 = vpop.xlane.xlu0 %2276
    %v2278 = vsel %vm2133, %v2117, -inf
    %2279 = vmax.xlane.f32.xlu0 %v2278
    %v2280 = vpop.xlane.xlu0 %2279
    %v2281 = vsel %vm2133, %v2118, -inf
    %2282 = vmax.xlane.f32.xlu0 %v2281
    %v2283 = vpop.xlane.xlu0 %2282
    %v2284 = vsel %vm2133, %v2119, -inf
    %2285 = vmax.xlane.f32.xlu0 %v2284
    %v2286 = vpop.xlane.xlu0 %2285
    %v2287 = vsel %vm2133, %v2120, -inf
    %2288 = vmax.xlane.f32.xlu0 %v2287
    %v2289 = vpop.xlane.xlu0 %2288
    %v2290 = vsel %vm2133, %v2121, -inf
    %2291 = vmax.xlane.f32.xlu0 %v2290
    %v2292 = vpop.xlane.xlu0 %2291
    %v2293 = vsel %vm2133, %v2122, -inf
    %2294 = vmax.xlane.f32.xlu0 %v2293
    %v2295 = vpop.xlane.xlu0 %2294
    %v2296 = vsel %vm2133, %v2123, -inf
    %2297 = vmax.xlane.f32.xlu0 %v2296
    %v2298 = vpop.xlane.xlu0 %2297
    %v2299 = vsel %vm2133, %v2124, -inf
    %2300 = vmax.xlane.f32.xlu0 %v2299
    %v2301 = vpop.xlane.xlu0 %2300
    %v2302 = vsel %vm2133, %v2125, -inf
    %2303 = vmax.xlane.f32.xlu0 %v2302
    %v2304 = vpop.xlane.xlu0 %2303
    %v2305 = vsel %vm2133, %v2126, -inf
    %2306 = vmax.xlane.f32.xlu0 %v2305
    %v2307 = vpop.xlane.xlu0 %2306
    %v2308 = vsel %vm2133, %v2127, -inf
    %2309 = vmax.xlane.f32.xlu0 %v2308
    %v2310 = vpop.xlane.xlu0 %2309
    %v2311 = vsel %vm2133, %v2128, -inf
    %2312 = vmax.xlane.f32.xlu0 %v2311
    %v2313 = vpop.xlane.xlu0 %2312
    %v2314 = vsel %vm2133, %v2129, -inf
    %2315 = vmax.xlane.f32.xlu0 %v2314
    %v2316 = vpop.xlane.xlu0 %2315
    %v2317 = vsel %vm2133, %v2130, -inf
    %2318 = vmax.xlane.f32.xlu0 %v2317
    %v2319 = vpop.xlane.xlu0 %2318
    %v2320 = vsel %vm2133, %v2131, -inf
    %2321 = vmax.xlane.f32.xlu0 %v2320
    %v2322 = vpop.xlane.xlu0 %2321
    %v2323 = vsel %vm2133, %v2132, -inf
    %2324 = vmax.xlane.f32.xlu0 %v2323
    %v2325 = vpop.xlane.xlu0 %2324
    %v2326 = vsub.f32 %v2069, %v2136
    %v2327 = vsub.f32 %v2070, %v2139
    %v2328 = vsub.f32 %v2071, %v2142
    %v2329 = vsub.f32 %v2072, %v2145
    %v2330 = vsub.f32 %v2073, %v2148
    %v2331 = vsub.f32 %v2074, %v2151
    %v2332 = vsub.f32 %v2075, %v2154
    %v2333 = vsub.f32 %v2076, %v2157
    %v2334 = vsub.f32 %v2077, %v2160
    %v2335 = vsub.f32 %v2078, %v2163
    %v2336 = vsub.f32 %v2079, %v2166
    %v2337 = vsub.f32 %v2080, %v2169
    %v2338 = vsub.f32 %v2081, %v2172
    %v2339 = vsub.f32 %v2082, %v2175
    %v2340 = vsub.f32 %v2083, %v2178
    %v2341 = vsub.f32 %v2084, %v2181
    %v2342 = vsub.f32 %v2085, %v2184
    %v2343 = vsub.f32 %v2086, %v2187
    %v2344 = vsub.f32 %v2087, %v2190
    %v2345 = vsub.f32 %v2088, %v2193
    %v2346 = vsub.f32 %v2089, %v2196
    %v2347 = vsub.f32 %v2090, %v2199
    %v2348 = vsub.f32 %v2091, %v2202
    %v2349 = vsub.f32 %v2092, %v2205
    %v2350 = vsub.f32 %v2093, %v2208
    %v2351 = vsub.f32 %v2094, %v2211
    %v2352 = vsub.f32 %v2095, %v2214
    %v2353 = vsub.f32 %v2096, %v2217
    %v2354 = vsub.f32 %v2097, %v2220
    %v2355 = vsub.f32 %v2098, %v2223
    %v2356 = vsub.f32 %v2099, %v2226
    %v2357 = vsub.f32 %v2100, %v2229
    %v2358 = vsub.f32 %v2101, %v2232
    %v2359 = vsub.f32 %v2102, %v2235
    %v2360 = vsub.f32 %v2103, %v2238
    %v2361 = vsub.f32 %v2104, %v2241
    %v2362 = vsub.f32 %v2105, %v2244
    %v2363 = vsub.f32 %v2106, %v2247
    %v2364 = vsub.f32 %v2107, %v2250
    %v2365 = vsub.f32 %v2108, %v2253
    %v2366 = vsub.f32 %v2109, %v2256
    %v2367 = vsub.f32 %v2110, %v2259
    %v2368 = vsub.f32 %v2111, %v2262
    %v2369 = vsub.f32 %v2112, %v2265
    %v2370 = vsub.f32 %v2113, %v2268
    %v2371 = vsub.f32 %v2114, %v2271
    %v2372 = vsub.f32 %v2115, %v2274
    %v2373 = vsub.f32 %v2116, %v2277
    %v2374 = vsub.f32 %v2117, %v2280
    %v2375 = vsub.f32 %v2118, %v2283
    %v2376 = vsub.f32 %v2119, %v2286
    %v2377 = vsub.f32 %v2120, %v2289
    %v2378 = vsub.f32 %v2121, %v2292
    %v2379 = vsub.f32 %v2122, %v2295
    %v2380 = vsub.f32 %v2123, %v2298
    %v2381 = vsub.f32 %v2124, %v2301
    %v2382 = vsub.f32 %v2125, %v2304
    %v2383 = vsub.f32 %v2126, %v2307
    %v2384 = vsub.f32 %v2127, %v2310
    %v2385 = vsub.f32 %v2128, %v2313
    %v2386 = vsub.f32 %v2129, %v2316
    %v2387 = vsub.f32 %v2130, %v2319
    %v2388 = vsub.f32 %v2131, %v2322
    %v2389 = vsub.f32 %v2132, %v2325
    %v2390 = vmul.f32 %v2326, 1.442695
    %v2391 = vpow.pop %v2390
    %v2392 = vmul.f32 %v2327, 1.442695
    %v2393 = vpow.pop %v2392
    %v2394 = vmul.f32 %v2328, 1.442695
    %v2395 = vpow.pop %v2394
    %v2396 = vmul.f32 %v2329, 1.442695
    %v2397 = vpow.pop %v2396
    %v2398 = vmul.f32 %v2330, 1.442695
    %v2399 = vpow.pop %v2398
    %v2400 = vmul.f32 %v2331, 1.442695
    %v2401 = vpow.pop %v2400
    %v2402 = vmul.f32 %v2332, 1.442695
    %v2403 = vpow.pop %v2402
    %v2404 = vmul.f32 %v2333, 1.442695
    %v2405 = vpow.pop %v2404
    %v2406 = vmul.f32 %v2334, 1.442695
    %v2407 = vpow.pop %v2406
    %v2408 = vmul.f32 %v2335, 1.442695
    %v2409 = vpow.pop %v2408
    %v2410 = vmul.f32 %v2336, 1.442695
    %v2411 = vpow.pop %v2410
    %v2412 = vmul.f32 %v2337, 1.442695
    %v2413 = vpow.pop %v2412
    %v2414 = vmul.f32 %v2338, 1.442695
    %v2415 = vpow.pop %v2414
    %v2416 = vmul.f32 %v2339, 1.442695
    %v2417 = vpow.pop %v2416
    %v2418 = vmul.f32 %v2340, 1.442695
    %v2419 = vpow.pop %v2418
    %v2420 = vmul.f32 %v2341, 1.442695
    %v2421 = vpow.pop %v2420
    %v2422 = vmul.f32 %v2342, 1.442695
    %v2423 = vpow.pop %v2422
    %v2424 = vmul.f32 %v2343, 1.442695
    %v2425 = vpow.pop %v2424
    %v2426 = vmul.f32 %v2344, 1.442695
    %v2427 = vpow.pop %v2426
    %v2428 = vmul.f32 %v2345, 1.442695
    %v2429 = vpow.pop %v2428
    %v2430 = vmul.f32 %v2346, 1.442695
    %v2431 = vpow.pop %v2430
    %v2432 = vmul.f32 %v2347, 1.442695
    %v2433 = vpow.pop %v2432
    %v2434 = vmul.f32 %v2348, 1.442695
    %v2435 = vpow.pop %v2434
    %v2436 = vmul.f32 %v2349, 1.442695
    %v2437 = vpow.pop %v2436
    %v2438 = vmul.f32 %v2350, 1.442695
    %v2439 = vpow.pop %v2438
    %v2440 = vmul.f32 %v2351, 1.442695
    %v2441 = vpow.pop %v2440
    %v2442 = vmul.f32 %v2352, 1.442695
    %v2443 = vpow.pop %v2442
    %v2444 = vmul.f32 %v2353, 1.442695
    %v2445 = vpow.pop %v2444
    %v2446 = vmul.f32 %v2354, 1.442695
    %v2447 = vpow.pop %v2446
    %v2448 = vmul.f32 %v2355, 1.442695
    %v2449 = vpow.pop %v2448
    %v2450 = vmul.f32 %v2356, 1.442695
    %v2451 = vpow.pop %v2450
    %v2452 = vmul.f32 %v2357, 1.442695
    %v2453 = vpow.pop %v2452
    %v2454 = vmul.f32 %v2358, 1.442695
    %v2455 = vpow.pop %v2454
    %v2456 = vmul.f32 %v2359, 1.442695
    %v2457 = vpow.pop %v2456
    %v2458 = vmul.f32 %v2360, 1.442695
    %v2459 = vpow.pop %v2458
    %v2460 = vmul.f32 %v2361, 1.442695
    %v2461 = vpow.pop %v2460
    %v2462 = vmul.f32 %v2362, 1.442695
    %v2463 = vpow.pop %v2462
    %v2464 = vmul.f32 %v2363, 1.442695
    %v2465 = vpow.pop %v2464
    %v2466 = vmul.f32 %v2364, 1.442695
    %v2467 = vpow.pop %v2466
    %v2468 = vmul.f32 %v2365, 1.442695
    %v2469 = vpow.pop %v2468
    %v2470 = vmul.f32 %v2366, 1.442695
    %v2471 = vpow.pop %v2470
    %v2472 = vmul.f32 %v2367, 1.442695
    %v2473 = vpow.pop %v2472
    %v2474 = vmul.f32 %v2368, 1.442695
    %v2475 = vpow.pop %v2474
    %v2476 = vmul.f32 %v2369, 1.442695
    %v2477 = vpow.pop %v2476
    %v2478 = vmul.f32 %v2370, 1.442695
    %v2479 = vpow.pop %v2478
    %v2480 = vmul.f32 %v2371, 1.442695
    %v2481 = vpow.pop %v2480
    %v2482 = vmul.f32 %v2372, 1.442695
    %v2483 = vpow.pop %v2482
    %v2484 = vmul.f32 %v2373, 1.442695
    %v2485 = vpow.pop %v2484
    %v2486 = vmul.f32 %v2374, 1.442695
    %v2487 = vpow.pop %v2486
    %v2488 = vmul.f32 %v2375, 1.442695
    %v2489 = vpow.pop %v2488
    %v2490 = vmul.f32 %v2376, 1.442695
    %v2491 = vpow.pop %v2490
    %v2492 = vmul.f32 %v2377, 1.442695
    %v2493 = vpow.pop %v2492
    %v2494 = vmul.f32 %v2378, 1.442695
    %v2495 = vpow.pop %v2494
    %v2496 = vmul.f32 %v2379, 1.442695
    %v2497 = vpow.pop %v2496
    %v2498 = vmul.f32 %v2380, 1.442695
    %v2499 = vpow.pop %v2498
    %v2500 = vmul.f32 %v2381, 1.442695
    %v2501 = vpow.pop %v2500
    %v2502 = vmul.f32 %v2382, 1.442695
    %v2503 = vpow.pop %v2502
    %v2504 = vmul.f32 %v2383, 1.442695
    %v2505 = vpow.pop %v2504
    %v2506 = vmul.f32 %v2384, 1.442695
    %v2507 = vpow.pop %v2506
    %v2508 = vmul.f32 %v2385, 1.442695
    %v2509 = vpow.pop %v2508
    %v2510 = vmul.f32 %v2386, 1.442695
    %v2511 = vpow.pop %v2510
    %v2512 = vmul.f32 %v2387, 1.442695
    %v2513 = vpow.pop %v2512
    %v2514 = vmul.f32 %v2388, 1.442695
    %v2515 = vpow.pop %v2514
    %v2516 = vmul.f32 %v2389, 1.442695
    %v2517 = vpow.pop %v2516
    %v2518 = vsel %vm2133, %v2391, 0.0
    %2519 = vadd.xlane.f32.xlu0 %v2518
    %v2520 = vpop.xlane.xlu0 %2519
    %v2521 = vsel %vm2133, %v2393, 0.0
    %2522 = vadd.xlane.f32.xlu0 %v2521
    %v2523 = vpop.xlane.xlu0 %2522
    %v2524 = vsel %vm2133, %v2395, 0.0
    %2525 = vadd.xlane.f32.xlu0 %v2524
    %v2526 = vpop.xlane.xlu0 %2525
    %v2527 = vsel %vm2133, %v2397, 0.0
    %2528 = vadd.xlane.f32.xlu0 %v2527
    %v2529 = vpop.xlane.xlu0 %2528
    %v2530 = vsel %vm2133, %v2399, 0.0
    %2531 = vadd.xlane.f32.xlu0 %v2530
    %v2532 = vpop.xlane.xlu0 %2531
    %v2533 = vsel %vm2133, %v2401, 0.0
    %2534 = vadd.xlane.f32.xlu0 %v2533
    %v2535 = vpop.xlane.xlu0 %2534
    %v2536 = vsel %vm2133, %v2403, 0.0
    %2537 = vadd.xlane.f32.xlu0 %v2536
    %v2538 = vpop.xlane.xlu0 %2537
    %v2539 = vsel %vm2133, %v2405, 0.0
    %2540 = vadd.xlane.f32.xlu0 %v2539
    %v2541 = vpop.xlane.xlu0 %2540
    %v2542 = vsel %vm2133, %v2407, 0.0
    %2543 = vadd.xlane.f32.xlu0 %v2542
    %v2544 = vpop.xlane.xlu0 %2543
    %v2545 = vsel %vm2133, %v2409, 0.0
    %2546 = vadd.xlane.f32.xlu0 %v2545
    %v2547 = vpop.xlane.xlu0 %2546
    %v2548 = vsel %vm2133, %v2411, 0.0
    %2549 = vadd.xlane.f32.xlu0 %v2548
    %v2550 = vpop.xlane.xlu0 %2549
    %v2551 = vsel %vm2133, %v2413, 0.0
    %2552 = vadd.xlane.f32.xlu0 %v2551
    %v2553 = vpop.xlane.xlu0 %2552
    %v2554 = vsel %vm2133, %v2415, 0.0
    %2555 = vadd.xlane.f32.xlu0 %v2554
    %v2556 = vpop.xlane.xlu0 %2555
    %v2557 = vsel %vm2133, %v2417, 0.0
    %2558 = vadd.xlane.f32.xlu0 %v2557
    %v2559 = vpop.xlane.xlu0 %2558
    %v2560 = vsel %vm2133, %v2419, 0.0
    %2561 = vadd.xlane.f32.xlu0 %v2560
    %v2562 = vpop.xlane.xlu0 %2561
    %v2563 = vsel %vm2133, %v2421, 0.0
    %2564 = vadd.xlane.f32.xlu0 %v2563
    %v2565 = vpop.xlane.xlu0 %2564
    %v2566 = vsel %vm2133, %v2423, 0.0
    %2567 = vadd.xlane.f32.xlu0 %v2566
    %v2568 = vpop.xlane.xlu0 %2567
    %v2569 = vsel %vm2133, %v2425, 0.0
    %2570 = vadd.xlane.f32.xlu0 %v2569
    %v2571 = vpop.xlane.xlu0 %2570
    %v2572 = vsel %vm2133, %v2427, 0.0
    %2573 = vadd.xlane.f32.xlu0 %v2572
    %v2574 = vpop.xlane.xlu0 %2573
    %v2575 = vsel %vm2133, %v2429, 0.0
    %2576 = vadd.xlane.f32.xlu0 %v2575
    %v2577 = vpop.xlane.xlu0 %2576
    %v2578 = vsel %vm2133, %v2431, 0.0
    %2579 = vadd.xlane.f32.xlu0 %v2578
    %v2580 = vpop.xlane.xlu0 %2579
    %v2581 = vsel %vm2133, %v2433, 0.0
    %2582 = vadd.xlane.f32.xlu0 %v2581
    %v2583 = vpop.xlane.xlu0 %2582
    %v2584 = vsel %vm2133, %v2435, 0.0
    %2585 = vadd.xlane.f32.xlu0 %v2584
    %v2586 = vpop.xlane.xlu0 %2585
    %v2587 = vsel %vm2133, %v2437, 0.0
    %2588 = vadd.xlane.f32.xlu0 %v2587
    %v2589 = vpop.xlane.xlu0 %2588
    %v2590 = vsel %vm2133, %v2439, 0.0
    %2591 = vadd.xlane.f32.xlu0 %v2590
    %v2592 = vpop.xlane.xlu0 %2591
    %v2593 = vsel %vm2133, %v2441, 0.0
    %2594 = vadd.xlane.f32.xlu0 %v2593
    %v2595 = vpop.xlane.xlu0 %2594
    %v2596 = vsel %vm2133, %v2443, 0.0
    %2597 = vadd.xlane.f32.xlu0 %v2596
    %v2598 = vpop.xlane.xlu0 %2597
    %v2599 = vsel %vm2133, %v2445, 0.0
    %2600 = vadd.xlane.f32.xlu0 %v2599
    %v2601 = vpop.xlane.xlu0 %2600
    %v2602 = vsel %vm2133, %v2447, 0.0
    %2603 = vadd.xlane.f32.xlu0 %v2602
    %v2604 = vpop.xlane.xlu0 %2603
    %v2605 = vsel %vm2133, %v2449, 0.0
    %2606 = vadd.xlane.f32.xlu0 %v2605
    %v2607 = vpop.xlane.xlu0 %2606
    %v2608 = vsel %vm2133, %v2451, 0.0
    %2609 = vadd.xlane.f32.xlu0 %v2608
    %v2610 = vpop.xlane.xlu0 %2609
    %v2611 = vsel %vm2133, %v2453, 0.0
    %2612 = vadd.xlane.f32.xlu0 %v2611
    %v2613 = vpop.xlane.xlu0 %2612
    %v2614 = vsel %vm2133, %v2455, 0.0
    %2615 = vadd.xlane.f32.xlu0 %v2614
    %v2616 = vpop.xlane.xlu0 %2615
    %v2617 = vsel %vm2133, %v2457, 0.0
    %2618 = vadd.xlane.f32.xlu0 %v2617
    %v2619 = vpop.xlane.xlu0 %2618
    %v2620 = vsel %vm2133, %v2459, 0.0
    %2621 = vadd.xlane.f32.xlu0 %v2620
    %v2622 = vpop.xlane.xlu0 %2621
    %v2623 = vsel %vm2133, %v2461, 0.0
    %2624 = vadd.xlane.f32.xlu0 %v2623
    %v2625 = vpop.xlane.xlu0 %2624
    %v2626 = vsel %vm2133, %v2463, 0.0
    %2627 = vadd.xlane.f32.xlu0 %v2626
    %v2628 = vpop.xlane.xlu0 %2627
    %v2629 = vsel %vm2133, %v2465, 0.0
    %2630 = vadd.xlane.f32.xlu0 %v2629
    %v2631 = vpop.xlane.xlu0 %2630
    %v2632 = vsel %vm2133, %v2467, 0.0
    %2633 = vadd.xlane.f32.xlu0 %v2632
    %v2634 = vpop.xlane.xlu0 %2633
    %v2635 = vsel %vm2133, %v2469, 0.0
    %2636 = vadd.xlane.f32.xlu0 %v2635
    %v2637 = vpop.xlane.xlu0 %2636
    %v2638 = vsel %vm2133, %v2471, 0.0
    %2639 = vadd.xlane.f32.xlu0 %v2638
    %v2640 = vpop.xlane.xlu0 %2639
    %v2641 = vsel %vm2133, %v2473, 0.0
    %2642 = vadd.xlane.f32.xlu0 %v2641
    %v2643 = vpop.xlane.xlu0 %2642
    %v2644 = vsel %vm2133, %v2475, 0.0
    %2645 = vadd.xlane.f32.xlu0 %v2644
    %v2646 = vpop.xlane.xlu0 %2645
    %v2647 = vsel %vm2133, %v2477, 0.0
    %2648 = vadd.xlane.f32.xlu0 %v2647
    %v2649 = vpop.xlane.xlu0 %2648
    %v2650 = vsel %vm2133, %v2479, 0.0
    %2651 = vadd.xlane.f32.xlu0 %v2650
    %v2652 = vpop.xlane.xlu0 %2651
    %v2653 = vsel %vm2133, %v2481, 0.0
    %2654 = vadd.xlane.f32.xlu0 %v2653
    %v2655 = vpop.xlane.xlu0 %2654
    %v2656 = vsel %vm2133, %v2483, 0.0
    %2657 = vadd.xlane.f32.xlu0 %v2656
    %v2658 = vpop.xlane.xlu0 %2657
    %v2659 = vsel %vm2133, %v2485, 0.0
    %2660 = vadd.xlane.f32.xlu0 %v2659
    %v2661 = vpop.xlane.xlu0 %2660
    %v2662 = vsel %vm2133, %v2487, 0.0
    %2663 = vadd.xlane.f32.xlu0 %v2662
    %v2664 = vpop.xlane.xlu0 %2663
    %v2665 = vsel %vm2133, %v2489, 0.0
    %2666 = vadd.xlane.f32.xlu0 %v2665
    %v2667 = vpop.xlane.xlu0 %2666
    %v2668 = vsel %vm2133, %v2491, 0.0
    %2669 = vadd.xlane.f32.xlu0 %v2668
    %v2670 = vpop.xlane.xlu0 %2669
    %v2671 = vsel %vm2133, %v2493, 0.0
    %2672 = vadd.xlane.f32.xlu0 %v2671
    %v2673 = vpop.xlane.xlu0 %2672
    %v2674 = vsel %vm2133, %v2495, 0.0
    %2675 = vadd.xlane.f32.xlu0 %v2674
    %v2676 = vpop.xlane.xlu0 %2675
    %v2677 = vsel %vm2133, %v2497, 0.0
    %2678 = vadd.xlane.f32.xlu0 %v2677
    %v2679 = vpop.xlane.xlu0 %2678
    %v2680 = vsel %vm2133, %v2499, 0.0
    %2681 = vadd.xlane.f32.xlu0 %v2680
    %v2682 = vpop.xlane.xlu0 %2681
    %v2683 = vsel %vm2133, %v2501, 0.0
    %2684 = vadd.xlane.f32.xlu0 %v2683
    %v2685 = vpop.xlane.xlu0 %2684
    %v2686 = vsel %vm2133, %v2503, 0.0
    %2687 = vadd.xlane.f32.xlu0 %v2686
    %v2688 = vpop.xlane.xlu0 %2687
    %v2689 = vsel %vm2133, %v2505, 0.0
    %2690 = vadd.xlane.f32.xlu0 %v2689
    %v2691 = vpop.xlane.xlu0 %2690
    %v2692 = vsel %vm2133, %v2507, 0.0
    %2693 = vadd.xlane.f32.xlu0 %v2692
    %v2694 = vpop.xlane.xlu0 %2693
    %v2695 = vsel %vm2133, %v2509, 0.0
    %2696 = vadd.xlane.f32.xlu0 %v2695
    %v2697 = vpop.xlane.xlu0 %2696
    %v2698 = vsel %vm2133, %v2511, 0.0
    %2699 = vadd.xlane.f32.xlu0 %v2698
    %v2700 = vpop.xlane.xlu0 %2699
    %v2701 = vsel %vm2133, %v2513, 0.0
    %2702 = vadd.xlane.f32.xlu0 %v2701
    %v2703 = vpop.xlane.xlu0 %2702
    %v2704 = vsel %vm2133, %v2515, 0.0
    %2705 = vadd.xlane.f32.xlu0 %v2704
    %v2706 = vpop.xlane.xlu0 %2705
    %v2707 = vsel %vm2133, %v2517, 0.0
    %2708 = vadd.xlane.f32.xlu0 %v2707
    %v2709 = vpop.xlane.xlu0 %2708
    %v2710 = vrcp.pop %v2520
    %v2711 = vmul.f32 %v2391, %v2710
    %v2712 = vrcp.pop %v2523
    %v2713 = vmul.f32 %v2393, %v2712
    %v2714 = vrcp.pop %v2526
    %v2715 = vmul.f32 %v2395, %v2714
    %v2716 = vrcp.pop %v2529
    %v2717 = vmul.f32 %v2397, %v2716
    %v2718 = vrcp.pop %v2532
    %v2719 = vmul.f32 %v2399, %v2718
    %v2720 = vrcp.pop %v2535
    %v2721 = vmul.f32 %v2401, %v2720
    %v2722 = vrcp.pop %v2538
    %v2723 = vmul.f32 %v2403, %v2722
    %v2724 = vrcp.pop %v2541
    %v2725 = vmul.f32 %v2405, %v2724
    %v2726 = vrcp.pop %v2544
    %v2727 = vmul.f32 %v2407, %v2726
    %v2728 = vrcp.pop %v2547
    %v2729 = vmul.f32 %v2409, %v2728
    %v2730 = vrcp.pop %v2550
    %v2731 = vmul.f32 %v2411, %v2730
    %v2732 = vrcp.pop %v2553
    %v2733 = vmul.f32 %v2413, %v2732
    %v2734 = vrcp.pop %v2556
    %v2735 = vmul.f32 %v2415, %v2734
    %v2736 = vrcp.pop %v2559
    %v2737 = vmul.f32 %v2417, %v2736
    %v2738 = vrcp.pop %v2562
    %v2739 = vmul.f32 %v2419, %v2738
    %v2740 = vrcp.pop %v2565
    %v2741 = vmul.f32 %v2421, %v2740
    %v2742 = vrcp.pop %v2568
    %v2743 = vmul.f32 %v2423, %v2742
    %v2744 = vrcp.pop %v2571
    %v2745 = vmul.f32 %v2425, %v2744
    %v2746 = vrcp.pop %v2574
    %v2747 = vmul.f32 %v2427, %v2746
    %v2748 = vrcp.pop %v2577
    %v2749 = vmul.f32 %v2429, %v2748
    %v2750 = vrcp.pop %v2580
    %v2751 = vmul.f32 %v2431, %v2750
    %v2752 = vrcp.pop %v2583
    %v2753 = vmul.f32 %v2433, %v2752
    %v2754 = vrcp.pop %v2586
    %v2755 = vmul.f32 %v2435, %v2754
    %v2756 = vrcp.pop %v2589
    %v2757 = vmul.f32 %v2437, %v2756
    %v2758 = vrcp.pop %v2592
    %v2759 = vmul.f32 %v2439, %v2758
    %v2760 = vrcp.pop %v2595
    %v2761 = vmul.f32 %v2441, %v2760
    %v2762 = vrcp.pop %v2598
    %v2763 = vmul.f32 %v2443, %v2762
    %v2764 = vrcp.pop %v2601
    %v2765 = vmul.f32 %v2445, %v2764
    %v2766 = vrcp.pop %v2604
    %v2767 = vmul.f32 %v2447, %v2766
    %v2768 = vrcp.pop %v2607
    %v2769 = vmul.f32 %v2449, %v2768
    %v2770 = vrcp.pop %v2610
    %v2771 = vmul.f32 %v2451, %v2770
    %v2772 = vrcp.pop %v2613
    %v2773 = vmul.f32 %v2453, %v2772
    %v2774 = vrcp.pop %v2616
    %v2775 = vmul.f32 %v2455, %v2774
    %v2776 = vrcp.pop %v2619
    %v2777 = vmul.f32 %v2457, %v2776
    %v2778 = vrcp.pop %v2622
    %v2779 = vmul.f32 %v2459, %v2778
    %v2780 = vrcp.pop %v2625
    %v2781 = vmul.f32 %v2461, %v2780
    %v2782 = vrcp.pop %v2628
    %v2783 = vmul.f32 %v2463, %v2782
    %v2784 = vrcp.pop %v2631
    %v2785 = vmul.f32 %v2465, %v2784
    %v2786 = vrcp.pop %v2634
    %v2787 = vmul.f32 %v2467, %v2786
    %v2788 = vrcp.pop %v2637
    %v2789 = vmul.f32 %v2469, %v2788
    %v2790 = vrcp.pop %v2640
    %v2791 = vmul.f32 %v2471, %v2790
    %v2792 = vrcp.pop %v2643
    %v2793 = vmul.f32 %v2473, %v2792
    %v2794 = vrcp.pop %v2646
    %v2795 = vmul.f32 %v2475, %v2794
    %v2796 = vrcp.pop %v2649
    %v2797 = vmul.f32 %v2477, %v2796
    %v2798 = vrcp.pop %v2652
    %v2799 = vmul.f32 %v2479, %v2798
    %v2800 = vrcp.pop %v2655
    %v2801 = vmul.f32 %v2481, %v2800
    %v2802 = vrcp.pop %v2658
    %v2803 = vmul.f32 %v2483, %v2802
    %v2804 = vrcp.pop %v2661
    %v2805 = vmul.f32 %v2485, %v2804
    %v2806 = vrcp.pop %v2664
    %v2807 = vmul.f32 %v2487, %v2806
    %v2808 = vrcp.pop %v2667
    %v2809 = vmul.f32 %v2489, %v2808
    %v2810 = vrcp.pop %v2670
    %v2811 = vmul.f32 %v2491, %v2810
    %v2812 = vrcp.pop %v2673
    %v2813 = vmul.f32 %v2493, %v2812
    %v2814 = vrcp.pop %v2676
    %v2815 = vmul.f32 %v2495, %v2814
    %v2816 = vrcp.pop %v2679
    %v2817 = vmul.f32 %v2497, %v2816
    %v2818 = vrcp.pop %v2682
    %v2819 = vmul.f32 %v2499, %v2818
    %v2820 = vrcp.pop %v2685
    %v2821 = vmul.f32 %v2501, %v2820
    %v2822 = vrcp.pop %v2688
    %v2823 = vmul.f32 %v2503, %v2822
    %v2824 = vrcp.pop %v2691
    %v2825 = vmul.f32 %v2505, %v2824
    %v2826 = vrcp.pop %v2694
    %v2827 = vmul.f32 %v2507, %v2826
    %v2828 = vrcp.pop %v2697
    %v2829 = vmul.f32 %v2509, %v2828
    %v2830 = vrcp.pop %v2700
    %v2831 = vmul.f32 %v2511, %v2830
    %v2832 = vrcp.pop %v2703
    %v2833 = vmul.f32 %v2513, %v2832
    %v2834 = vrcp.pop %v2706
    %v2835 = vmul.f32 %v2515, %v2834
    %v2836 = vrcp.pop %v2709
    %v2837 = vmul.f32 %v2517, %v2836
    %v2838 = vpack.c.bf16 %v2713, %v2711
    %v2839 = vpack.c.bf16 %v2717, %v2715
    %v2840 = vpack.c.bf16 %v2721, %v2719
    %v2841 = vpack.c.bf16 %v2725, %v2723
    %v2842 = vpack.c.bf16 %v2729, %v2727
    %v2843 = vpack.c.bf16 %v2733, %v2731
    %v2844 = vpack.c.bf16 %v2737, %v2735
    %v2845 = vpack.c.bf16 %v2741, %v2739
    %v2846 = vpack.c.bf16 %v2745, %v2743
    %v2847 = vpack.c.bf16 %v2749, %v2747
    %v2848 = vpack.c.bf16 %v2753, %v2751
    %v2849 = vpack.c.bf16 %v2757, %v2755
    %v2850 = vpack.c.bf16 %v2761, %v2759
    %v2851 = vpack.c.bf16 %v2765, %v2763
    %v2852 = vpack.c.bf16 %v2769, %v2767
    %v2853 = vpack.c.bf16 %v2773, %v2771
    %v2854 = vpack.c.bf16 %v2777, %v2775
    %v2855 = vpack.c.bf16 %v2781, %v2779
    %v2856 = vpack.c.bf16 %v2785, %v2783
    %v2857 = vpack.c.bf16 %v2789, %v2787
    %v2858 = vpack.c.bf16 %v2793, %v2791
    %v2859 = vpack.c.bf16 %v2797, %v2795
    %v2860 = vpack.c.bf16 %v2801, %v2799
    %v2861 = vpack.c.bf16 %v2805, %v2803
    %v2862 = vpack.c.bf16 %v2809, %v2807
    %v2863 = vpack.c.bf16 %v2813, %v2811
    %v2864 = vpack.c.bf16 %v2817, %v2815
    %v2865 = vpack.c.bf16 %v2821, %v2819
    %v2866 = vpack.c.bf16 %v2825, %v2823
    %v2867 = vpack.c.bf16 %v2829, %v2827
    %v2868 = vpack.c.bf16 %v2833, %v2831
    %v2869 = vpack.c.bf16 %v2837, %v2835
    %2870 = vrot.lane.b32.xlu0 %v364, 96
    %v2871 = vpop.permute.xlu0 %2870
    %v2874 = vsel %vm2133, %v2838, 0
    %2876 = vmatprep.subr.bf16.mxu0 0
    %2877 = vmatpush1.bf16.msra.mxu0 0
    %2878 = vmatprep.subr.bf16.mxu0 0
    %2879 = vmatpush1.bf16.msra.mxu0 0
    %2880 = vmatprep.subr.bf16.mxu0 0
    %2881 = vmatpush1.bf16.msra.mxu0 0
    %2882 = vmatprep.subr.bf16.mxu0 0
    %2883 = vmatpush1.bf16.msra.mxu0 0
    %2884 = vmatprep.subr.bf16.mxu0 0
    %2885 = vmatpush1.bf16.msra.mxu0 0
    %2886 = vmatprep.subr.bf16.mxu0 0
    %2887 = vmatpush1.bf16.msra.mxu0 0
    %2888 = vmatprep.subr.bf16.mxu0 0
    %2889 = vmatpush1.bf16.msra.mxu0 0
    %2890 = vmatprep.subr.bf16.mxu0 0
    %2891 = vmatpush1.bf16.msra.mxu0 %v2871
    %2892 = vmatprep.subr.bf16.mxu0 0
    %2893 = vmatpush2.bf16.msra.mxu0 0
    %2894 = vmatprep.subr.bf16.mxu0 0
    %2895 = vmatpush2.bf16.msra.mxu0 0
    %2896 = vmatprep.subr.bf16.mxu0 0
    %2897 = vmatpush2.bf16.msra.mxu0 0
    %2898 = vmatprep.subr.bf16.mxu0 0
    %2899 = vmatpush2.bf16.msra.mxu0 0
    %2900 = vmatprep.subr.bf16.mxu0 0
    %2901 = vmatpush2.bf16.msra.mxu0 0
    %2902 = vmatprep.subr.bf16.mxu0 0
    %2903 = vmatpush2.bf16.msra.mxu0 0
    %2904 = vmatprep.subr.bf16.mxu0 0
    %2905 = vmatpush2.bf16.msra.mxu0 0
    %2906 = vmatprep.subr.bf16.mxu0 0
    %2907 = vmatpush2.bf16.msra.mxu0 0
    %2908 = vmatprep.mubr.bf16.mxu0 0
    %2909 = vmatmul.mubr.bf16.gmra.mxu0 %v2874
    %v2910 = vpop.f32.mrf.mxu0
    %v2911 = vadd.f32 0.0, %v2910
    %v2912 = vpop.f32.mrf.mxu0
    %v2913 = vpop.f32.mrf.mxu0
    %v2914 = vadd.f32 0.0, %v2913
    %v2915 = vpop.f32.mrf.mxu0
    %2916 = vdwg.mxu0
    %2917 = vrot.lane.b32.xlu0 %v365, 96
    %v2918 = vpop.permute.xlu0 %2917
    %v2921 = vsel %vm2133, %v2839, 0
    %2923 = vmatprep.subr.bf16.mxu0 0
    %2924 = vmatpush1.bf16.msra.mxu0 0
    %2925 = vmatprep.subr.bf16.mxu0 0
    %2926 = vmatpush1.bf16.msra.mxu0 0
    %2927 = vmatprep.subr.bf16.mxu0 0
    %2928 = vmatpush1.bf16.msra.mxu0 0
    %2929 = vmatprep.subr.bf16.mxu0 0
    %2930 = vmatpush1.bf16.msra.mxu0 0
    %2931 = vmatprep.subr.bf16.mxu0 0
    %2932 = vmatpush1.bf16.msra.mxu0 0
    %2933 = vmatprep.subr.bf16.mxu0 0
    %2934 = vmatpush1.bf16.msra.mxu0 0
    %2935 = vmatprep.subr.bf16.mxu0 0
    %2936 = vmatpush1.bf16.msra.mxu0 0
    %2937 = vmatprep.subr.bf16.mxu0 0
    %2938 = vmatpush1.bf16.msra.mxu0 %v2918
    %2939 = vmatprep.subr.bf16.mxu0 0
    %2940 = vmatpush2.bf16.msra.mxu0 0
    %2941 = vmatprep.subr.bf16.mxu0 0
    %2942 = vmatpush2.bf16.msra.mxu0 0
    %2943 = vmatprep.subr.bf16.mxu0 0
    %2944 = vmatpush2.bf16.msra.mxu0 0
    %2945 = vmatprep.subr.bf16.mxu0 0
    %2946 = vmatpush2.bf16.msra.mxu0 0
    %2947 = vmatprep.subr.bf16.mxu0 0
    %2948 = vmatpush2.bf16.msra.mxu0 0
    %2949 = vmatprep.subr.bf16.mxu0 0
    %2950 = vmatpush2.bf16.msra.mxu0 0
    %2951 = vmatprep.subr.bf16.mxu0 0
    %2952 = vmatpush2.bf16.msra.mxu0 0
    %2953 = vmatprep.subr.bf16.mxu0 0
    %2954 = vmatpush2.bf16.msra.mxu0 0
    %2955 = vmatprep.mubr.bf16.mxu0 0
    %2956 = vmatmul.mubr.bf16.gmra.mxu0 %v2921
    %v2957 = vpop.f32.mrf.mxu0
    %v2958 = vadd.f32 0.0, %v2957
    %v2959 = vpop.f32.mrf.mxu0
    %v2960 = vpop.f32.mrf.mxu0
    %v2961 = vadd.f32 0.0, %v2960
    %v2962 = vpop.f32.mrf.mxu0
    %2963 = vdwg.mxu0
    %2964 = vrot.lane.b32.xlu0 %v366, 96
    %v2965 = vpop.permute.xlu0 %2964
    %v2968 = vsel %vm2133, %v2840, 0
    %2970 = vmatprep.subr.bf16.mxu0 0
    %2971 = vmatpush1.bf16.msra.mxu0 0
    %2972 = vmatprep.subr.bf16.mxu0 0
    %2973 = vmatpush1.bf16.msra.mxu0 0
    %2974 = vmatprep.subr.bf16.mxu0 0
    %2975 = vmatpush1.bf16.msra.mxu0 0
    %2976 = vmatprep.subr.bf16.mxu0 0
    %2977 = vmatpush1.bf16.msra.mxu0 0
    %2978 = vmatprep.subr.bf16.mxu0 0
    %2979 = vmatpush1.bf16.msra.mxu0 0
    %2980 = vmatprep.subr.bf16.mxu0 0
    %2981 = vmatpush1.bf16.msra.mxu0 0
    %2982 = vmatprep.subr.bf16.mxu0 0
    %2983 = vmatpush1.bf16.msra.mxu0 0
    %2984 = vmatprep.subr.bf16.mxu0 0
    %2985 = vmatpush1.bf16.msra.mxu0 %v2965
    %2986 = vmatprep.subr.bf16.mxu0 0
    %2987 = vmatpush2.bf16.msra.mxu0 0
    %2988 = vmatprep.subr.bf16.mxu0 0
    %2989 = vmatpush2.bf16.msra.mxu0 0
    %2990 = vmatprep.subr.bf16.mxu0 0
    %2991 = vmatpush2.bf16.msra.mxu0 0
    %2992 = vmatprep.subr.bf16.mxu0 0
    %2993 = vmatpush2.bf16.msra.mxu0 0
    %2994 = vmatprep.subr.bf16.mxu0 0
    %2995 = vmatpush2.bf16.msra.mxu0 0
    %2996 = vmatprep.subr.bf16.mxu0 0
    %2997 = vmatpush2.bf16.msra.mxu0 0
    %2998 = vmatprep.subr.bf16.mxu0 0
    %2999 = vmatpush2.bf16.msra.mxu0 0
    %3000 = vmatprep.subr.bf16.mxu0 0
    %3001 = vmatpush2.bf16.msra.mxu0 0
    %3002 = vmatprep.mubr.bf16.mxu0 0
    %3003 = vmatmul.mubr.bf16.gmra.mxu0 %v2968
    %v3004 = vpop.f32.mrf.mxu0
    %v3005 = vadd.f32 0.0, %v3004
    %v3006 = vpop.f32.mrf.mxu0
    %v3007 = vpop.f32.mrf.mxu0
    %v3008 = vadd.f32 0.0, %v3007
    %v3009 = vpop.f32.mrf.mxu0
    %3010 = vdwg.mxu0
    %3011 = vrot.lane.b32.xlu0 %v367, 96
    %v3012 = vpop.permute.xlu0 %3011
    %v3015 = vsel %vm2133, %v2841, 0
    %3017 = vmatprep.subr.bf16.mxu0 0
    %3018 = vmatpush1.bf16.msra.mxu0 0
    %3019 = vmatprep.subr.bf16.mxu0 0
    %3020 = vmatpush1.bf16.msra.mxu0 0
    %3021 = vmatprep.subr.bf16.mxu0 0
    %3022 = vmatpush1.bf16.msra.mxu0 0
    %3023 = vmatprep.subr.bf16.mxu0 0
    %3024 = vmatpush1.bf16.msra.mxu0 0
    %3025 = vmatprep.subr.bf16.mxu0 0
    %3026 = vmatpush1.bf16.msra.mxu0 0
    %3027 = vmatprep.subr.bf16.mxu0 0
    %3028 = vmatpush1.bf16.msra.mxu0 0
    %3029 = vmatprep.subr.bf16.mxu0 0
    %3030 = vmatpush1.bf16.msra.mxu0 0
    %3031 = vmatprep.subr.bf16.mxu0 0
    %3032 = vmatpush1.bf16.msra.mxu0 %v3012
    %3033 = vmatprep.subr.bf16.mxu0 0
    %3034 = vmatpush2.bf16.msra.mxu0 0
    %3035 = vmatprep.subr.bf16.mxu0 0
    %3036 = vmatpush2.bf16.msra.mxu0 0
    %3037 = vmatprep.subr.bf16.mxu0 0
    %3038 = vmatpush2.bf16.msra.mxu0 0
    %3039 = vmatprep.subr.bf16.mxu0 0
    %3040 = vmatpush2.bf16.msra.mxu0 0
    %3041 = vmatprep.subr.bf16.mxu0 0
    %3042 = vmatpush2.bf16.msra.mxu0 0
    %3043 = vmatprep.subr.bf16.mxu0 0
    %3044 = vmatpush2.bf16.msra.mxu0 0
    %3045 = vmatprep.subr.bf16.mxu0 0
    %3046 = vmatpush2.bf16.msra.mxu0 0
    %3047 = vmatprep.subr.bf16.mxu0 0
    %3048 = vmatpush2.bf16.msra.mxu0 0
    %3049 = vmatprep.mubr.bf16.mxu0 0
    %3050 = vmatmul.mubr.bf16.gmra.mxu0 %v3015
    %v3051 = vpop.f32.mrf.mxu0
    %v3052 = vadd.f32 0.0, %v3051
    %v3053 = vpop.f32.mrf.mxu0
    %v3054 = vpop.f32.mrf.mxu0
    %v3055 = vadd.f32 0.0, %v3054
    %v3056 = vpop.f32.mrf.mxu0
    %3057 = vdwg.mxu0
    %3058 = vrot.lane.b32.xlu0 %v368, 96
    %v3059 = vpop.permute.xlu0 %3058
    %v3062 = vsel %vm2133, %v2842, 0
    %3064 = vmatprep.subr.bf16.mxu0 0
    %3065 = vmatpush1.bf16.msra.mxu0 0
    %3066 = vmatprep.subr.bf16.mxu0 0
    %3067 = vmatpush1.bf16.msra.mxu0 0
    %3068 = vmatprep.subr.bf16.mxu0 0
    %3069 = vmatpush1.bf16.msra.mxu0 0
    %3070 = vmatprep.subr.bf16.mxu0 0
    %3071 = vmatpush1.bf16.msra.mxu0 0
    %3072 = vmatprep.subr.bf16.mxu0 0
    %3073 = vmatpush1.bf16.msra.mxu0 0
    %3074 = vmatprep.subr.bf16.mxu0 0
    %3075 = vmatpush1.bf16.msra.mxu0 0
    %3076 = vmatprep.subr.bf16.mxu0 0
    %3077 = vmatpush1.bf16.msra.mxu0 0
    %3078 = vmatprep.subr.bf16.mxu0 0
    %3079 = vmatpush1.bf16.msra.mxu0 %v3059
    %3080 = vmatprep.subr.bf16.mxu0 0
    %3081 = vmatpush2.bf16.msra.mxu0 0
    %3082 = vmatprep.subr.bf16.mxu0 0
    %3083 = vmatpush2.bf16.msra.mxu0 0
    %3084 = vmatprep.subr.bf16.mxu0 0
    %3085 = vmatpush2.bf16.msra.mxu0 0
    %3086 = vmatprep.subr.bf16.mxu0 0
    %3087 = vmatpush2.bf16.msra.mxu0 0
    %3088 = vmatprep.subr.bf16.mxu0 0
    %3089 = vmatpush2.bf16.msra.mxu0 0
    %3090 = vmatprep.subr.bf16.mxu0 0
    %3091 = vmatpush2.bf16.msra.mxu0 0
    %3092 = vmatprep.subr.bf16.mxu0 0
    %3093 = vmatpush2.bf16.msra.mxu0 0
    %3094 = vmatprep.subr.bf16.mxu0 0
    %3095 = vmatpush2.bf16.msra.mxu0 0
    %3096 = vmatprep.mubr.bf16.mxu0 0
    %3097 = vmatmul.mubr.bf16.gmra.mxu0 %v3062
    %v3098 = vpop.f32.mrf.mxu0
    %v3099 = vadd.f32 0.0, %v3098
    %v3100 = vpop.f32.mrf.mxu0
    %v3101 = vpop.f32.mrf.mxu0
    %v3102 = vadd.f32 0.0, %v3101
    %v3103 = vpop.f32.mrf.mxu0
    %3104 = vdwg.mxu0
    %3105 = vrot.lane.b32.xlu0 %v369, 96
    %v3106 = vpop.permute.xlu0 %3105
    %v3109 = vsel %vm2133, %v2843, 0
    %3111 = vmatprep.subr.bf16.mxu0 0
    %3112 = vmatpush1.bf16.msra.mxu0 0
    %3113 = vmatprep.subr.bf16.mxu0 0
    %3114 = vmatpush1.bf16.msra.mxu0 0
    %3115 = vmatprep.subr.bf16.mxu0 0
    %3116 = vmatpush1.bf16.msra.mxu0 0
    %3117 = vmatprep.subr.bf16.mxu0 0
    %3118 = vmatpush1.bf16.msra.mxu0 0
    %3119 = vmatprep.subr.bf16.mxu0 0
    %3120 = vmatpush1.bf16.msra.mxu0 0
    %3121 = vmatprep.subr.bf16.mxu0 0
    %3122 = vmatpush1.bf16.msra.mxu0 0
    %3123 = vmatprep.subr.bf16.mxu0 0
    %3124 = vmatpush1.bf16.msra.mxu0 0
    %3125 = vmatprep.subr.bf16.mxu0 0
    %3126 = vmatpush1.bf16.msra.mxu0 %v3106
    %3127 = vmatprep.subr.bf16.mxu0 0
    %3128 = vmatpush2.bf16.msra.mxu0 0
    %3129 = vmatprep.subr.bf16.mxu0 0
    %3130 = vmatpush2.bf16.msra.mxu0 0
    %3131 = vmatprep.subr.bf16.mxu0 0
    %3132 = vmatpush2.bf16.msra.mxu0 0
    %3133 = vmatprep.subr.bf16.mxu0 0
    %3134 = vmatpush2.bf16.msra.mxu0 0
    %3135 = vmatprep.subr.bf16.mxu0 0
    %3136 = vmatpush2.bf16.msra.mxu0 0
    %3137 = vmatprep.subr.bf16.mxu0 0
    %3138 = vmatpush2.bf16.msra.mxu0 0
    %3139 = vmatprep.subr.bf16.mxu0 0
    %3140 = vmatpush2.bf16.msra.mxu0 0
    %3141 = vmatprep.subr.bf16.mxu0 0
    %3142 = vmatpush2.bf16.msra.mxu0 0
    %3143 = vmatprep.mubr.bf16.mxu0 0
    %3144 = vmatmul.mubr.bf16.gmra.mxu0 %v3109
    %v3145 = vpop.f32.mrf.mxu0
    %v3146 = vadd.f32 0.0, %v3145
    %v3147 = vpop.f32.mrf.mxu0
    %v3148 = vpop.f32.mrf.mxu0
    %v3149 = vadd.f32 0.0, %v3148
    %v3150 = vpop.f32.mrf.mxu0
    %3151 = vdwg.mxu0
    %3152 = vrot.lane.b32.xlu0 %v370, 96
    %v3153 = vpop.permute.xlu0 %3152
    %v3156 = vsel %vm2133, %v2844, 0
    %3158 = vmatprep.subr.bf16.mxu0 0
    %3159 = vmatpush1.bf16.msra.mxu0 0
    %3160 = vmatprep.subr.bf16.mxu0 0
    %3161 = vmatpush1.bf16.msra.mxu0 0
    %3162 = vmatprep.subr.bf16.mxu0 0
    %3163 = vmatpush1.bf16.msra.mxu0 0
    %3164 = vmatprep.subr.bf16.mxu0 0
    %3165 = vmatpush1.bf16.msra.mxu0 0
    %3166 = vmatprep.subr.bf16.mxu0 0
    %3167 = vmatpush1.bf16.msra.mxu0 0
    %3168 = vmatprep.subr.bf16.mxu0 0
    %3169 = vmatpush1.bf16.msra.mxu0 0
    %3170 = vmatprep.subr.bf16.mxu0 0
    %3171 = vmatpush1.bf16.msra.mxu0 0
    %3172 = vmatprep.subr.bf16.mxu0 0
    %3173 = vmatpush1.bf16.msra.mxu0 %v3153
    %3174 = vmatprep.subr.bf16.mxu0 0
    %3175 = vmatpush2.bf16.msra.mxu0 0
    %3176 = vmatprep.subr.bf16.mxu0 0
    %3177 = vmatpush2.bf16.msra.mxu0 0
    %3178 = vmatprep.subr.bf16.mxu0 0
    %3179 = vmatpush2.bf16.msra.mxu0 0
    %3180 = vmatprep.subr.bf16.mxu0 0
    %3181 = vmatpush2.bf16.msra.mxu0 0
    %3182 = vmatprep.subr.bf16.mxu0 0
    %3183 = vmatpush2.bf16.msra.mxu0 0
    %3184 = vmatprep.subr.bf16.mxu0 0
    %3185 = vmatpush2.bf16.msra.mxu0 0
    %3186 = vmatprep.subr.bf16.mxu0 0
    %3187 = vmatpush2.bf16.msra.mxu0 0
    %3188 = vmatprep.subr.bf16.mxu0 0
    %3189 = vmatpush2.bf16.msra.mxu0 0
    %3190 = vmatprep.mubr.bf16.mxu0 0
    %3191 = vmatmul.mubr.bf16.gmra.mxu0 %v3156
    %v3192 = vpop.f32.mrf.mxu0
    %v3193 = vadd.f32 0.0, %v3192
    %v3194 = vpop.f32.mrf.mxu0
    %v3195 = vpop.f32.mrf.mxu0
    %v3196 = vadd.f32 0.0, %v3195
    %v3197 = vpop.f32.mrf.mxu0
    %3198 = vdwg.mxu0
    %3199 = vrot.lane.b32.xlu0 %v371, 96
    %v3200 = vpop.permute.xlu0 %3199
    %v3203 = vsel %vm2133, %v2845, 0
    %3205 = vmatprep.subr.bf16.mxu0 0
    %3206 = vmatpush1.bf16.msra.mxu0 0
    %3207 = vmatprep.subr.bf16.mxu0 0
    %3208 = vmatpush1.bf16.msra.mxu0 0
    %3209 = vmatprep.subr.bf16.mxu0 0
    %3210 = vmatpush1.bf16.msra.mxu0 0
    %3211 = vmatprep.subr.bf16.mxu0 0
    %3212 = vmatpush1.bf16.msra.mxu0 0
    %3213 = vmatprep.subr.bf16.mxu0 0
    %3214 = vmatpush1.bf16.msra.mxu0 0
    %3215 = vmatprep.subr.bf16.mxu0 0
    %3216 = vmatpush1.bf16.msra.mxu0 0
    %3217 = vmatprep.subr.bf16.mxu0 0
    %3218 = vmatpush1.bf16.msra.mxu0 0
    %3219 = vmatprep.subr.bf16.mxu0 0
    %3220 = vmatpush1.bf16.msra.mxu0 %v3200
    %3221 = vmatprep.subr.bf16.mxu0 0
    %3222 = vmatpush2.bf16.msra.mxu0 0
    %3223 = vmatprep.subr.bf16.mxu0 0
    %3224 = vmatpush2.bf16.msra.mxu0 0
    %3225 = vmatprep.subr.bf16.mxu0 0
    %3226 = vmatpush2.bf16.msra.mxu0 0
    %3227 = vmatprep.subr.bf16.mxu0 0
    %3228 = vmatpush2.bf16.msra.mxu0 0
    %3229 = vmatprep.subr.bf16.mxu0 0
    %3230 = vmatpush2.bf16.msra.mxu0 0
    %3231 = vmatprep.subr.bf16.mxu0 0
    %3232 = vmatpush2.bf16.msra.mxu0 0
    %3233 = vmatprep.subr.bf16.mxu0 0
    %3234 = vmatpush2.bf16.msra.mxu0 0
    %3235 = vmatprep.subr.bf16.mxu0 0
    %3236 = vmatpush2.bf16.msra.mxu0 0
    %3237 = vmatprep.mubr.bf16.mxu0 0
    %3238 = vmatmul.mubr.bf16.gmra.mxu0 %v3203
    %v3239 = vpop.f32.mrf.mxu0
    %v3240 = vadd.f32 0.0, %v3239
    %v3241 = vpop.f32.mrf.mxu0
    %v3242 = vpop.f32.mrf.mxu0
    %v3243 = vadd.f32 0.0, %v3242
    %v3244 = vpop.f32.mrf.mxu0
    %3245 = vdwg.mxu0
    %3246 = vrot.lane.b32.xlu0 %v389, 96
    %v3247 = vpop.permute.xlu0 %3246
    %v3250 = vsel %vm2133, %v2846, 0
    %3252 = vmatprep.subr.bf16.mxu0 0
    %3253 = vmatpush1.bf16.msra.mxu0 0
    %3254 = vmatprep.subr.bf16.mxu0 0
    %3255 = vmatpush1.bf16.msra.mxu0 0
    %3256 = vmatprep.subr.bf16.mxu0 0
    %3257 = vmatpush1.bf16.msra.mxu0 0
    %3258 = vmatprep.subr.bf16.mxu0 0
    %3259 = vmatpush1.bf16.msra.mxu0 0
    %3260 = vmatprep.subr.bf16.mxu0 0
    %3261 = vmatpush1.bf16.msra.mxu0 0
    %3262 = vmatprep.subr.bf16.mxu0 0
    %3263 = vmatpush1.bf16.msra.mxu0 0
    %3264 = vmatprep.subr.bf16.mxu0 0
    %3265 = vmatpush1.bf16.msra.mxu0 0
    %3266 = vmatprep.subr.bf16.mxu0 0
    %3267 = vmatpush1.bf16.msra.mxu0 %v3247
    %3268 = vmatprep.subr.bf16.mxu0 0
    %3269 = vmatpush2.bf16.msra.mxu0 0
    %3270 = vmatprep.subr.bf16.mxu0 0
    %3271 = vmatpush2.bf16.msra.mxu0 0
    %3272 = vmatprep.subr.bf16.mxu0 0
    %3273 = vmatpush2.bf16.msra.mxu0 0
    %3274 = vmatprep.subr.bf16.mxu0 0
    %3275 = vmatpush2.bf16.msra.mxu0 0
    %3276 = vmatprep.subr.bf16.mxu0 0
    %3277 = vmatpush2.bf16.msra.mxu0 0
    %3278 = vmatprep.subr.bf16.mxu0 0
    %3279 = vmatpush2.bf16.msra.mxu0 0
    %3280 = vmatprep.subr.bf16.mxu0 0
    %3281 = vmatpush2.bf16.msra.mxu0 0
    %3282 = vmatprep.subr.bf16.mxu0 0
    %3283 = vmatpush2.bf16.msra.mxu0 0
    %3284 = vmatprep.mubr.bf16.mxu0 0
    %3285 = vmatmul.mubr.bf16.gmra.mxu0 %v3250
    %v3286 = vpop.f32.mrf.mxu0
    %v3287 = vadd.f32 0.0, %v3286
    %v3288 = vpop.f32.mrf.mxu0
    %v3289 = vpop.f32.mrf.mxu0
    %v3290 = vadd.f32 0.0, %v3289
    %v3291 = vpop.f32.mrf.mxu0
    %3292 = vdwg.mxu0
    %3293 = vrot.lane.b32.xlu0 %v391, 96
    %v3294 = vpop.permute.xlu0 %3293
    %v3297 = vsel %vm2133, %v2847, 0
    %3299 = vmatprep.subr.bf16.mxu0 0
    %3300 = vmatpush1.bf16.msra.mxu0 0
    %3301 = vmatprep.subr.bf16.mxu0 0
    %3302 = vmatpush1.bf16.msra.mxu0 0
    %3303 = vmatprep.subr.bf16.mxu0 0
    %3304 = vmatpush1.bf16.msra.mxu0 0
    %3305 = vmatprep.subr.bf16.mxu0 0
    %3306 = vmatpush1.bf16.msra.mxu0 0
    %3307 = vmatprep.subr.bf16.mxu0 0
    %3308 = vmatpush1.bf16.msra.mxu0 0
    %3309 = vmatprep.subr.bf16.mxu0 0
    %3310 = vmatpush1.bf16.msra.mxu0 0
    %3311 = vmatprep.subr.bf16.mxu0 0
    %3312 = vmatpush1.bf16.msra.mxu0 0
    %3313 = vmatprep.subr.bf16.mxu0 0
    %3314 = vmatpush1.bf16.msra.mxu0 %v3294
    %3315 = vmatprep.subr.bf16.mxu0 0
    %3316 = vmatpush2.bf16.msra.mxu0 0
    %3317 = vmatprep.subr.bf16.mxu0 0
    %3318 = vmatpush2.bf16.msra.mxu0 0
    %3319 = vmatprep.subr.bf16.mxu0 0
    %3320 = vmatpush2.bf16.msra.mxu0 0
    %3321 = vmatprep.subr.bf16.mxu0 0
    %3322 = vmatpush2.bf16.msra.mxu0 0
    %3323 = vmatprep.subr.bf16.mxu0 0
    %3324 = vmatpush2.bf16.msra.mxu0 0
    %3325 = vmatprep.subr.bf16.mxu0 0
    %3326 = vmatpush2.bf16.msra.mxu0 0
    %3327 = vmatprep.subr.bf16.mxu0 0
    %3328 = vmatpush2.bf16.msra.mxu0 0
    %3329 = vmatprep.subr.bf16.mxu0 0
    %3330 = vmatpush2.bf16.msra.mxu0 0
    %3331 = vmatprep.mubr.bf16.mxu0 0
    %3332 = vmatmul.mubr.bf16.gmra.mxu0 %v3297
    %v3333 = vpop.f32.mrf.mxu0
    %v3334 = vadd.f32 0.0, %v3333
    %v3335 = vpop.f32.mrf.mxu0
    %v3336 = vpop.f32.mrf.mxu0
    %v3337 = vadd.f32 0.0, %v3336
    %v3338 = vpop.f32.mrf.mxu0
    %3339 = vdwg.mxu0
    %3340 = vrot.lane.b32.xlu0 %v393, 96
    %v3341 = vpop.permute.xlu0 %3340
    %v3344 = vsel %vm2133, %v2848, 0
    %3346 = vmatprep.subr.bf16.mxu0 0
    %3347 = vmatpush1.bf16.msra.mxu0 0
    %3348 = vmatprep.subr.bf16.mxu0 0
    %3349 = vmatpush1.bf16.msra.mxu0 0
    %3350 = vmatprep.subr.bf16.mxu0 0
    %3351 = vmatpush1.bf16.msra.mxu0 0
    %3352 = vmatprep.subr.bf16.mxu0 0
    %3353 = vmatpush1.bf16.msra.mxu0 0
    %3354 = vmatprep.subr.bf16.mxu0 0
    %3355 = vmatpush1.bf16.msra.mxu0 0
    %3356 = vmatprep.subr.bf16.mxu0 0
    %3357 = vmatpush1.bf16.msra.mxu0 0
    %3358 = vmatprep.subr.bf16.mxu0 0
    %3359 = vmatpush1.bf16.msra.mxu0 0
    %3360 = vmatprep.subr.bf16.mxu0 0
    %3361 = vmatpush1.bf16.msra.mxu0 %v3341
    %3362 = vmatprep.subr.bf16.mxu0 0
    %3363 = vmatpush2.bf16.msra.mxu0 0
    %3364 = vmatprep.subr.bf16.mxu0 0
    %3365 = vmatpush2.bf16.msra.mxu0 0
    %3366 = vmatprep.subr.bf16.mxu0 0
    %3367 = vmatpush2.bf16.msra.mxu0 0
    %3368 = vmatprep.subr.bf16.mxu0 0
    %3369 = vmatpush2.bf16.msra.mxu0 0
    %3370 = vmatprep.subr.bf16.mxu0 0
    %3371 = vmatpush2.bf16.msra.mxu0 0
    %3372 = vmatprep.subr.bf16.mxu0 0
    %3373 = vmatpush2.bf16.msra.mxu0 0
    %3374 = vmatprep.subr.bf16.mxu0 0
    %3375 = vmatpush2.bf16.msra.mxu0 0
    %3376 = vmatprep.subr.bf16.mxu0 0
    %3377 = vmatpush2.bf16.msra.mxu0 0
    %3378 = vmatprep.mubr.bf16.mxu0 0
    %3379 = vmatmul.mubr.bf16.gmra.mxu0 %v3344
    %v3380 = vpop.f32.mrf.mxu0
    %v3381 = vadd.f32 0.0, %v3380
    %v3382 = vpop.f32.mrf.mxu0
    %v3383 = vpop.f32.mrf.mxu0
    %v3384 = vadd.f32 0.0, %v3383
    %v3385 = vpop.f32.mrf.mxu0
    %3386 = vdwg.mxu0
    %3387 = vrot.lane.b32.xlu0 %v395, 96
    %v3388 = vpop.permute.xlu0 %3387
    %v3391 = vsel %vm2133, %v2849, 0
    %3393 = vmatprep.subr.bf16.mxu0 0
    %3394 = vmatpush1.bf16.msra.mxu0 0
    %3395 = vmatprep.subr.bf16.mxu0 0
    %3396 = vmatpush1.bf16.msra.mxu0 0
    %3397 = vmatprep.subr.bf16.mxu0 0
    %3398 = vmatpush1.bf16.msra.mxu0 0
    %3399 = vmatprep.subr.bf16.mxu0 0
    %3400 = vmatpush1.bf16.msra.mxu0 0
    %3401 = vmatprep.subr.bf16.mxu0 0
    %3402 = vmatpush1.bf16.msra.mxu0 0
    %3403 = vmatprep.subr.bf16.mxu0 0
    %3404 = vmatpush1.bf16.msra.mxu0 0
    %3405 = vmatprep.subr.bf16.mxu0 0
    %3406 = vmatpush1.bf16.msra.mxu0 0
    %3407 = vmatprep.subr.bf16.mxu0 0
    %3408 = vmatpush1.bf16.msra.mxu0 %v3388
    %3409 = vmatprep.subr.bf16.mxu0 0
    %3410 = vmatpush2.bf16.msra.mxu0 0
    %3411 = vmatprep.subr.bf16.mxu0 0
    %3412 = vmatpush2.bf16.msra.mxu0 0
    %3413 = vmatprep.subr.bf16.mxu0 0
    %3414 = vmatpush2.bf16.msra.mxu0 0
    %3415 = vmatprep.subr.bf16.mxu0 0
    %3416 = vmatpush2.bf16.msra.mxu0 0
    %3417 = vmatprep.subr.bf16.mxu0 0
    %3418 = vmatpush2.bf16.msra.mxu0 0
    %3419 = vmatprep.subr.bf16.mxu0 0
    %3420 = vmatpush2.bf16.msra.mxu0 0
    %3421 = vmatprep.subr.bf16.mxu0 0
    %3422 = vmatpush2.bf16.msra.mxu0 0
    %3423 = vmatprep.subr.bf16.mxu0 0
    %3424 = vmatpush2.bf16.msra.mxu0 0
    %3425 = vmatprep.mubr.bf16.mxu0 0
    %3426 = vmatmul.mubr.bf16.gmra.mxu0 %v3391
    %v3427 = vpop.f32.mrf.mxu0
    %v3428 = vadd.f32 0.0, %v3427
    %v3429 = vpop.f32.mrf.mxu0
    %v3430 = vpop.f32.mrf.mxu0
    %v3431 = vadd.f32 0.0, %v3430
    %v3432 = vpop.f32.mrf.mxu0
    %3433 = vdwg.mxu0
    %3434 = vrot.lane.b32.xlu0 %v397, 96
    %v3435 = vpop.permute.xlu0 %3434
    %v3438 = vsel %vm2133, %v2850, 0
    %3440 = vmatprep.subr.bf16.mxu0 0
    %3441 = vmatpush1.bf16.msra.mxu0 0
    %3442 = vmatprep.subr.bf16.mxu0 0
    %3443 = vmatpush1.bf16.msra.mxu0 0
    %3444 = vmatprep.subr.bf16.mxu0 0
    %3445 = vmatpush1.bf16.msra.mxu0 0
    %3446 = vmatprep.subr.bf16.mxu0 0
    %3447 = vmatpush1.bf16.msra.mxu0 0
    %3448 = vmatprep.subr.bf16.mxu0 0
    %3449 = vmatpush1.bf16.msra.mxu0 0
    %3450 = vmatprep.subr.bf16.mxu0 0
    %3451 = vmatpush1.bf16.msra.mxu0 0
    %3452 = vmatprep.subr.bf16.mxu0 0
    %3453 = vmatpush1.bf16.msra.mxu0 0
    %3454 = vmatprep.subr.bf16.mxu0 0
    %3455 = vmatpush1.bf16.msra.mxu0 %v3435
    %3456 = vmatprep.subr.bf16.mxu0 0
    %3457 = vmatpush2.bf16.msra.mxu0 0
    %3458 = vmatprep.subr.bf16.mxu0 0
    %3459 = vmatpush2.bf16.msra.mxu0 0
    %3460 = vmatprep.subr.bf16.mxu0 0
    %3461 = vmatpush2.bf16.msra.mxu0 0
    %3462 = vmatprep.subr.bf16.mxu0 0
    %3463 = vmatpush2.bf16.msra.mxu0 0
    %3464 = vmatprep.subr.bf16.mxu0 0
    %3465 = vmatpush2.bf16.msra.mxu0 0
    %3466 = vmatprep.subr.bf16.mxu0 0
    %3467 = vmatpush2.bf16.msra.mxu0 0
    %3468 = vmatprep.subr.bf16.mxu0 0
    %3469 = vmatpush2.bf16.msra.mxu0 0
    %3470 = vmatprep.subr.bf16.mxu0 0
    %3471 = vmatpush2.bf16.msra.mxu0 0
    %3472 = vmatprep.mubr.bf16.mxu0 0
    %3473 = vmatmul.mubr.bf16.gmra.mxu0 %v3438
    %v3474 = vpop.f32.mrf.mxu0
    %v3475 = vadd.f32 0.0, %v3474
    %v3476 = vpop.f32.mrf.mxu0
    %v3477 = vpop.f32.mrf.mxu0
    %v3478 = vadd.f32 0.0, %v3477
    %v3479 = vpop.f32.mrf.mxu0
    %3480 = vdwg.mxu0
    %3481 = vrot.lane.b32.xlu0 %v399, 96
    %v3482 = vpop.permute.xlu0 %3481
    %v3485 = vsel %vm2133, %v2851, 0
    %3487 = vmatprep.subr.bf16.mxu0 0
    %3488 = vmatpush1.bf16.msra.mxu0 0
    %3489 = vmatprep.subr.bf16.mxu0 0
    %3490 = vmatpush1.bf16.msra.mxu0 0
    %3491 = vmatprep.subr.bf16.mxu0 0
    %3492 = vmatpush1.bf16.msra.mxu0 0
    %3493 = vmatprep.subr.bf16.mxu0 0
    %3494 = vmatpush1.bf16.msra.mxu0 0
    %3495 = vmatprep.subr.bf16.mxu0 0
    %3496 = vmatpush1.bf16.msra.mxu0 0
    %3497 = vmatprep.subr.bf16.mxu0 0
    %3498 = vmatpush1.bf16.msra.mxu0 0
    %3499 = vmatprep.subr.bf16.mxu0 0
    %3500 = vmatpush1.bf16.msra.mxu0 0
    %3501 = vmatprep.subr.bf16.mxu0 0
    %3502 = vmatpush1.bf16.msra.mxu0 %v3482
    %3503 = vmatprep.subr.bf16.mxu0 0
    %3504 = vmatpush2.bf16.msra.mxu0 0
    %3505 = vmatprep.subr.bf16.mxu0 0
    %3506 = vmatpush2.bf16.msra.mxu0 0
    %3507 = vmatprep.subr.bf16.mxu0 0
    %3508 = vmatpush2.bf16.msra.mxu0 0
    %3509 = vmatprep.subr.bf16.mxu0 0
    %3510 = vmatpush2.bf16.msra.mxu0 0
    %3511 = vmatprep.subr.bf16.mxu0 0
    %3512 = vmatpush2.bf16.msra.mxu0 0
    %3513 = vmatprep.subr.bf16.mxu0 0
    %3514 = vmatpush2.bf16.msra.mxu0 0
    %3515 = vmatprep.subr.bf16.mxu0 0
    %3516 = vmatpush2.bf16.msra.mxu0 0
    %3517 = vmatprep.subr.bf16.mxu0 0
    %3518 = vmatpush2.bf16.msra.mxu0 0
    %3519 = vmatprep.mubr.bf16.mxu0 0
    %3520 = vmatmul.mubr.bf16.gmra.mxu0 %v3485
    %v3521 = vpop.f32.mrf.mxu0
    %v3522 = vadd.f32 0.0, %v3521
    %v3523 = vpop.f32.mrf.mxu0
    %v3524 = vpop.f32.mrf.mxu0
    %v3525 = vadd.f32 0.0, %v3524
    %v3526 = vpop.f32.mrf.mxu0
    %3527 = vdwg.mxu0
    %3528 = vrot.lane.b32.xlu0 %v401, 96
    %v3529 = vpop.permute.xlu0 %3528
    %v3532 = vsel %vm2133, %v2852, 0
    %3534 = vmatprep.subr.bf16.mxu0 0
    %3535 = vmatpush1.bf16.msra.mxu0 0
    %3536 = vmatprep.subr.bf16.mxu0 0
    %3537 = vmatpush1.bf16.msra.mxu0 0
    %3538 = vmatprep.subr.bf16.mxu0 0
    %3539 = vmatpush1.bf16.msra.mxu0 0
    %3540 = vmatprep.subr.bf16.mxu0 0
    %3541 = vmatpush1.bf16.msra.mxu0 0
    %3542 = vmatprep.subr.bf16.mxu0 0
    %3543 = vmatpush1.bf16.msra.mxu0 0
    %3544 = vmatprep.subr.bf16.mxu0 0
    %3545 = vmatpush1.bf16.msra.mxu0 0
    %3546 = vmatprep.subr.bf16.mxu0 0
    %3547 = vmatpush1.bf16.msra.mxu0 0
    %3548 = vmatprep.subr.bf16.mxu0 0
    %3549 = vmatpush1.bf16.msra.mxu0 %v3529
    %3550 = vmatprep.subr.bf16.mxu0 0
    %3551 = vmatpush2.bf16.msra.mxu0 0
    %3552 = vmatprep.subr.bf16.mxu0 0
    %3553 = vmatpush2.bf16.msra.mxu0 0
    %3554 = vmatprep.subr.bf16.mxu0 0
    %3555 = vmatpush2.bf16.msra.mxu0 0
    %3556 = vmatprep.subr.bf16.mxu0 0
    %3557 = vmatpush2.bf16.msra.mxu0 0
    %3558 = vmatprep.subr.bf16.mxu0 0
    %3559 = vmatpush2.bf16.msra.mxu0 0
    %3560 = vmatprep.subr.bf16.mxu0 0
    %3561 = vmatpush2.bf16.msra.mxu0 0
    %3562 = vmatprep.subr.bf16.mxu0 0
    %3563 = vmatpush2.bf16.msra.mxu0 0
    %3564 = vmatprep.subr.bf16.mxu0 0
    %3565 = vmatpush2.bf16.msra.mxu0 0
    %3566 = vmatprep.mubr.bf16.mxu0 0
    %3567 = vmatmul.mubr.bf16.gmra.mxu0 %v3532
    %v3568 = vpop.f32.mrf.mxu0
    %v3569 = vadd.f32 0.0, %v3568
    %v3570 = vpop.f32.mrf.mxu0
    %v3571 = vpop.f32.mrf.mxu0
    %v3572 = vadd.f32 0.0, %v3571
    %v3573 = vpop.f32.mrf.mxu0
    %3574 = vdwg.mxu0
    %3575 = vrot.lane.b32.xlu0 %v403, 96
    %v3576 = vpop.permute.xlu0 %3575
    %v3579 = vsel %vm2133, %v2853, 0
    %3581 = vmatprep.subr.bf16.mxu0 0
    %3582 = vmatpush1.bf16.msra.mxu0 0
    %3583 = vmatprep.subr.bf16.mxu0 0
    %3584 = vmatpush1.bf16.msra.mxu0 0
    %3585 = vmatprep.subr.bf16.mxu0 0
    %3586 = vmatpush1.bf16.msra.mxu0 0
    %3587 = vmatprep.subr.bf16.mxu0 0
    %3588 = vmatpush1.bf16.msra.mxu0 0
    %3589 = vmatprep.subr.bf16.mxu0 0
    %3590 = vmatpush1.bf16.msra.mxu0 0
    %3591 = vmatprep.subr.bf16.mxu0 0
    %3592 = vmatpush1.bf16.msra.mxu0 0
    %3593 = vmatprep.subr.bf16.mxu0 0
    %3594 = vmatpush1.bf16.msra.mxu0 0
    %3595 = vmatprep.subr.bf16.mxu0 0
    %3596 = vmatpush1.bf16.msra.mxu0 %v3576
    %3597 = vmatprep.subr.bf16.mxu0 0
    %3598 = vmatpush2.bf16.msra.mxu0 0
    %3599 = vmatprep.subr.bf16.mxu0 0
    %3600 = vmatpush2.bf16.msra.mxu0 0
    %3601 = vmatprep.subr.bf16.mxu0 0
    %3602 = vmatpush2.bf16.msra.mxu0 0
    %3603 = vmatprep.subr.bf16.mxu0 0
    %3604 = vmatpush2.bf16.msra.mxu0 0
    %3605 = vmatprep.subr.bf16.mxu0 0
    %3606 = vmatpush2.bf16.msra.mxu0 0
    %3607 = vmatprep.subr.bf16.mxu0 0
    %3608 = vmatpush2.bf16.msra.mxu0 0
    %3609 = vmatprep.subr.bf16.mxu0 0
    %3610 = vmatpush2.bf16.msra.mxu0 0
    %3611 = vmatprep.subr.bf16.mxu0 0
    %3612 = vmatpush2.bf16.msra.mxu0 0
    %3613 = vmatprep.mubr.bf16.mxu0 0
    %3614 = vmatmul.mubr.bf16.gmra.mxu0 %v3579
    %v3615 = vpop.f32.mrf.mxu0
    %v3616 = vadd.f32 0.0, %v3615
    %v3617 = vpop.f32.mrf.mxu0
    %v3618 = vpop.f32.mrf.mxu0
    %v3619 = vadd.f32 0.0, %v3618
    %v3620 = vpop.f32.mrf.mxu0
    %3621 = vdwg.mxu0
    %3622 = vrot.lane.b32.xlu0 %v405, 96
    %v3623 = vpop.permute.xlu0 %3622
    %v3626 = vsel %vm2133, %v2854, 0
    %3628 = vmatprep.subr.bf16.mxu0 0
    %3629 = vmatpush1.bf16.msra.mxu0 0
    %3630 = vmatprep.subr.bf16.mxu0 0
    %3631 = vmatpush1.bf16.msra.mxu0 0
    %3632 = vmatprep.subr.bf16.mxu0 0
    %3633 = vmatpush1.bf16.msra.mxu0 0
    %3634 = vmatprep.subr.bf16.mxu0 0
    %3635 = vmatpush1.bf16.msra.mxu0 0
    %3636 = vmatprep.subr.bf16.mxu0 0
    %3637 = vmatpush1.bf16.msra.mxu0 0
    %3638 = vmatprep.subr.bf16.mxu0 0
    %3639 = vmatpush1.bf16.msra.mxu0 0
    %3640 = vmatprep.subr.bf16.mxu0 0
    %3641 = vmatpush1.bf16.msra.mxu0 0
    %3642 = vmatprep.subr.bf16.mxu0 0
    %3643 = vmatpush1.bf16.msra.mxu0 %v3623
    %3644 = vmatprep.subr.bf16.mxu0 0
    %3645 = vmatpush2.bf16.msra.mxu0 0
    %3646 = vmatprep.subr.bf16.mxu0 0
    %3647 = vmatpush2.bf16.msra.mxu0 0
    %3648 = vmatprep.subr.bf16.mxu0 0
    %3649 = vmatpush2.bf16.msra.mxu0 0
    %3650 = vmatprep.subr.bf16.mxu0 0
    %3651 = vmatpush2.bf16.msra.mxu0 0
    %3652 = vmatprep.subr.bf16.mxu0 0
    %3653 = vmatpush2.bf16.msra.mxu0 0
    %3654 = vmatprep.subr.bf16.mxu0 0
    %3655 = vmatpush2.bf16.msra.mxu0 0
    %3656 = vmatprep.subr.bf16.mxu0 0
    %3657 = vmatpush2.bf16.msra.mxu0 0
    %3658 = vmatprep.subr.bf16.mxu0 0
    %3659 = vmatpush2.bf16.msra.mxu0 0
    %3660 = vmatprep.mubr.bf16.mxu0 0
    %3661 = vmatmul.mubr.bf16.gmra.mxu0 %v3626
    %v3662 = vpop.f32.mrf.mxu0
    %v3663 = vadd.f32 0.0, %v3662
    %v3664 = vpop.f32.mrf.mxu0
    %v3665 = vpop.f32.mrf.mxu0
    %v3666 = vadd.f32 0.0, %v3665
    %v3667 = vpop.f32.mrf.mxu0
    %3668 = vdwg.mxu0
    %3669 = vrot.lane.b32.xlu0 %v407, 96
    %v3670 = vpop.permute.xlu0 %3669
    %v3673 = vsel %vm2133, %v2855, 0
    %3675 = vmatprep.subr.bf16.mxu0 0
    %3676 = vmatpush1.bf16.msra.mxu0 0
    %3677 = vmatprep.subr.bf16.mxu0 0
    %3678 = vmatpush1.bf16.msra.mxu0 0
    %3679 = vmatprep.subr.bf16.mxu0 0
    %3680 = vmatpush1.bf16.msra.mxu0 0
    %3681 = vmatprep.subr.bf16.mxu0 0
    %3682 = vmatpush1.bf16.msra.mxu0 0
    %3683 = vmatprep.subr.bf16.mxu0 0
    %3684 = vmatpush1.bf16.msra.mxu0 0
    %3685 = vmatprep.subr.bf16.mxu0 0
    %3686 = vmatpush1.bf16.msra.mxu0 0
    %3687 = vmatprep.subr.bf16.mxu0 0
    %3688 = vmatpush1.bf16.msra.mxu0 0
    %3689 = vmatprep.subr.bf16.mxu0 0
    %3690 = vmatpush1.bf16.msra.mxu0 %v3670
    %3691 = vmatprep.subr.bf16.mxu0 0
    %3692 = vmatpush2.bf16.msra.mxu0 0
    %3693 = vmatprep.subr.bf16.mxu0 0
    %3694 = vmatpush2.bf16.msra.mxu0 0
    %3695 = vmatprep.subr.bf16.mxu0 0
    %3696 = vmatpush2.bf16.msra.mxu0 0
    %3697 = vmatprep.subr.bf16.mxu0 0
    %3698 = vmatpush2.bf16.msra.mxu0 0
    %3699 = vmatprep.subr.bf16.mxu0 0
    %3700 = vmatpush2.bf16.msra.mxu0 0
    %3701 = vmatprep.subr.bf16.mxu0 0
    %3702 = vmatpush2.bf16.msra.mxu0 0
    %3703 = vmatprep.subr.bf16.mxu0 0
    %3704 = vmatpush2.bf16.msra.mxu0 0
    %3705 = vmatprep.subr.bf16.mxu0 0
    %3706 = vmatpush2.bf16.msra.mxu0 0
    %3707 = vmatprep.mubr.bf16.mxu0 0
    %3708 = vmatmul.mubr.bf16.gmra.mxu0 %v3673
    %v3709 = vpop.f32.mrf.mxu0
    %v3710 = vadd.f32 0.0, %v3709
    %v3711 = vpop.f32.mrf.mxu0
    %v3712 = vpop.f32.mrf.mxu0
    %v3713 = vadd.f32 0.0, %v3712
    %v3714 = vpop.f32.mrf.mxu0
    %3715 = vdwg.mxu0
    %3716 = vrot.lane.b32.xlu0 %v409, 96
    %v3717 = vpop.permute.xlu0 %3716
    %v3720 = vsel %vm2133, %v2856, 0
    %3722 = vmatprep.subr.bf16.mxu0 0
    %3723 = vmatpush1.bf16.msra.mxu0 0
    %3724 = vmatprep.subr.bf16.mxu0 0
    %3725 = vmatpush1.bf16.msra.mxu0 0
    %3726 = vmatprep.subr.bf16.mxu0 0
    %3727 = vmatpush1.bf16.msra.mxu0 0
    %3728 = vmatprep.subr.bf16.mxu0 0
    %3729 = vmatpush1.bf16.msra.mxu0 0
    %3730 = vmatprep.subr.bf16.mxu0 0
    %3731 = vmatpush1.bf16.msra.mxu0 0
    %3732 = vmatprep.subr.bf16.mxu0 0
    %3733 = vmatpush1.bf16.msra.mxu0 0
    %3734 = vmatprep.subr.bf16.mxu0 0
    %3735 = vmatpush1.bf16.msra.mxu0 0
    %3736 = vmatprep.subr.bf16.mxu0 0
    %3737 = vmatpush1.bf16.msra.mxu0 %v3717
    %3738 = vmatprep.subr.bf16.mxu0 0
    %3739 = vmatpush2.bf16.msra.mxu0 0
    %3740 = vmatprep.subr.bf16.mxu0 0
    %3741 = vmatpush2.bf16.msra.mxu0 0
    %3742 = vmatprep.subr.bf16.mxu0 0
    %3743 = vmatpush2.bf16.msra.mxu0 0
    %3744 = vmatprep.subr.bf16.mxu0 0
    %3745 = vmatpush2.bf16.msra.mxu0 0
    %3746 = vmatprep.subr.bf16.mxu0 0
    %3747 = vmatpush2.bf16.msra.mxu0 0
    %3748 = vmatprep.subr.bf16.mxu0 0
    %3749 = vmatpush2.bf16.msra.mxu0 0
    %3750 = vmatprep.subr.bf16.mxu0 0
    %3751 = vmatpush2.bf16.msra.mxu0 0
    %3752 = vmatprep.subr.bf16.mxu0 0
    %3753 = vmatpush2.bf16.msra.mxu0 0
    %3754 = vmatprep.mubr.bf16.mxu0 0
    %3755 = vmatmul.mubr.bf16.gmra.mxu0 %v3720
    %v3756 = vpop.f32.mrf.mxu0
    %v3757 = vadd.f32 0.0, %v3756
    %v3758 = vpop.f32.mrf.mxu0
    %v3759 = vpop.f32.mrf.mxu0
    %v3760 = vadd.f32 0.0, %v3759
    %v3761 = vpop.f32.mrf.mxu0
    %3762 = vdwg.mxu0
    %3763 = vrot.lane.b32.xlu0 %v411, 96
    %v3764 = vpop.permute.xlu0 %3763
    %v3767 = vsel %vm2133, %v2857, 0
    %3769 = vmatprep.subr.bf16.mxu0 0
    %3770 = vmatpush1.bf16.msra.mxu0 0
    %3771 = vmatprep.subr.bf16.mxu0 0
    %3772 = vmatpush1.bf16.msra.mxu0 0
    %3773 = vmatprep.subr.bf16.mxu0 0
    %3774 = vmatpush1.bf16.msra.mxu0 0
    %3775 = vmatprep.subr.bf16.mxu0 0
    %3776 = vmatpush1.bf16.msra.mxu0 0
    %3777 = vmatprep.subr.bf16.mxu0 0
    %3778 = vmatpush1.bf16.msra.mxu0 0
    %3779 = vmatprep.subr.bf16.mxu0 0
    %3780 = vmatpush1.bf16.msra.mxu0 0
    %3781 = vmatprep.subr.bf16.mxu0 0
    %3782 = vmatpush1.bf16.msra.mxu0 0
    %3783 = vmatprep.subr.bf16.mxu0 0
    %3784 = vmatpush1.bf16.msra.mxu0 %v3764
    %3785 = vmatprep.subr.bf16.mxu0 0
    %3786 = vmatpush2.bf16.msra.mxu0 0
    %3787 = vmatprep.subr.bf16.mxu0 0
    %3788 = vmatpush2.bf16.msra.mxu0 0
    %3789 = vmatprep.subr.bf16.mxu0 0
    %3790 = vmatpush2.bf16.msra.mxu0 0
    %3791 = vmatprep.subr.bf16.mxu0 0
    %3792 = vmatpush2.bf16.msra.mxu0 0
    %3793 = vmatprep.subr.bf16.mxu0 0
    %3794 = vmatpush2.bf16.msra.mxu0 0
    %3795 = vmatprep.subr.bf16.mxu0 0
    %3796 = vmatpush2.bf16.msra.mxu0 0
    %3797 = vmatprep.subr.bf16.mxu0 0
    %3798 = vmatpush2.bf16.msra.mxu0 0
    %3799 = vmatprep.subr.bf16.mxu0 0
    %3800 = vmatpush2.bf16.msra.mxu0 0
    %3801 = vmatprep.mubr.bf16.mxu0 0
    %3802 = vmatmul.mubr.bf16.gmra.mxu0 %v3767
    %v3803 = vpop.f32.mrf.mxu0
    %v3804 = vadd.f32 0.0, %v3803
    %v3805 = vpop.f32.mrf.mxu0
    %v3806 = vpop.f32.mrf.mxu0
    %v3807 = vadd.f32 0.0, %v3806
    %v3808 = vpop.f32.mrf.mxu0
    %3809 = vdwg.mxu0
    %3810 = vrot.lane.b32.xlu0 %v413, 96
    %v3811 = vpop.permute.xlu0 %3810
    %v3814 = vsel %vm2133, %v2858, 0
    %3816 = vmatprep.subr.bf16.mxu0 0
    %3817 = vmatpush1.bf16.msra.mxu0 0
    %3818 = vmatprep.subr.bf16.mxu0 0
    %3819 = vmatpush1.bf16.msra.mxu0 0
    %3820 = vmatprep.subr.bf16.mxu0 0
    %3821 = vmatpush1.bf16.msra.mxu0 0
    %3822 = vmatprep.subr.bf16.mxu0 0
    %3823 = vmatpush1.bf16.msra.mxu0 0
    %3824 = vmatprep.subr.bf16.mxu0 0
    %3825 = vmatpush1.bf16.msra.mxu0 0
    %3826 = vmatprep.subr.bf16.mxu0 0
    %3827 = vmatpush1.bf16.msra.mxu0 0
    %3828 = vmatprep.subr.bf16.mxu0 0
    %3829 = vmatpush1.bf16.msra.mxu0 0
    %3830 = vmatprep.subr.bf16.mxu0 0
    %3831 = vmatpush1.bf16.msra.mxu0 %v3811
    %3832 = vmatprep.subr.bf16.mxu0 0
    %3833 = vmatpush2.bf16.msra.mxu0 0
    %3834 = vmatprep.subr.bf16.mxu0 0
    %3835 = vmatpush2.bf16.msra.mxu0 0
    %3836 = vmatprep.subr.bf16.mxu0 0
    %3837 = vmatpush2.bf16.msra.mxu0 0
    %3838 = vmatprep.subr.bf16.mxu0 0
    %3839 = vmatpush2.bf16.msra.mxu0 0
    %3840 = vmatprep.subr.bf16.mxu0 0
    %3841 = vmatpush2.bf16.msra.mxu0 0
    %3842 = vmatprep.subr.bf16.mxu0 0
    %3843 = vmatpush2.bf16.msra.mxu0 0
    %3844 = vmatprep.subr.bf16.mxu0 0
    %3845 = vmatpush2.bf16.msra.mxu0 0
    %3846 = vmatprep.subr.bf16.mxu0 0
    %3847 = vmatpush2.bf16.msra.mxu0 0
    %3848 = vmatprep.mubr.bf16.mxu0 0
    %3849 = vmatmul.mubr.bf16.gmra.mxu0 %v3814
    %v3850 = vpop.f32.mrf.mxu0
    %v3851 = vadd.f32 0.0, %v3850
    %v3852 = vpop.f32.mrf.mxu0
    %v3853 = vpop.f32.mrf.mxu0
    %v3854 = vadd.f32 0.0, %v3853
    %v3855 = vpop.f32.mrf.mxu0
    %3856 = vdwg.mxu0
    %3857 = vrot.lane.b32.xlu0 %v415, 96
    %v3858 = vpop.permute.xlu0 %3857
    %v3861 = vsel %vm2133, %v2859, 0
    %3863 = vmatprep.subr.bf16.mxu0 0
    %3864 = vmatpush1.bf16.msra.mxu0 0
    %3865 = vmatprep.subr.bf16.mxu0 0
    %3866 = vmatpush1.bf16.msra.mxu0 0
    %3867 = vmatprep.subr.bf16.mxu0 0
    %3868 = vmatpush1.bf16.msra.mxu0 0
    %3869 = vmatprep.subr.bf16.mxu0 0
    %3870 = vmatpush1.bf16.msra.mxu0 0
    %3871 = vmatprep.subr.bf16.mxu0 0
    %3872 = vmatpush1.bf16.msra.mxu0 0
    %3873 = vmatprep.subr.bf16.mxu0 0
    %3874 = vmatpush1.bf16.msra.mxu0 0
    %3875 = vmatprep.subr.bf16.mxu0 0
    %3876 = vmatpush1.bf16.msra.mxu0 0
    %3877 = vmatprep.subr.bf16.mxu0 0
    %3878 = vmatpush1.bf16.msra.mxu0 %v3858
    %3879 = vmatprep.subr.bf16.mxu0 0
    %3880 = vmatpush2.bf16.msra.mxu0 0
    %3881 = vmatprep.subr.bf16.mxu0 0
    %3882 = vmatpush2.bf16.msra.mxu0 0
    %3883 = vmatprep.subr.bf16.mxu0 0
    %3884 = vmatpush2.bf16.msra.mxu0 0
    %3885 = vmatprep.subr.bf16.mxu0 0
    %3886 = vmatpush2.bf16.msra.mxu0 0
    %3887 = vmatprep.subr.bf16.mxu0 0
    %3888 = vmatpush2.bf16.msra.mxu0 0
    %3889 = vmatprep.subr.bf16.mxu0 0
    %3890 = vmatpush2.bf16.msra.mxu0 0
    %3891 = vmatprep.subr.bf16.mxu0 0
    %3892 = vmatpush2.bf16.msra.mxu0 0
    %3893 = vmatprep.subr.bf16.mxu0 0
    %3894 = vmatpush2.bf16.msra.mxu0 0
    %3895 = vmatprep.mubr.bf16.mxu0 0
    %3896 = vmatmul.mubr.bf16.gmra.mxu0 %v3861
    %v3897 = vpop.f32.mrf.mxu0
    %v3898 = vadd.f32 0.0, %v3897
    %v3899 = vpop.f32.mrf.mxu0
    %v3900 = vpop.f32.mrf.mxu0
    %v3901 = vadd.f32 0.0, %v3900
    %v3902 = vpop.f32.mrf.mxu0
    %3903 = vdwg.mxu0
    %3904 = vrot.lane.b32.xlu0 %v417, 96
    %v3905 = vpop.permute.xlu0 %3904
    %v3908 = vsel %vm2133, %v2860, 0
    %3910 = vmatprep.subr.bf16.mxu0 0
    %3911 = vmatpush1.bf16.msra.mxu0 0
    %3912 = vmatprep.subr.bf16.mxu0 0
    %3913 = vmatpush1.bf16.msra.mxu0 0
    %3914 = vmatprep.subr.bf16.mxu0 0
    %3915 = vmatpush1.bf16.msra.mxu0 0
    %3916 = vmatprep.subr.bf16.mxu0 0
    %3917 = vmatpush1.bf16.msra.mxu0 0
    %3918 = vmatprep.subr.bf16.mxu0 0
    %3919 = vmatpush1.bf16.msra.mxu0 0
    %3920 = vmatprep.subr.bf16.mxu0 0
    %3921 = vmatpush1.bf16.msra.mxu0 0
    %3922 = vmatprep.subr.bf16.mxu0 0
    %3923 = vmatpush1.bf16.msra.mxu0 0
    %3924 = vmatprep.subr.bf16.mxu0 0
    %3925 = vmatpush1.bf16.msra.mxu0 %v3905
    %3926 = vmatprep.subr.bf16.mxu0 0
    %3927 = vmatpush2.bf16.msra.mxu0 0
    %3928 = vmatprep.subr.bf16.mxu0 0
    %3929 = vmatpush2.bf16.msra.mxu0 0
    %3930 = vmatprep.subr.bf16.mxu0 0
    %3931 = vmatpush2.bf16.msra.mxu0 0
    %3932 = vmatprep.subr.bf16.mxu0 0
    %3933 = vmatpush2.bf16.msra.mxu0 0
    %3934 = vmatprep.subr.bf16.mxu0 0
    %3935 = vmatpush2.bf16.msra.mxu0 0
    %3936 = vmatprep.subr.bf16.mxu0 0
    %3937 = vmatpush2.bf16.msra.mxu0 0
    %3938 = vmatprep.subr.bf16.mxu0 0
    %3939 = vmatpush2.bf16.msra.mxu0 0
    %3940 = vmatprep.subr.bf16.mxu0 0
    %3941 = vmatpush2.bf16.msra.mxu0 0
    %3942 = vmatprep.mubr.bf16.mxu0 0
    %3943 = vmatmul.mubr.bf16.gmra.mxu0 %v3908
    %v3944 = vpop.f32.mrf.mxu0
    %v3945 = vadd.f32 0.0, %v3944
    %v3946 = vpop.f32.mrf.mxu0
    %v3947 = vpop.f32.mrf.mxu0
    %v3948 = vadd.f32 0.0, %v3947
    %v3949 = vpop.f32.mrf.mxu0
    %3950 = vdwg.mxu0
    %3951 = vrot.lane.b32.xlu0 %v419, 96
    %v3952 = vpop.permute.xlu0 %3951
    %v3955 = vsel %vm2133, %v2861, 0
    %3957 = vmatprep.subr.bf16.mxu0 0
    %3958 = vmatpush1.bf16.msra.mxu0 0
    %3959 = vmatprep.subr.bf16.mxu0 0
    %3960 = vmatpush1.bf16.msra.mxu0 0
    %3961 = vmatprep.subr.bf16.mxu0 0
    %3962 = vmatpush1.bf16.msra.mxu0 0
    %3963 = vmatprep.subr.bf16.mxu0 0
    %3964 = vmatpush1.bf16.msra.mxu0 0
    %3965 = vmatprep.subr.bf16.mxu0 0
    %3966 = vmatpush1.bf16.msra.mxu0 0
    %3967 = vmatprep.subr.bf16.mxu0 0
    %3968 = vmatpush1.bf16.msra.mxu0 0
    %3969 = vmatprep.subr.bf16.mxu0 0
    %3970 = vmatpush1.bf16.msra.mxu0 0
    %3971 = vmatprep.subr.bf16.mxu0 0
    %3972 = vmatpush1.bf16.msra.mxu0 %v3952
    %3973 = vmatprep.subr.bf16.mxu0 0
    %3974 = vmatpush2.bf16.msra.mxu0 0
    %3975 = vmatprep.subr.bf16.mxu0 0
    %3976 = vmatpush2.bf16.msra.mxu0 0
    %3977 = vmatprep.subr.bf16.mxu0 0
    %3978 = vmatpush2.bf16.msra.mxu0 0
    %3979 = vmatprep.subr.bf16.mxu0 0
    %3980 = vmatpush2.bf16.msra.mxu0 0
    %3981 = vmatprep.subr.bf16.mxu0 0
    %3982 = vmatpush2.bf16.msra.mxu0 0
    %3983 = vmatprep.subr.bf16.mxu0 0
    %3984 = vmatpush2.bf16.msra.mxu0 0
    %3985 = vmatprep.subr.bf16.mxu0 0
    %3986 = vmatpush2.bf16.msra.mxu0 0
    %3987 = vmatprep.subr.bf16.mxu0 0
    %3988 = vmatpush2.bf16.msra.mxu0 0
    %3989 = vmatprep.mubr.bf16.mxu0 0
    %3990 = vmatmul.mubr.bf16.gmra.mxu0 %v3955
    %v3991 = vpop.f32.mrf.mxu0
    %v3992 = vadd.f32 0.0, %v3991
    %v3993 = vpop.f32.mrf.mxu0
    %v3994 = vpop.f32.mrf.mxu0
    %v3995 = vadd.f32 0.0, %v3994
    %v3996 = vpop.f32.mrf.mxu0
    %3997 = vdwg.mxu0
    %3998 = vrot.lane.b32.xlu0 %v421, 96
    %v3999 = vpop.permute.xlu0 %3998
    %v4002 = vsel %vm2133, %v2862, 0
    %4004 = vmatprep.subr.bf16.mxu0 0
    %4005 = vmatpush1.bf16.msra.mxu0 0
    %4006 = vmatprep.subr.bf16.mxu0 0
    %4007 = vmatpush1.bf16.msra.mxu0 0
    %4008 = vmatprep.subr.bf16.mxu0 0
    %4009 = vmatpush1.bf16.msra.mxu0 0
    %4010 = vmatprep.subr.bf16.mxu0 0
    %4011 = vmatpush1.bf16.msra.mxu0 0
    %4012 = vmatprep.subr.bf16.mxu0 0
    %4013 = vmatpush1.bf16.msra.mxu0 0
    %4014 = vmatprep.subr.bf16.mxu0 0
    %4015 = vmatpush1.bf16.msra.mxu0 0
    %4016 = vmatprep.subr.bf16.mxu0 0
    %4017 = vmatpush1.bf16.msra.mxu0 0
    %4018 = vmatprep.subr.bf16.mxu0 0
    %4019 = vmatpush1.bf16.msra.mxu0 %v3999
    %4020 = vmatprep.subr.bf16.mxu0 0
    %4021 = vmatpush2.bf16.msra.mxu0 0
    %4022 = vmatprep.subr.bf16.mxu0 0
    %4023 = vmatpush2.bf16.msra.mxu0 0
    %4024 = vmatprep.subr.bf16.mxu0 0
    %4025 = vmatpush2.bf16.msra.mxu0 0
    %4026 = vmatprep.subr.bf16.mxu0 0
    %4027 = vmatpush2.bf16.msra.mxu0 0
    %4028 = vmatprep.subr.bf16.mxu0 0
    %4029 = vmatpush2.bf16.msra.mxu0 0
    %4030 = vmatprep.subr.bf16.mxu0 0
    %4031 = vmatpush2.bf16.msra.mxu0 0
    %4032 = vmatprep.subr.bf16.mxu0 0
    %4033 = vmatpush2.bf16.msra.mxu0 0
    %4034 = vmatprep.subr.bf16.mxu0 0
    %4035 = vmatpush2.bf16.msra.mxu0 0
    %4036 = vmatprep.mubr.bf16.mxu0 0
    %4037 = vmatmul.mubr.bf16.gmra.mxu0 %v4002
    %v4038 = vpop.f32.mrf.mxu0
    %v4039 = vadd.f32 0.0, %v4038
    %v4040 = vpop.f32.mrf.mxu0
    %v4041 = vpop.f32.mrf.mxu0
    %v4042 = vadd.f32 0.0, %v4041
    %v4043 = vpop.f32.mrf.mxu0
    %4044 = vdwg.mxu0
    %4045 = vrot.lane.b32.xlu0 %v423, 96
    %v4046 = vpop.permute.xlu0 %4045
    %v4049 = vsel %vm2133, %v2863, 0
    %4051 = vmatprep.subr.bf16.mxu0 0
    %4052 = vmatpush1.bf16.msra.mxu0 0
    %4053 = vmatprep.subr.bf16.mxu0 0
    %4054 = vmatpush1.bf16.msra.mxu0 0
    %4055 = vmatprep.subr.bf16.mxu0 0
    %4056 = vmatpush1.bf16.msra.mxu0 0
    %4057 = vmatprep.subr.bf16.mxu0 0
    %4058 = vmatpush1.bf16.msra.mxu0 0
    %4059 = vmatprep.subr.bf16.mxu0 0
    %4060 = vmatpush1.bf16.msra.mxu0 0
    %4061 = vmatprep.subr.bf16.mxu0 0
    %4062 = vmatpush1.bf16.msra.mxu0 0
    %4063 = vmatprep.subr.bf16.mxu0 0
    %4064 = vmatpush1.bf16.msra.mxu0 0
    %4065 = vmatprep.subr.bf16.mxu0 0
    %4066 = vmatpush1.bf16.msra.mxu0 %v4046
    %4067 = vmatprep.subr.bf16.mxu0 0
    %4068 = vmatpush2.bf16.msra.mxu0 0
    %4069 = vmatprep.subr.bf16.mxu0 0
    %4070 = vmatpush2.bf16.msra.mxu0 0
    %4071 = vmatprep.subr.bf16.mxu0 0
    %4072 = vmatpush2.bf16.msra.mxu0 0
    %4073 = vmatprep.subr.bf16.mxu0 0
    %4074 = vmatpush2.bf16.msra.mxu0 0
    %4075 = vmatprep.subr.bf16.mxu0 0
    %4076 = vmatpush2.bf16.msra.mxu0 0
    %4077 = vmatprep.subr.bf16.mxu0 0
    %4078 = vmatpush2.bf16.msra.mxu0 0
    %4079 = vmatprep.subr.bf16.mxu0 0
    %4080 = vmatpush2.bf16.msra.mxu0 0
    %4081 = vmatprep.subr.bf16.mxu0 0
    %4082 = vmatpush2.bf16.msra.mxu0 0
    %4083 = vmatprep.mubr.bf16.mxu0 0
    %4084 = vmatmul.mubr.bf16.gmra.mxu0 %v4049
    %v4085 = vpop.f32.mrf.mxu0
    %v4086 = vadd.f32 0.0, %v4085
    %v4087 = vpop.f32.mrf.mxu0
    %v4088 = vpop.f32.mrf.mxu0
    %v4089 = vadd.f32 0.0, %v4088
    %v4090 = vpop.f32.mrf.mxu0
    %4091 = vdwg.mxu0
    %4092 = vrot.lane.b32.xlu0 %v425, 96
    %v4093 = vpop.permute.xlu0 %4092
    %v4096 = vsel %vm2133, %v2864, 0
    %4098 = vmatprep.subr.bf16.mxu0 0
    %4099 = vmatpush1.bf16.msra.mxu0 0
    %4100 = vmatprep.subr.bf16.mxu0 0
    %4101 = vmatpush1.bf16.msra.mxu0 0
    %4102 = vmatprep.subr.bf16.mxu0 0
    %4103 = vmatpush1.bf16.msra.mxu0 0
    %4104 = vmatprep.subr.bf16.mxu0 0
    %4105 = vmatpush1.bf16.msra.mxu0 0
    %4106 = vmatprep.subr.bf16.mxu0 0
    %4107 = vmatpush1.bf16.msra.mxu0 0
    %4108 = vmatprep.subr.bf16.mxu0 0
    %4109 = vmatpush1.bf16.msra.mxu0 0
    %4110 = vmatprep.subr.bf16.mxu0 0
    %4111 = vmatpush1.bf16.msra.mxu0 0
    %4112 = vmatprep.subr.bf16.mxu0 0
    %4113 = vmatpush1.bf16.msra.mxu0 %v4093
    %4114 = vmatprep.subr.bf16.mxu0 0
    %4115 = vmatpush2.bf16.msra.mxu0 0
    %4116 = vmatprep.subr.bf16.mxu0 0
    %4117 = vmatpush2.bf16.msra.mxu0 0
    %4118 = vmatprep.subr.bf16.mxu0 0
    %4119 = vmatpush2.bf16.msra.mxu0 0
    %4120 = vmatprep.subr.bf16.mxu0 0
    %4121 = vmatpush2.bf16.msra.mxu0 0
    %4122 = vmatprep.subr.bf16.mxu0 0
    %4123 = vmatpush2.bf16.msra.mxu0 0
    %4124 = vmatprep.subr.bf16.mxu0 0
    %4125 = vmatpush2.bf16.msra.mxu0 0
    %4126 = vmatprep.subr.bf16.mxu0 0
    %4127 = vmatpush2.bf16.msra.mxu0 0
    %4128 = vmatprep.subr.bf16.mxu0 0
    %4129 = vmatpush2.bf16.msra.mxu0 0
    %4130 = vmatprep.mubr.bf16.mxu0 0
    %4131 = vmatmul.mubr.bf16.gmra.mxu0 %v4096
    %v4132 = vpop.f32.mrf.mxu0
    %v4133 = vadd.f32 0.0, %v4132
    %v4134 = vpop.f32.mrf.mxu0
    %v4135 = vpop.f32.mrf.mxu0
    %v4136 = vadd.f32 0.0, %v4135
    %v4137 = vpop.f32.mrf.mxu0
    %4138 = vdwg.mxu0
    %4139 = vrot.lane.b32.xlu0 %v427, 96
    %v4140 = vpop.permute.xlu0 %4139
    %v4143 = vsel %vm2133, %v2865, 0
    %4145 = vmatprep.subr.bf16.mxu0 0
    %4146 = vmatpush1.bf16.msra.mxu0 0
    %4147 = vmatprep.subr.bf16.mxu0 0
    %4148 = vmatpush1.bf16.msra.mxu0 0
    %4149 = vmatprep.subr.bf16.mxu0 0
    %4150 = vmatpush1.bf16.msra.mxu0 0
    %4151 = vmatprep.subr.bf16.mxu0 0
    %4152 = vmatpush1.bf16.msra.mxu0 0
    %4153 = vmatprep.subr.bf16.mxu0 0
    %4154 = vmatpush1.bf16.msra.mxu0 0
    %4155 = vmatprep.subr.bf16.mxu0 0
    %4156 = vmatpush1.bf16.msra.mxu0 0
    %4157 = vmatprep.subr.bf16.mxu0 0
    %4158 = vmatpush1.bf16.msra.mxu0 0
    %4159 = vmatprep.subr.bf16.mxu0 0
    %4160 = vmatpush1.bf16.msra.mxu0 %v4140
    %4161 = vmatprep.subr.bf16.mxu0 0
    %4162 = vmatpush2.bf16.msra.mxu0 0
    %4163 = vmatprep.subr.bf16.mxu0 0
    %4164 = vmatpush2.bf16.msra.mxu0 0
    %4165 = vmatprep.subr.bf16.mxu0 0
    %4166 = vmatpush2.bf16.msra.mxu0 0
    %4167 = vmatprep.subr.bf16.mxu0 0
    %4168 = vmatpush2.bf16.msra.mxu0 0
    %4169 = vmatprep.subr.bf16.mxu0 0
    %4170 = vmatpush2.bf16.msra.mxu0 0
    %4171 = vmatprep.subr.bf16.mxu0 0
    %4172 = vmatpush2.bf16.msra.mxu0 0
    %4173 = vmatprep.subr.bf16.mxu0 0
    %4174 = vmatpush2.bf16.msra.mxu0 0
    %4175 = vmatprep.subr.bf16.mxu0 0
    %4176 = vmatpush2.bf16.msra.mxu0 0
    %4177 = vmatprep.mubr.bf16.mxu0 0
    %4178 = vmatmul.mubr.bf16.gmra.mxu0 %v4143
    %v4179 = vpop.f32.mrf.mxu0
    %v4180 = vadd.f32 0.0, %v4179
    %v4181 = vpop.f32.mrf.mxu0
    %v4182 = vpop.f32.mrf.mxu0
    %v4183 = vadd.f32 0.0, %v4182
    %v4184 = vpop.f32.mrf.mxu0
    %4185 = vdwg.mxu0
    %4186 = vrot.lane.b32.xlu0 %v429, 96
    %v4187 = vpop.permute.xlu0 %4186
    %v4190 = vsel %vm2133, %v2866, 0
    %4192 = vmatprep.subr.bf16.mxu0 0
    %4193 = vmatpush1.bf16.msra.mxu0 0
    %4194 = vmatprep.subr.bf16.mxu0 0
    %4195 = vmatpush1.bf16.msra.mxu0 0
    %4196 = vmatprep.subr.bf16.mxu0 0
    %4197 = vmatpush1.bf16.msra.mxu0 0
    %4198 = vmatprep.subr.bf16.mxu0 0
    %4199 = vmatpush1.bf16.msra.mxu0 0
    %4200 = vmatprep.subr.bf16.mxu0 0
    %4201 = vmatpush1.bf16.msra.mxu0 0
    %4202 = vmatprep.subr.bf16.mxu0 0
    %4203 = vmatpush1.bf16.msra.mxu0 0
    %4204 = vmatprep.subr.bf16.mxu0 0
    %4205 = vmatpush1.bf16.msra.mxu0 0
    %4206 = vmatprep.subr.bf16.mxu0 0
    %4207 = vmatpush1.bf16.msra.mxu0 %v4187
    %4208 = vmatprep.subr.bf16.mxu0 0
    %4209 = vmatpush2.bf16.msra.mxu0 0
    %4210 = vmatprep.subr.bf16.mxu0 0
    %4211 = vmatpush2.bf16.msra.mxu0 0
    %4212 = vmatprep.subr.bf16.mxu0 0
    %4213 = vmatpush2.bf16.msra.mxu0 0
    %4214 = vmatprep.subr.bf16.mxu0 0
    %4215 = vmatpush2.bf16.msra.mxu0 0
    %4216 = vmatprep.subr.bf16.mxu0 0
    %4217 = vmatpush2.bf16.msra.mxu0 0
    %4218 = vmatprep.subr.bf16.mxu0 0
    %4219 = vmatpush2.bf16.msra.mxu0 0
    %4220 = vmatprep.subr.bf16.mxu0 0
    %4221 = vmatpush2.bf16.msra.mxu0 0
    %4222 = vmatprep.subr.bf16.mxu0 0
    %4223 = vmatpush2.bf16.msra.mxu0 0
    %4224 = vmatprep.mubr.bf16.mxu0 0
    %4225 = vmatmul.mubr.bf16.gmra.mxu0 %v4190
    %v4226 = vpop.f32.mrf.mxu0
    %v4227 = vadd.f32 0.0, %v4226
    %v4228 = vpop.f32.mrf.mxu0
    %v4229 = vpop.f32.mrf.mxu0
    %v4230 = vadd.f32 0.0, %v4229
    %v4231 = vpop.f32.mrf.mxu0
    %4232 = vdwg.mxu0
    %4233 = vrot.lane.b32.xlu0 %v431, 96
    %v4234 = vpop.permute.xlu0 %4233
    %v4237 = vsel %vm2133, %v2867, 0
    %4239 = vmatprep.subr.bf16.mxu0 0
    %4240 = vmatpush1.bf16.msra.mxu0 0
    %4241 = vmatprep.subr.bf16.mxu0 0
    %4242 = vmatpush1.bf16.msra.mxu0 0
    %4243 = vmatprep.subr.bf16.mxu0 0
    %4244 = vmatpush1.bf16.msra.mxu0 0
    %4245 = vmatprep.subr.bf16.mxu0 0
    %4246 = vmatpush1.bf16.msra.mxu0 0
    %4247 = vmatprep.subr.bf16.mxu0 0
    %4248 = vmatpush1.bf16.msra.mxu0 0
    %4249 = vmatprep.subr.bf16.mxu0 0
    %4250 = vmatpush1.bf16.msra.mxu0 0
    %4251 = vmatprep.subr.bf16.mxu0 0
    %4252 = vmatpush1.bf16.msra.mxu0 0
    %4253 = vmatprep.subr.bf16.mxu0 0
    %4254 = vmatpush1.bf16.msra.mxu0 %v4234
    %4255 = vmatprep.subr.bf16.mxu0 0
    %4256 = vmatpush2.bf16.msra.mxu0 0
    %4257 = vmatprep.subr.bf16.mxu0 0
    %4258 = vmatpush2.bf16.msra.mxu0 0
    %4259 = vmatprep.subr.bf16.mxu0 0
    %4260 = vmatpush2.bf16.msra.mxu0 0
    %4261 = vmatprep.subr.bf16.mxu0 0
    %4262 = vmatpush2.bf16.msra.mxu0 0
    %4263 = vmatprep.subr.bf16.mxu0 0
    %4264 = vmatpush2.bf16.msra.mxu0 0
    %4265 = vmatprep.subr.bf16.mxu0 0
    %4266 = vmatpush2.bf16.msra.mxu0 0
    %4267 = vmatprep.subr.bf16.mxu0 0
    %4268 = vmatpush2.bf16.msra.mxu0 0
    %4269 = vmatprep.subr.bf16.mxu0 0
    %4270 = vmatpush2.bf16.msra.mxu0 0
    %4271 = vmatprep.mubr.bf16.mxu0 0
    %4272 = vmatmul.mubr.bf16.gmra.mxu0 %v4237
    %v4273 = vpop.f32.mrf.mxu0
    %v4274 = vadd.f32 0.0, %v4273
    %v4275 = vpop.f32.mrf.mxu0
    %v4276 = vpop.f32.mrf.mxu0
    %v4277 = vadd.f32 0.0, %v4276
    %v4278 = vpop.f32.mrf.mxu0
    %4279 = vdwg.mxu0
    %4280 = vrot.lane.b32.xlu0 %v433, 96
    %v4281 = vpop.permute.xlu0 %4280
    %v4284 = vsel %vm2133, %v2868, 0
    %4286 = vmatprep.subr.bf16.mxu0 0
    %4287 = vmatpush1.bf16.msra.mxu0 0
    %4288 = vmatprep.subr.bf16.mxu0 0
    %4289 = vmatpush1.bf16.msra.mxu0 0
    %4290 = vmatprep.subr.bf16.mxu0 0
    %4291 = vmatpush1.bf16.msra.mxu0 0
    %4292 = vmatprep.subr.bf16.mxu0 0
    %4293 = vmatpush1.bf16.msra.mxu0 0
    %4294 = vmatprep.subr.bf16.mxu0 0
    %4295 = vmatpush1.bf16.msra.mxu0 0
    %4296 = vmatprep.subr.bf16.mxu0 0
    %4297 = vmatpush1.bf16.msra.mxu0 0
    %4298 = vmatprep.subr.bf16.mxu0 0
    %4299 = vmatpush1.bf16.msra.mxu0 0
    %4300 = vmatprep.subr.bf16.mxu0 0
    %4301 = vmatpush1.bf16.msra.mxu0 %v4281
    %4302 = vmatprep.subr.bf16.mxu0 0
    %4303 = vmatpush2.bf16.msra.mxu0 0
    %4304 = vmatprep.subr.bf16.mxu0 0
    %4305 = vmatpush2.bf16.msra.mxu0 0
    %4306 = vmatprep.subr.bf16.mxu0 0
    %4307 = vmatpush2.bf16.msra.mxu0 0
    %4308 = vmatprep.subr.bf16.mxu0 0
    %4309 = vmatpush2.bf16.msra.mxu0 0
    %4310 = vmatprep.subr.bf16.mxu0 0
    %4311 = vmatpush2.bf16.msra.mxu0 0
    %4312 = vmatprep.subr.bf16.mxu0 0
    %4313 = vmatpush2.bf16.msra.mxu0 0
    %4314 = vmatprep.subr.bf16.mxu0 0
    %4315 = vmatpush2.bf16.msra.mxu0 0
    %4316 = vmatprep.subr.bf16.mxu0 0
    %4317 = vmatpush2.bf16.msra.mxu0 0
    %4318 = vmatprep.mubr.bf16.mxu0 0
    %4319 = vmatmul.mubr.bf16.gmra.mxu0 %v4284
    %v4320 = vpop.f32.mrf.mxu0
    %v4321 = vadd.f32 0.0, %v4320
    %v4322 = vpop.f32.mrf.mxu0
    %v4323 = vpop.f32.mrf.mxu0
    %v4324 = vadd.f32 0.0, %v4323
    %v4325 = vpop.f32.mrf.mxu0
    %4326 = vdwg.mxu0
    %4327 = vrot.lane.b32.xlu0 %v435, 96
    %v4328 = vpop.permute.xlu0 %4327
    %v4331 = vsel %vm2133, %v2869, 0
    %4333 = vmatprep.subr.bf16.mxu0 0
    %4334 = vmatpush1.bf16.msra.mxu0 0
    %4335 = vmatprep.subr.bf16.mxu0 0
    %4336 = vmatpush1.bf16.msra.mxu0 0
    %4337 = vmatprep.subr.bf16.mxu0 0
    %4338 = vmatpush1.bf16.msra.mxu0 0
    %4339 = vmatprep.subr.bf16.mxu0 0
    %4340 = vmatpush1.bf16.msra.mxu0 0
    %4341 = vmatprep.subr.bf16.mxu0 0
    %4342 = vmatpush1.bf16.msra.mxu0 0
    %4343 = vmatprep.subr.bf16.mxu0 0
    %4344 = vmatpush1.bf16.msra.mxu0 0
    %4345 = vmatprep.subr.bf16.mxu0 0
    %4346 = vmatpush1.bf16.msra.mxu0 0
    %4347 = vmatprep.subr.bf16.mxu0 0
    %4348 = vmatpush1.bf16.msra.mxu0 %v4328
    %4349 = vmatprep.subr.bf16.mxu0 0
    %4350 = vmatpush2.bf16.msra.mxu0 0
    %4351 = vmatprep.subr.bf16.mxu0 0
    %4352 = vmatpush2.bf16.msra.mxu0 0
    %4353 = vmatprep.subr.bf16.mxu0 0
    %4354 = vmatpush2.bf16.msra.mxu0 0
    %4355 = vmatprep.subr.bf16.mxu0 0
    %4356 = vmatpush2.bf16.msra.mxu0 0
    %4357 = vmatprep.subr.bf16.mxu0 0
    %4358 = vmatpush2.bf16.msra.mxu0 0
    %4359 = vmatprep.subr.bf16.mxu0 0
    %4360 = vmatpush2.bf16.msra.mxu0 0
    %4361 = vmatprep.subr.bf16.mxu0 0
    %4362 = vmatpush2.bf16.msra.mxu0 0
    %4363 = vmatprep.subr.bf16.mxu0 0
    %4364 = vmatpush2.bf16.msra.mxu0 0
    %4365 = vmatprep.mubr.bf16.mxu0 0
    %4366 = vmatmul.mubr.bf16.gmra.mxu0 %v4331
    %v4367 = vpop.f32.mrf.mxu0
    %v4368 = vadd.f32 0.0, %v4367
    %v4369 = vpop.f32.mrf.mxu0
    %v4370 = vpop.f32.mrf.mxu0
    %v4371 = vadd.f32 0.0, %v4370
    %v4372 = vpop.f32.mrf.mxu0
    %4373 = vdwg.mxu0
    %v4374 = vpack.c.bf16 %v2914, %v2911
    %v4375 = vpack.c.bf16 %v2961, %v2958
    %v4376 = vpack.c.bf16 %v3008, %v3005
    %v4377 = vpack.c.bf16 %v3055, %v3052
    %v4378 = vpack.c.bf16 %v3102, %v3099
    %v4379 = vpack.c.bf16 %v3149, %v3146
    %v4380 = vpack.c.bf16 %v3196, %v3193
    %v4381 = vpack.c.bf16 %v3243, %v3240
    %v4382 = vpack.c.bf16 %v3290, %v3287
    %v4383 = vpack.c.bf16 %v3337, %v3334
    %v4384 = vpack.c.bf16 %v3384, %v3381
    %v4385 = vpack.c.bf16 %v3431, %v3428
    %v4386 = vpack.c.bf16 %v3478, %v3475
    %v4387 = vpack.c.bf16 %v3525, %v3522
    %v4388 = vpack.c.bf16 %v3572, %v3569
    %v4389 = vpack.c.bf16 %v3619, %v3616
    %v4390 = vpack.c.bf16 %v3666, %v3663
    %v4391 = vpack.c.bf16 %v3713, %v3710
    %v4392 = vpack.c.bf16 %v3760, %v3757
    %v4393 = vpack.c.bf16 %v3807, %v3804
    %v4394 = vpack.c.bf16 %v3854, %v3851
    %v4395 = vpack.c.bf16 %v3901, %v3898
    %v4396 = vpack.c.bf16 %v3948, %v3945
    %v4397 = vpack.c.bf16 %v3995, %v3992
    %v4398 = vpack.c.bf16 %v4042, %v4039
    %v4399 = vpack.c.bf16 %v4089, %v4086
    %v4400 = vpack.c.bf16 %v4136, %v4133
    %v4401 = vpack.c.bf16 %v4183, %v4180
    %v4402 = vpack.c.bf16 %v4230, %v4227
    %v4403 = vpack.c.bf16 %v4277, %v4274
    %v4404 = vpack.c.bf16 %v4324, %v4321
    %v4405 = vpack.c.bf16 %v4371, %v4368
    %4414 = vrot.lane.b32.xlu0 %v4382, 8
    %v4415 = vpop.permute.xlu0 %4414
    %4416 = vrot.lane.b32.xlu0 %v4383, 8
    %v4417 = vpop.permute.xlu0 %4416
    %4418 = vrot.lane.b32.xlu0 %v4384, 8
    %v4419 = vpop.permute.xlu0 %4418
    %4420 = vrot.lane.b32.xlu0 %v4385, 8
    %v4421 = vpop.permute.xlu0 %4420
    %4422 = vrot.lane.b32.xlu0 %v4386, 8
    %v4423 = vpop.permute.xlu0 %4422
    %4424 = vrot.lane.b32.xlu0 %v4387, 8
    %v4425 = vpop.permute.xlu0 %4424
    %4426 = vrot.lane.b32.xlu0 %v4388, 8
    %v4427 = vpop.permute.xlu0 %4426
    %4428 = vrot.lane.b32.xlu0 %v4389, 8
    %v4429 = vpop.permute.xlu0 %4428
    %4438 = vrot.lane.b32.xlu0 %v4390, 16
    %v4439 = vpop.permute.xlu0 %4438
    %4440 = vrot.lane.b32.xlu0 %v4391, 16
    %v4441 = vpop.permute.xlu0 %4440
    %4442 = vrot.lane.b32.xlu0 %v4392, 16
    %v4443 = vpop.permute.xlu0 %4442
    %4444 = vrot.lane.b32.xlu0 %v4393, 16
    %v4445 = vpop.permute.xlu0 %4444
    %4446 = vrot.lane.b32.xlu0 %v4394, 16
    %v4447 = vpop.permute.xlu0 %4446
    %4448 = vrot.lane.b32.xlu0 %v4395, 16
    %v4449 = vpop.permute.xlu0 %4448
    %4450 = vrot.lane.b32.xlu0 %v4396, 16
    %v4451 = vpop.permute.xlu0 %4450
    %4452 = vrot.lane.b32.xlu0 %v4397, 16
    %v4453 = vpop.permute.xlu0 %4452
    %4462 = vrot.lane.b32.xlu0 %v4398, 24
    %v4463 = vpop.permute.xlu0 %4462
    %4464 = vrot.lane.b32.xlu0 %v4399, 24
    %v4465 = vpop.permute.xlu0 %4464
    %4466 = vrot.lane.b32.xlu0 %v4400, 24
    %v4467 = vpop.permute.xlu0 %4466
    %4468 = vrot.lane.b32.xlu0 %v4401, 24
    %v4469 = vpop.permute.xlu0 %4468
    %4470 = vrot.lane.b32.xlu0 %v4402, 24
    %v4471 = vpop.permute.xlu0 %4470
    %4472 = vrot.lane.b32.xlu0 %v4403, 24
    %v4473 = vpop.permute.xlu0 %4472
    %4474 = vrot.lane.b32.xlu0 %v4404, 24
    %v4475 = vpop.permute.xlu0 %4474
    %4476 = vrot.lane.b32.xlu0 %v4405, 24
    %v4477 = vpop.permute.xlu0 %4476
    %v4480 = vsel %vm494, %v4374, %v4415
    %v4483 = vsel %vm494, %v4375, %v4417
    %v4486 = vsel %vm494, %v4376, %v4419
    %v4489 = vsel %vm494, %v4377, %v4421
    %v4492 = vsel %vm494, %v4378, %v4423
    %v4495 = vsel %vm494, %v4379, %v4425
    %v4498 = vsel %vm494, %v4380, %v4427
    %v4501 = vsel %vm494, %v4381, %v4429
    %v4503 = vsel %vm2133, %v4480, %v4439
    %v4505 = vsel %vm2133, %v4483, %v4441
    %v4507 = vsel %vm2133, %v4486, %v4443
    %v4509 = vsel %vm2133, %v4489, %v4445
    %v4511 = vsel %vm2133, %v4492, %v4447
    %v4513 = vsel %vm2133, %v4495, %v4449
    %v4515 = vsel %vm2133, %v4498, %v4451
    %v4517 = vsel %vm2133, %v4501, %v4453
    %vm4518 = vcmask 195584
    %v4520 = vsel %vm4518, %v4503, %v4463
    %v4522 = vsel %vm4518, %v4505, %v4465
    %v4524 = vsel %vm4518, %v4507, %v4467
    %v4526 = vsel %vm4518, %v4509, %v4469
    %v4528 = vsel %vm4518, %v4511, %v4471
    %v4530 = vsel %vm4518, %v4513, %v4473
    %v4532 = vsel %vm4518, %v4515, %v4475
    %v4534 = vsel %vm4518, %v4517, %v4477
    %4535 = vrot.lane.b32.xlu0 %v150, 32
    %v4536 = vpop.permute.xlu0 %4535
    %4537 = vrot.lane.b32.xlu0 %v151, 32
    %v4538 = vpop.permute.xlu0 %4537
    %4541 = vrot.lane.b32.xlu0 %v60, 32
    %v4542 = vpop.permute.xlu0 %4541
    %v4544 = vsel %vm154, %v4520, 0
    %v4546 = vsel %vm154, %v4522, 0
    %v4548 = vsel %vm154, %v4524, 0
    %v4550 = vsel %vm154, %v4526, 0
    %v4552 = vsel %vm154, %v4528, 0
    %v4554 = vsel %vm154, %v4530, 0
    %v4556 = vsel %vm154, %v4532, 0
    %v4558 = vsel %vm154, %v4534, 0
    %4560 = vmatprep.subr.bf16.mxu0 0
    %4561 = vmatpush1.bf16.msra.mxu0 0
    %4562 = vmatprep.subr.bf16.mxu0 0
    %4563 = vmatpush1.bf16.msra.mxu0 0
    %4564 = vmatprep.subr.bf16.mxu0 0
    %4565 = vmatpush1.bf16.msra.mxu0 0
    %4566 = vmatprep.subr.bf16.mxu0 0
    %4567 = vmatpush1.bf16.msra.mxu0 0
    %4568 = vmatprep.subr.bf16.mxu0 0
    %4569 = vmatpush1.bf16.msra.mxu0 0
    %4570 = vmatprep.subr.bf16.mxu0 0
    %4571 = vmatpush1.bf16.msra.mxu0 0
    %4572 = vmatprep.subr.bf16.mxu0 0
    %4573 = vmatpush1.bf16.msra.mxu0 %v4538
    %4574 = vmatprep.subr.bf16.mxu0 0
    %4575 = vmatpush1.bf16.msra.mxu0 %v4536
    %4576 = vmatprep.subr.bf16.mxu0 0
    %4577 = vmatpush2.bf16.msra.mxu0 0
    %4578 = vmatprep.subr.bf16.mxu0 0
    %4579 = vmatpush2.bf16.msra.mxu0 0
    %4580 = vmatprep.subr.bf16.mxu0 0
    %4581 = vmatpush2.bf16.msra.mxu0 0
    %4582 = vmatprep.subr.bf16.mxu0 0
    %4583 = vmatpush2.bf16.msra.mxu0 0
    %4584 = vmatprep.subr.bf16.mxu0 0
    %4585 = vmatpush2.bf16.msra.mxu0 0
    %4586 = vmatprep.subr.bf16.mxu0 0
    %4587 = vmatpush2.bf16.msra.mxu0 0
    %4588 = vmatprep.subr.bf16.mxu0 0
    %4589 = vmatpush2.bf16.msra.mxu0 0
    %4590 = vmatprep.subr.bf16.mxu0 0
    %4591 = vmatpush2.bf16.msra.mxu0 0
    %4592 = vmatprep.mubr.bf16.mxu0 0
    %4593 = vmatmul.mubr.bf16.gmra.mxu0 %v4544
    %v4594 = vpop.f32.mrf.mxu0
    %v4595 = vadd.f32 %v4542, %v4594
    %v4596 = vpop.f32.mrf.mxu0
    %v4597 = vpop.f32.mrf.mxu0
    %v4598 = vadd.f32 %v4542, %v4597
    %v4599 = vpop.f32.mrf.mxu0
    %4600 = vmatprep.mubr.bf16.mxu0 0
    %4601 = vmatmul.mubr.bf16.gmra.mxu0 %v4546
    %v4602 = vpop.f32.mrf.mxu0
    %v4603 = vadd.f32 %v4542, %v4602
    %v4604 = vpop.f32.mrf.mxu0
    %v4605 = vpop.f32.mrf.mxu0
    %v4606 = vadd.f32 %v4542, %v4605
    %v4607 = vpop.f32.mrf.mxu0
    %4608 = vmatprep.mubr.bf16.mxu0 0
    %4609 = vmatmul.mubr.bf16.gmra.mxu0 %v4548
    %v4610 = vpop.f32.mrf.mxu0
    %v4611 = vadd.f32 %v4542, %v4610
    %v4612 = vpop.f32.mrf.mxu0
    %v4613 = vpop.f32.mrf.mxu0
    %v4614 = vadd.f32 %v4542, %v4613
    %v4615 = vpop.f32.mrf.mxu0
    %4616 = vmatprep.mubr.bf16.mxu0 0
    %4617 = vmatmul.mubr.bf16.gmra.mxu0 %v4550
    %v4618 = vpop.f32.mrf.mxu0
    %v4619 = vadd.f32 %v4542, %v4618
    %v4620 = vpop.f32.mrf.mxu0
    %v4621 = vpop.f32.mrf.mxu0
    %v4622 = vadd.f32 %v4542, %v4621
    %v4623 = vpop.f32.mrf.mxu0
    %4624 = vmatprep.mubr.bf16.mxu0 0
    %4625 = vmatmul.mubr.bf16.gmra.mxu0 %v4552
    %v4626 = vpop.f32.mrf.mxu0
    %v4627 = vadd.f32 %v4542, %v4626
    %v4628 = vpop.f32.mrf.mxu0
    %v4629 = vpop.f32.mrf.mxu0
    %v4630 = vadd.f32 %v4542, %v4629
    %v4631 = vpop.f32.mrf.mxu0
    %4632 = vmatprep.mubr.bf16.mxu0 0
    %4633 = vmatmul.mubr.bf16.gmra.mxu0 %v4554
    %v4634 = vpop.f32.mrf.mxu0
    %v4635 = vadd.f32 %v4542, %v4634
    %v4636 = vpop.f32.mrf.mxu0
    %v4637 = vpop.f32.mrf.mxu0
    %v4638 = vadd.f32 %v4542, %v4637
    %v4639 = vpop.f32.mrf.mxu0
    %4640 = vmatprep.mubr.bf16.mxu0 0
    %4641 = vmatmul.mubr.bf16.gmra.mxu0 %v4556
    %v4642 = vpop.f32.mrf.mxu0
    %v4643 = vadd.f32 %v4542, %v4642
    %v4644 = vpop.f32.mrf.mxu0
    %v4645 = vpop.f32.mrf.mxu0
    %v4646 = vadd.f32 %v4542, %v4645
    %v4647 = vpop.f32.mrf.mxu0
    %4648 = vmatprep.mubr.bf16.mxu0 0
    %4649 = vmatmul.mubr.bf16.gmra.mxu0 %v4558
    %v4650 = vpop.f32.mrf.mxu0
    %v4651 = vadd.f32 %v4542, %v4650
    %v4652 = vpop.f32.mrf.mxu0
    %v4653 = vpop.f32.mrf.mxu0
    %v4654 = vadd.f32 %v4542, %v4653
    %v4655 = vpop.f32.mrf.mxu0
    %4656 = vdwg.mxu0
    %4657 = vst.msk [vmem:[#allocation2] sm:$0xff] %vm154, %v4595
    %4658 = vst.msk [vmem:[#allocation2 + $0x8] sm:$0xff] %vm154, %v4598
    %4659 = vst.msk [vmem:[#allocation2 + $0x10] sm:$0xff] %vm154, %v4603
    %4660 = vst.msk [vmem:[#allocation2 + $0x18] sm:$0xff] %vm154, %v4606
    %4661 = vst.msk [vmem:[#allocation2 + $0x20] sm:$0xff] %vm154, %v4611
    %4662 = vst.msk [vmem:[#allocation2 + $0x28] sm:$0xff] %vm154, %v4614
    %4663 = vst.msk [vmem:[#allocation2 + $0x30] sm:$0xff] %vm154, %v4619
    %4664 = vst.msk [vmem:[#allocation2 + $0x38] sm:$0xff] %vm154, %v4622
    %4665 = vst.msk [vmem:[#allocation2 + $0x40] sm:$0xff] %vm154, %v4627
    %4666 = vst.msk [vmem:[#allocation2 + $0x48] sm:$0xff] %vm154, %v4630
    %4667 = vst.msk [vmem:[#allocation2 + $0x50] sm:$0xff] %vm154, %v4635
    %4668 = vst.msk [vmem:[#allocation2 + $0x58] sm:$0xff] %vm154, %v4638
    %4669 = vst.msk [vmem:[#allocation2 + $0x60] sm:$0xff] %vm154, %v4643
    %4670 = vst.msk [vmem:[#allocation2 + $0x68] sm:$0xff] %vm154, %v4646
    %4671 = vst.msk [vmem:[#allocation2 + $0x70] sm:$0xff] %vm154, %v4651
    %4672 = vst.msk [vmem:[#allocation2 + $0x78] sm:$0xff] %vm154, %v4654
    // Predicated region
    $region18: #{cross_attention_forward.1} parent=1 // pred_check
      _
    $region19: #{cross_attention_forward.1} parent=1 // pred_check_branch
      %4674 = sbr.rel (0) target = $region21
    $region20: #{cross_attention_forward.1} parent=1 // pred_region
      %s4676 = ssub.s32 2048, 2048
      %4677 = vsyncadd [#allocation3], %s4676
      %s4678 = sshll.u32 [#allocation2], 4
      %s4679 = int_to_ptr.vmem [resolvable:$true] %s4678
      %4684 = dma.vmem_to_hbm [thread:$0]  %s4679, 2048, %s4, [#allocation3], 128, 128, 8
    $region21: #{cross_attention_forward.1} parent=1 // pred_fallthru
      _
    // Predicated region
    $region22: #{cross_attention_forward.1} parent=1 // pred_check
      _
    $region23: #{cross_attention_forward.1} parent=1 // pred_check_branch
      %4686 = sbr.rel (0) target = $region25
    $region24: #{cross_attention_forward.1} parent=1 // pred_region
      %4687 = dma.done [#allocation3], 2048
    $region25: #{cross_attention_forward.1} parent=1 // pred_fallthru
      _
    %4688 = vsyncpa [#allocation3], 1

</llo_original>
